<compile_context>
chip_gen: v7x
topology: tpu7x:2x2x1
jax: 0.10.0
libtpu: 0.0.40
codegen_flags: <defaults>
</compile_context>

<pallas_src>
import jax
import jax.numpy as jnp
from jax import lax
from jax.experimental import pallas as pl
from jax.experimental.pallas import tpu as pltpu


# ----------------------------------------------------------------------------- #
# Fused kernel: per (batch b, time-chunk tt) program
# ----------------------------------------------------------------------------- #
def _decoder_kernel(
    # inputs
    gx_ref,       # (TT, 4H) f32 : x @ W_ih + (b_ih + b_hh), this batch / chunk
    whh_ref,      # (H, 4H)  f32 : recurrent weights, gates fused on lanes
    h0_ref,       # (1, H)   f32
    c0_ref,       # (1, H)   f32
    mask_ref,     # (TT, 1)  f32 : 1.0 where t < tgt_len else 0.0
    gxg_ref,      # (TT, 1)  f32 : (masked dec_in) @ W_x   (pointer gate, hoisted)
    eo_ref,       # (S, H)   cdt : encoder outputs, this batch
    hpT_ref,      # (A, S)   f32 : (eo @ W_h + b_h)^T, hoisted to wrapper
    ws_ref,       # (H, A)   cdt
    bs_ref,       # (1, A)   f32
    wv_ref,       # (1, A)   f32
    bv_ref,       # (1, 1)   f32
    w1a_ref,      # (H, V+1) cdt : [w1 rows for dec_out | W_s gate column]
    w1b_ref,      # (H, V+1) cdt : [w1 rows for context | W_h gate column]
    b1e_ref,      # (1, V+1) f32 : [b1 | bgh + bgs + bgx]
    w2_ref,       # (V, V)   cdt
    b2_ref,       # (1, V)   f32
    # outputs
    pv_ref,       # (TT, V)  f32
    pc_ref,       # (TT, S)  f32
    pg_ref,       # (TT, 1)  f32
    am_ref,       # (TT, S)  f32
    # scratch
    h_sc, c_sc,   # (1, H)   f32 : LSTM carry across time-chunks
    do_sc,        # (TT, H)  f32 : this chunk's decoder hidden states
):
    TT = gx_ref.shape[0]
    H = whh_ref.shape[0]
    V = w2_ref.shape[0]
    A = ws_ref.shape[1]
    S = eo_ref.shape[0]
    cdt = w2_ref.dtype            # MXU operand dtype for the heads (f32 or bf16)

    # initialize the recurrent carry at the first time-chunk of this batch row
    @pl.when(pl.program_id(1) == 0)
    def _():
        h_sc[...] = h0_ref[...]
        c_sc[...] = c0_ref[...]

    # ---------------- LSTM recurrence (fully unrolled over the chunk) ----------
    h = h_sc[...]                 # (1, H) f32
    c = c_sc[...]
    whh = whh_ref[...]            # (H, 4H) f32
    for i in range(TT):           # static trip count -> fully unrolled
        gates = gx_ref[pl.ds(i, 1), :] + jnp.dot(
            h, whh, preferred_element_type=jnp.float32)          # (1, 4H)
        i_g = jax.nn.sigmoid(gates[:, 0 * H:1 * H])
        f_g = jax.nn.sigmoid(gates[:, 1 * H:2 * H])
        g_g = jnp.tanh(gates[:, 2 * H:3 * H])
        o_g = jax.nn.sigmoid(gates[:, 3 * H:4 * H])
        c = f_g * c + i_g * g_g
        h = o_g * jnp.tanh(c)
        do_sc[pl.ds(i, 1), :] = h
    h_sc[...] = h
    c_sc[...] = c

    # pack_padded_sequence semantics: zero hidden states past each length
    do = do_sc[...] * mask_ref[...]                               # (TT, H)
    do_c = do.astype(cdt)

    # ---------------- additive attention (S on lanes) --------------------------
    s_proj = jnp.dot(do_c, ws_ref[...],
                     preferred_element_type=jnp.float32) + bs_ref[...]   # (TT, A)
    e = jnp.tanh(s_proj[:, :, None] + hpT_ref[...][None, :, :])          # (TT, A, S)
    wv_b = jnp.broadcast_to(wv_ref[...].reshape(1, 1, A), (TT, 1, A))
    energy = jnp.einsum("tua,tas->tus", wv_b, e,
                        preferred_element_type=jnp.float32).reshape(TT, S)
    energy = energy + bv_ref[...]                                        # (TT, S)
    energy = energy - jnp.max(energy, axis=-1, keepdims=True)
    ea = jnp.exp(energy)
    attn = ea * pl.reciprocal(jnp.sum(ea, axis=-1, keepdims=True), approx=True)

    # context = attn @ encoder_outputs
    ctx = jnp.dot(attn.astype(cdt), eo_ref[...],
                  preferred_element_type=jnp.float32)                    # (TT, H)

    # ---------------- vocab head + pointer gate --------------------------------
    # last column of w1a/w1b is the (dec_out, ctx) part of the pointer gate.
    l1e = (jnp.dot(do_c, w1a_ref[...], preferred_element_type=jnp.float32)
           + jnp.dot(ctx.astype(cdt), w1b_ref[...], preferred_element_type=jnp.float32)
           + b1e_ref[...])                                               # (TT, V+1)
    logits1 = l1e[:, :V]
    p_gen = jax.nn.sigmoid(l1e[:, V:] + gxg_ref[...])                    # (TT, 1)

    # TODO(synk): at production vocab sizes w1/w2 must be streamed over V tiles
    # (extra grid axis over V + online two-pass softmax) instead of being
    # VMEM-resident; resident weights are only valid at these demo sizes.
    logits2 = jnp.dot(logits1.astype(cdt), w2_ref[...],
                      preferred_element_type=jnp.float32) + b2_ref[...]  # (TT, V)
    logits2 = logits2 - jnp.max(logits2, axis=-1, keepdims=True)
    ev = jnp.exp(logits2)
    p_vocab = ev * pl.reciprocal(jnp.sum(ev, axis=-1, keepdims=True), approx=True)

    pv_ref[...] = p_vocab * p_gen
    pc_ref[...] = attn * (1.0 - p_gen)
    pg_ref[...] = p_gen
    am_ref[...] = attn


# ----------------------------------------------------------------------------- #
# Decoder forward (wrapper: hoisted projections, weight restructuring, grid)
# ----------------------------------------------------------------------------- #
def decoder_forward(decoder_inputs, tgt_lengths, encoder_outputs,
                    decoder_hidden, decoder_control, params,
                    *, mxu_dtype=jnp.float32, t_tile=None):
    B, T, E = decoder_inputs.shape
    S = encoder_outputs.shape[1]
    H = decoder_hidden.shape[-1]
    V = params["w1"].shape[1]
    A = params["attn_wh"].shape[1]
    f32 = jnp.float32

    # time-chunk size: bounds the per-program [TT, A, S] / [TT, V] intermediates
    if t_tile is None:
        if T <= 16:
            t_tile = T
        elif T % 16 == 0:
            t_tile = 16
        elif T % 8 == 0:
            t_tile = 8
        else:
            t_tile = T
    TT = t_tile
    assert T % TT == 0, "t_tile must divide T"
    nT = T // TT

    # ---- hoisted, input-only work done as plain XLA ops ------------------------
    # LSTM input projection, gates fused along the last axis (i,f,g,o order)
    gx = (decoder_inputs @ params["lstm_wih"] + params["lstm_b"][0]).astype(f32)   # [B,T,4H]

    # pad_packed_sequence: zero padded positions (outputs are masked in-kernel,
    # the gate's decoder-input term is masked here).  Assumes max(lengths) == T.
    mask = (jnp.arange(T)[None, :, None] < tgt_lengths[:, None, None]).astype(f32)  # [B,T,1]
    gate_x = ((decoder_inputs * mask) @ params["wgx"]).astype(f32)                   # [B,T,1]

    # encoder-side attention projection, transposed so S sits on lanes in-kernel
    h_projT = jnp.transpose(
        encoder_outputs @ params["attn_wh"] + params["attn_bh"], (0, 2, 1)
    ).astype(f32)                                                                    # [B,A,S]

    # fold the pointer-gate's dec_out / context matvecs into the vocab projection
    w1 = params["w1"]
    w1a = jnp.concatenate([w1[:H, :], params["wgs"]], axis=1)                        # [H,V+1]
    w1b = jnp.concatenate([w1[H:, :], params["wgh"]], axis=1)                        # [H,V+1]
    b1e = jnp.concatenate(
        [params["b1"], params["bgh"] + params["bgs"] + params["bgx"]], axis=1)       # [1,V+1]

    h0 = decoder_hidden[0][:, None, :].astype(f32)                                   # [B,1,H]
    c0 = decoder_control[0][:, None, :].astype(f32)                                  # [B,1,H]

    cdt = mxu_dtype   # head-matmul operand dtype (keep LSTM carry / accum in f32)

    ix_bt = lambda b, t: (b, t, 0)    # streamed per (batch, time-chunk)
    ix_b = lambda b, t: (b, 0, 0)     # resident per batch
    ix_w = lambda b, t: (0, 0)        # resident weights

    in_specs = [
        pl.BlockSpec((None, TT, 4 * H), ix_bt),   # gx
        pl.BlockSpec((H, 4 * H), ix_w),           # whh
        pl.BlockSpec((None, 1, H), ix_b),         # h0
        pl.BlockSpec((None, 1, H), ix_b),         # c0
        pl.BlockSpec((None, TT, 1), ix_bt),       # mask
        pl.BlockSpec((None, TT, 1), ix_bt),       # gate_x
        pl.BlockSpec((None, S, H), ix_b),         # encoder_outputs
        pl.BlockSpec((None, A, S), ix_b),         # h_projT
        pl.BlockSpec((H, A), ix_w),               # ws
        pl.BlockSpec((1, A), ix_w),               # bs
        pl.BlockSpec((1, A), ix_w),               # wv (row)
        pl.BlockSpec((1, 1), ix_w),               # bv
        pl.BlockSpec((H, V + 1), ix_w),           # w1a
        pl.BlockSpec((H, V + 1), ix_w),           # w1b
        pl.BlockSpec((1, V + 1), ix_w),           # b1e
        pl.BlockSpec((V, V), ix_w),               # w2
        pl.BlockSpec((1, V), ix_w),               # b2
    ]
    out_specs = [
        pl.BlockSpec((None, TT, V), ix_bt),
        pl.BlockSpec((None, TT, S), ix_bt),
        pl.BlockSpec((None, TT, 1), ix_bt),
        pl.BlockSpec((None, TT, S), ix_bt),
    ]
    out_shape = [
        jax.ShapeDtypeStruct((B, T, V), f32),
        jax.ShapeDtypeStruct((B, T, S), f32),
        jax.ShapeDtypeStruct((B, T, 1), f32),
        jax.ShapeDtypeStruct((B, T, S), f32),
    ]

    grid_spec = pltpu.PrefetchScalarGridSpec(
        num_scalar_prefetch=0,
        grid=(B, nT),
        in_specs=in_specs,
        out_specs=out_specs,
        scratch_shapes=[
            pltpu.VMEM((1, H), f32),    # h carry
            pltpu.VMEM((1, H), f32),    # c carry
            pltpu.VMEM((TT, H), f32),   # decoder hidden states of this chunk
        ],
    )

    # per-generation scoped-VMEM limit (v5e default is only 16 MiB; v7x has 64 MiB physical)
    try:
        phys_vmem = pltpu.get_tpu_info().vmem_capacity_bytes
    except Exception:
        phys_vmem = 128 * 1024 * 1024
    vmem_limit = int(min(phys_vmem // 2, 96 * 1024 * 1024))

    pv, pc, pg, am = pl.pallas_call(
        _decoder_kernel,
        out_shape=out_shape,
        grid_spec=grid_spec,
        compiler_params=pltpu.CompilerParams(
            dimension_semantics=("parallel", "arbitrary"),
            vmem_limit_bytes=vmem_limit),
    )(
        gx, params["lstm_whh"].astype(f32), h0, c0, mask, gate_x,
        encoder_outputs.astype(cdt), h_projT,
        params["attn_ws"].astype(cdt), params["attn_bs"],
        params["attn_wv"].T, params["attn_bv"],
        w1a.astype(cdt), w1b.astype(cdt), b1e,
        params["w2"].astype(cdt), params["b2"],
    )
    return pv, pc, pg, am


# ----------------------------------------------------------------------------- #
# Pure-JAX reference (correctness sanity check)
# ----------------------------------------------------------------------------- #
def reference_forward(decoder_inputs, tgt_lengths, encoder_outputs,
                      decoder_hidden, decoder_control, p):
    B, T, E = decoder_inputs.shape
    H = decoder_hidden.shape[-1]

    def lstm_step(carry, x_t):
        h, c = carry
        gates = x_t @ p["lstm_wih"] + h @ p["lstm_whh"] + p["lstm_b"][0]
        i = jax.nn.sigmoid(gates[:, :H])
        f = jax.nn.sigmoid(gates[:, H:2 * H])
        g = jnp.tanh(gates[:, 2 * H:3 * H])
        o = jax.nn.sigmoid(gates[:, 3 * H:])
        c_new = f * c + i * g
        h_new = o * jnp.tanh(c_new)
        return (h_new, c_new), h_new

    xs = jnp.transpose(decoder_inputs, (1, 0, 2))
    _, hs = lax.scan(lstm_step, (decoder_hidden[0], decoder_control[0]), xs)
    dec_out = jnp.transpose(hs, (1, 0, 2))
    mask = (jnp.arange(T)[None, :, None] < tgt_lengths[:, None, None]).astype(jnp.float32)
    dec_out = dec_out * mask
    dec_in = decoder_inputs * mask

    h_proj = encoder_outputs @ p["attn_wh"] + p["attn_bh"][0]           # [B,S,A]
    s_proj = dec_out @ p["attn_ws"] + p["attn_bs"][0]                   # [B,T,A]
    e = jnp.tanh(s_proj[:, :, None, :] + h_proj[:, None, :, :])         # [B,T,S,A]
    energy = jnp.einsum("btsa,a->bts", e, p["attn_wv"][:, 0]) + p["attn_bv"][0, 0]
    attn = jax.nn.softmax(energy, axis=2)
    context = jnp.einsum("bts,bsh->bth", attn, encoder_outputs)
    logits1 = jnp.concatenate([dec_out, context], axis=2) @ p["w1"] + p["b1"][0]
    logits2 = logits1 @ p["w2"] + p["b2"][0]
    p_vocab = jax.nn.softmax(logits2, axis=2)
    p_gen = jax.nn.sigmoid(context @ p["wgh"] + p["bgh"][0, 0]
                           + dec_out @ p["wgs"] + p["bgs"][0, 0]
                           + dec_in @ p["wgx"] + p["bgx"][0, 0])
    return p_vocab * p_gen, attn * (1 - p_gen), p_gen, attn


# ----------------------------------------------------------------------------- #
# Deterministic parameter init (PyTorch-style uniform(-1/sqrt(fan_in), ...))
# ----------------------------------------------------------------------------- #
def init_params(key, emb_size, hidden_size, attention_size, vocab_size):
    def lin(k, fan_in, fan_out):
        k1, k2 = jax.random.split(k)
        bound = 1.0 / jnp.sqrt(fan_in)
        w = jax.random.uniform(k1, (fan_in, fan_out), jnp.float32, -bound, bound)
        b = jax.random.uniform(k2, (1, fan_out), jnp.float32, -bound, bound)
        return w, b

    keys = jax.random.split(key, 12)
    p = {}
    p["attn_wh"], p["attn_bh"] = lin(keys[0], hidden_size, attention_size)
    p["attn_ws"], p["attn_bs"] = lin(keys[1], hidden_size, attention_size)
    p["attn_wv"], p["attn_bv"] = lin(keys[2], attention_size, 1)
    # LSTM (gate order i,f,g,o along the 4H axis, PyTorch convention)
    bound = 1.0 / jnp.sqrt(hidden_size)
    p["lstm_wih"] = jax.random.uniform(keys[3], (emb_size, 4 * hidden_size),
                                       jnp.float32, -bound, bound)
    p["lstm_whh"] = jax.random.uniform(keys[4], (hidden_size, 4 * hidden_size),
                                       jnp.float32, -bound, bound)
    b_ih = jax.random.uniform(keys[5], (4 * hidden_size,), jnp.float32, -bound, bound)
    b_hh = jax.random.uniform(keys[6], (4 * hidden_size,), jnp.float32, -bound, bound)
    p["lstm_b"] = (b_ih + b_hh).reshape(1, 4 * hidden_size)
    # output stack
    p["w1"], p["b1"] = lin(keys[7], 2 * hidden_size, vocab_size)
    p["w2"], p["b2"] = lin(keys[8], vocab_size, vocab_size)
    # gate projections
    p["wgh"], p["bgh"] = lin(keys[9], hidden_size, 1)
    p["wgs"], p["bgs"] = lin(keys[10], hidden_size, 1)
    p["wgx"], p["bgx"] = lin(keys[11], emb_size, 1)
    return p


if __name__ == "__main__":
    # config
    B, T, S = 2, 8, 8
    EMB, HID, ATTN, VOCAB = 16, 32, 16, 32

    key = jax.random.PRNGKey(0)
    k_params, k_in, k_enc, k_h, k_c = jax.random.split(key, 5)

    params = init_params(k_params, EMB, HID, ATTN, VOCAB)

    decoder_inputs = jax.random.normal(k_in, (B, T, EMB), jnp.float32)
    tgt_lengths = jnp.array([T, T - 2], dtype=jnp.int32)   # max == T (assumed)
    encoder_outputs = jax.random.normal(k_enc, (B, S, HID), jnp.float32)
    decoder_hidden = jax.random.normal(k_h, (1, B, HID), jnp.float32)
    decoder_control = jax.random.normal(k_c, (1, B, HID), jnp.float32)

    fwd = jax.jit(decoder_forward, static_argnames=("mxu_dtype", "t_tile"))

    p_vocab, p_copy, p_gen, attn_map = fwd(
        decoder_inputs, tgt_lengths, encoder_outputs,
        decoder_hidden, decoder_control, params)
    jax.block_until_ready((p_vocab, p_copy, p_gen, attn_map))

    # correctness check against a pure-JAX reference (f32 path)
    rv, rc, rg, ra = reference_forward(decoder_inputs, tgt_lengths, encoder_outputs,
                                       decoder_hidden, decoder_control, params)
    assert jnp.allclose(p_vocab, rv, atol=2e-3, rtol=1e-2)
    assert jnp.allclose(p_copy, rc, atol=2e-3, rtol=1e-2)
    assert jnp.allclose(p_gen, rg, atol=2e-3, rtol=1e-2)
    assert jnp.allclose(attn_map, ra, atol=2e-3, rtol=1e-2)

    assert p_vocab.shape == (B, T, VOCAB)
    assert p_copy.shape == (B, T, S)
    assert p_gen.shape == (B, T, 1)
    assert attn_map.shape == (B, T, S)

    # bf16 MXU-operand path (production setting on v6e/v7x); f32 accumulation,
    # f32 LSTM carry -> only the head matmuls change precision (loose check).
    pv16, pc16, pg16, am16 = fwd(
        decoder_inputs, tgt_lengths, encoder_outputs,
        decoder_hidden, decoder_control, params, mxu_dtype=jnp.bfloat16)
    jax.block_until_ready((pv16, pc16, pg16, am16))
    assert jnp.allclose(pv16, rv, atol=5e-2, rtol=5e-2)
    assert jnp.allclose(am16, ra, atol=5e-2, rtol=5e-2)

    print("KERNEL_OK")
</pallas_src>

<mosaic_0001>
module attributes {stable_mosaic.version = 11 : i64} {
  func.func @_decoder_kernel(%arg0: i32, %arg1: i32, %arg2: memref<1x8x128xf32, #tpu.memory_space<vmem>>, %arg3: memref<32x128xf32, #tpu.memory_space<vmem>>, %arg4: memref<1x1x32xf32, #tpu.memory_space<vmem>>, %arg5: memref<1x1x32xf32, #tpu.memory_space<vmem>>, %arg6: memref<1x8x1xf32, #tpu.memory_space<vmem>>, %arg7: memref<1x8x1xf32, #tpu.memory_space<vmem>>, %arg8: memref<1x8x32xf32, #tpu.memory_space<vmem>>, %arg9: memref<1x16x8xf32, #tpu.memory_space<vmem>>, %arg10: memref<32x16xf32, #tpu.memory_space<vmem>>, %arg11: memref<1x16xf32, #tpu.memory_space<vmem>>, %arg12: memref<1x16xf32, #tpu.memory_space<vmem>>, %arg13: memref<1x1xf32, #tpu.memory_space<vmem>>, %arg14: memref<32x33xf32, #tpu.memory_space<vmem>>, %arg15: memref<32x33xf32, #tpu.memory_space<vmem>>, %arg16: memref<1x33xf32, #tpu.memory_space<vmem>>, %arg17: memref<32x32xf32, #tpu.memory_space<vmem>>, %arg18: memref<1x32xf32, #tpu.memory_space<vmem>>, %arg19: memref<1x8x32xf32, #tpu.memory_space<vmem>>, %arg20: memref<1x8x8xf32, #tpu.memory_space<vmem>>, %arg21: memref<1x8x1xf32, #tpu.memory_space<vmem>>, %arg22: memref<1x8x8xf32, #tpu.memory_space<vmem>>, %arg23: memref<1x32xf32, #tpu.memory_space<vmem>>, %arg24: memref<1x32xf32, #tpu.memory_space<vmem>>, %arg25: memref<8x32xf32, #tpu.memory_space<vmem>>) attributes {dimension_semantics = [#tpu.dimension_semantics<parallel>, #tpu.dimension_semantics<arbitrary>], iteration_bounds = array<i64: 2, 1>, scalar_prefetch = 0 : i64, scratch_operands = 3 : i64, tpu.core_type = #tpu.core_type<tc>, window_params = [{transform_indices = @transform_0, window_bounds = array<i64: 1, 8, 128>}, {pipeline_mode = #tpu.pipeline_mode<synchronous>, transform_indices = @transform_1, window_bounds = array<i64: 32, 128>}, {transform_indices = @transform_2, window_bounds = array<i64: 1, 1, 32>}, {transform_indices = @transform_3, window_bounds = array<i64: 1, 1, 32>}, {transform_indices = @transform_4, window_bounds = array<i64: 1, 8, 1>}, {transform_indices = @transform_5, window_bounds = array<i64: 1, 8, 1>}, {transform_indices = @transform_6, window_bounds = array<i64: 1, 8, 32>}, {transform_indices = @transform_7, window_bounds = array<i64: 1, 16, 8>}, {pipeline_mode = #tpu.pipeline_mode<synchronous>, transform_indices = @transform_8, window_bounds = array<i64: 32, 16>}, {pipeline_mode = #tpu.pipeline_mode<synchronous>, transform_indices = @transform_9, window_bounds = array<i64: 1, 16>}, {pipeline_mode = #tpu.pipeline_mode<synchronous>, transform_indices = @transform_10, window_bounds = array<i64: 1, 16>}, {pipeline_mode = #tpu.pipeline_mode<synchronous>, transform_indices = @transform_11, window_bounds = array<i64: 1, 1>}, {pipeline_mode = #tpu.pipeline_mode<synchronous>, transform_indices = @transform_12, window_bounds = array<i64: 32, 33>}, {pipeline_mode = #tpu.pipeline_mode<synchronous>, transform_indices = @transform_13, window_bounds = array<i64: 32, 33>}, {pipeline_mode = #tpu.pipeline_mode<synchronous>, transform_indices = @transform_14, window_bounds = array<i64: 1, 33>}, {pipeline_mode = #tpu.pipeline_mode<synchronous>, transform_indices = @transform_15, window_bounds = array<i64: 32, 32>}, {pipeline_mode = #tpu.pipeline_mode<synchronous>, transform_indices = @transform_16, window_bounds = array<i64: 1, 32>}, {transform_indices = @transform_17, window_bounds = array<i64: 1, 8, 32>}, {transform_indices = @transform_18, window_bounds = array<i64: 1, 8, 8>}, {transform_indices = @transform_19, window_bounds = array<i64: 1, 8, 1>}, {transform_indices = @transform_20, window_bounds = array<i64: 1, 8, 8>}]} {
    %c0_i32 = arith.constant 0 : i32
    %0 = arith.cmpi eq, %arg1, %c0_i32 : i32
    %1 = arith.extui %0 : i1 to i32
    %c0_i32_0 = arith.constant 0 : i32
    %2 = arith.cmpi ne, %1, %c0_i32_0 : i32
    scf.if %2 {
      %c0_130 = arith.constant 0 : index
      %c0_131 = arith.constant 0 : index
      %c0_132 = arith.constant 0 : index
      %339 = vector.load %arg4[%c0_130, %c0_131, %c0_132] : memref<1x1x32xf32, #tpu.memory_space<vmem>>, vector<1x1x32xf32>
      %340 = vector.shape_cast %339 : vector<1x1x32xf32> to vector<1x32xf32>
      %c0_133 = arith.constant 0 : index
      %c0_134 = arith.constant 0 : index
      %341 = vector.load %arg23[%c0_133, %c0_134] : memref<1x32xf32, #tpu.memory_space<vmem>>, vector<1x32xf32>
      tpu.vector_store %arg23[%c0_133, %c0_134], %340 {strides = array<i32>} : memref<1x32xf32, #tpu.memory_space<vmem>>, vector<1x32xf32>,
      %c0_135 = arith.constant 0 : index
      %c0_136 = arith.constant 0 : index
      %c0_137 = arith.constant 0 : index
      %342 = vector.load %arg5[%c0_135, %c0_136, %c0_137] : memref<1x1x32xf32, #tpu.memory_space<vmem>>, vector<1x1x32xf32>
      %343 = vector.shape_cast %342 : vector<1x1x32xf32> to vector<1x32xf32>
      %c0_138 = arith.constant 0 : index
      %c0_139 = arith.constant 0 : index
      %344 = vector.load %arg24[%c0_138, %c0_139] : memref<1x32xf32, #tpu.memory_space<vmem>>, vector<1x32xf32>
      tpu.vector_store %arg24[%c0_138, %c0_139], %343 {strides = array<i32>} : memref<1x32xf32, #tpu.memory_space<vmem>>, vector<1x32xf32>,
    } else {
    }
    %c0 = arith.constant 0 : index
    %c0_1 = arith.constant 0 : index
    %3 = vector.load %arg23[%c0, %c0_1] : memref<1x32xf32, #tpu.memory_space<vmem>>, vector<1x32xf32>
    %c0_2 = arith.constant 0 : index
    %c0_3 = arith.constant 0 : index
    %4 = vector.load %arg24[%c0_2, %c0_3] : memref<1x32xf32, #tpu.memory_space<vmem>>, vector<1x32xf32>
    %c0_4 = arith.constant 0 : index
    %c0_5 = arith.constant 0 : index
    %5 = vector.load %arg3[%c0_4, %c0_5] : memref<32x128xf32, #tpu.memory_space<vmem>>, vector<32x128xf32>
    %c0_6 = arith.constant 0 : index
    %c0_7 = arith.constant 0 : index
    %c0_8 = arith.constant 0 : index
    %6 = vector.load %arg2[%c0_6, %c0_7, %c0_8] : memref<1x8x128xf32, #tpu.memory_space<vmem>>, vector<1x1x128xf32>
    %7 = vector.shape_cast %6 : vector<1x1x128xf32> to vector<1x128xf32>
    %cst = arith.constant dense<0.000000e+00> : vector<1x128xf32>
    %8 = tpu.matmul %3, %5, %cst {dimension_numbers = #tpu.dot_dimension_numbers<[1], [0], [0], [1], [0, 0, 1, 1], [], []>} : vector<1x32xf32>, vector<32x128xf32>, vector<1x128xf32> -> vector<1x128xf32>
    %9 = arith.addf %7, %8 : vector<1x128xf32>
    %10 = vector.extract_strided_slice %9 {offsets = [0, 0], sizes = [1, 32], strides = [1, 1]} : vector<1x128xf32> to vector<1x32xf32>
    %11 = arith.negf %10 : vector<1x32xf32>
    %12 = math.exp %11 : vector<1x32xf32>
    %cst_9 = arith.constant 1.000000e+00 : f32
    %13 = vector.broadcast %cst_9 : f32 to vector<1x32xf32>
    %14 = arith.addf %13, %12 : vector<1x32xf32>
    %15 = arith.divf %13, %14 : vector<1x32xf32>
    %16 = vector.extract_strided_slice %9 {offsets = [0, 32], sizes = [1, 32], strides = [1, 1]} : vector<1x128xf32> to vector<1x32xf32>
    %17 = arith.negf %16 : vector<1x32xf32>
    %18 = math.exp %17 : vector<1x32xf32>
    %cst_10 = arith.constant 1.000000e+00 : f32
    %19 = vector.broadcast %cst_10 : f32 to vector<1x32xf32>
    %20 = arith.addf %19, %18 : vector<1x32xf32>
    %21 = arith.divf %19, %20 : vector<1x32xf32>
    %22 = vector.extract_strided_slice %9 {offsets = [0, 64], sizes = [1, 32], strides = [1, 1]} : vector<1x128xf32> to vector<1x32xf32>
    %23 = math.tanh %22 : vector<1x32xf32>
    %24 = vector.extract_strided_slice %9 {offsets = [0, 96], sizes = [1, 32], strides = [1, 1]} : vector<1x128xf32> to vector<1x32xf32>
    %25 = arith.negf %24 : vector<1x32xf32>
    %26 = math.exp %25 : vector<1x32xf32>
    %cst_11 = arith.constant 1.000000e+00 : f32
    %27 = vector.broadcast %cst_11 : f32 to vector<1x32xf32>
    %28 = arith.addf %27, %26 : vector<1x32xf32>
    %29 = arith.divf %27, %28 : vector<1x32xf32>
    %30 = arith.mulf %21, %4 : vector<1x32xf32>
    %31 = arith.mulf %15, %23 : vector<1x32xf32>
    %32 = arith.addf %30, %31 : vector<1x32xf32>
    %33 = math.tanh %32 : vector<1x32xf32>
    %34 = arith.mulf %29, %33 : vector<1x32xf32>
    %c0_12 = arith.constant 0 : index
    %c0_13 = arith.constant 0 : index
    %35 = vector.load %arg25[%c0_12, %c0_13] : memref<8x32xf32, #tpu.memory_space<vmem>>, vector<1x32xf32>
    tpu.vector_store %arg25[%c0_12, %c0_13], %34 {strides = array<i32>} : memref<8x32xf32, #tpu.memory_space<vmem>>, vector<1x32xf32>,
    %c0_14 = arith.constant 0 : index
    %c1 = arith.constant 1 : index
    %c0_15 = arith.constant 0 : index
    %36 = vector.load %arg2[%c0_14, %c1, %c0_15] : memref<1x8x128xf32, #tpu.memory_space<vmem>>, vector<1x1x128xf32>
    %37 = vector.shape_cast %36 : vector<1x1x128xf32> to vector<1x128xf32>
    %cst_16 = arith.constant dense<0.000000e+00> : vector<1x128xf32>
    %38 = tpu.matmul %34, %5, %cst_16 {dimension_numbers = #tpu.dot_dimension_numbers<[1], [0], [0], [1], [0, 0, 1, 1], [], []>} : vector<1x32xf32>, vector<32x128xf32>, vector<1x128xf32> -> vector<1x128xf32>
    %39 = arith.addf %37, %38 : vector<1x128xf32>
    %40 = vector.extract_strided_slice %39 {offsets = [0, 0], sizes = [1, 32], strides = [1, 1]} : vector<1x128xf32> to vector<1x32xf32>
    %41 = arith.negf %40 : vector<1x32xf32>
    %42 = math.exp %41 : vector<1x32xf32>
    %cst_17 = arith.constant 1.000000e+00 : f32
    %43 = vector.broadcast %cst_17 : f32 to vector<1x32xf32>
    %44 = arith.addf %43, %42 : vector<1x32xf32>
    %45 = arith.divf %43, %44 : vector<1x32xf32>
    %46 = vector.extract_strided_slice %39 {offsets = [0, 32], sizes = [1, 32], strides = [1, 1]} : vector<1x128xf32> to vector<1x32xf32>
    %47 = arith.negf %46 : vector<1x32xf32>
    %48 = math.exp %47 : vector<1x32xf32>
    %cst_18 = arith.constant 1.000000e+00 : f32
    %49 = vector.broadcast %cst_18 : f32 to vector<1x32xf32>
    %50 = arith.addf %49, %48 : vector<1x32xf32>
    %51 = arith.divf %49, %50 : vector<1x32xf32>
    %52 = vector.extract_strided_slice %39 {offsets = [0, 64], sizes = [1, 32], strides = [1, 1]} : vector<1x128xf32> to vector<1x32xf32>
    %53 = math.tanh %52 : vector<1x32xf32>
    %54 = vector.extract_strided_slice %39 {offsets = [0, 96], sizes = [1, 32], strides = [1, 1]} : vector<1x128xf32> to vector<1x32xf32>
    %55 = arith.negf %54 : vector<1x32xf32>
    %56 = math.exp %55 : vector<1x32xf32>
    %cst_19 = arith.constant 1.000000e+00 : f32
    %57 = vector.broadcast %cst_19 : f32 to vector<1x32xf32>
    %58 = arith.addf %57, %56 : vector<1x32xf32>
    %59 = arith.divf %57, %58 : vector<1x32xf32>
    %60 = arith.mulf %51, %32 : vector<1x32xf32>
    %61 = arith.mulf %45, %53 : vector<1x32xf32>
    %62 = arith.addf %60, %61 : vector<1x32xf32>
    %63 = math.tanh %62 : vector<1x32xf32>
    %64 = arith.mulf %59, %63 : vector<1x32xf32>
    %c1_20 = arith.constant 1 : index
    %c0_21 = arith.constant 0 : index
    %65 = vector.load %arg25[%c1_20, %c0_21] : memref<8x32xf32, #tpu.memory_space<vmem>>, vector<1x32xf32>
    tpu.vector_store %arg25[%c1_20, %c0_21], %64 {strides = array<i32>} : memref<8x32xf32, #tpu.memory_space<vmem>>, vector<1x32xf32>,
    %c0_22 = arith.constant 0 : index
    %c2 = arith.constant 2 : index
    %c0_23 = arith.constant 0 : index
    %66 = vector.load %arg2[%c0_22, %c2, %c0_23] : memref<1x8x128xf32, #tpu.memory_space<vmem>>, vector<1x1x128xf32>
    %67 = vector.shape_cast %66 : vector<1x1x128xf32> to vector<1x128xf32>
    %cst_24 = arith.constant dense<0.000000e+00> : vector<1x128xf32>
    %68 = tpu.matmul %64, %5, %cst_24 {dimension_numbers = #tpu.dot_dimension_numbers<[1], [0], [0], [1], [0, 0, 1, 1], [], []>} : vector<1x32xf32>, vector<32x128xf32>, vector<1x128xf32> -> vector<1x128xf32>
    %69 = arith.addf %67, %68 : vector<1x128xf32>
    %70 = vector.extract_strided_slice %69 {offsets = [0, 0], sizes = [1, 32], strides = [1, 1]} : vector<1x128xf32> to vector<1x32xf32>
    %71 = arith.negf %70 : vector<1x32xf32>
    %72 = math.exp %71 : vector<1x32xf32>
    %cst_25 = arith.constant 1.000000e+00 : f32
    %73 = vector.broadcast %cst_25 : f32 to vector<1x32xf32>
    %74 = arith.addf %73, %72 : vector<1x32xf32>
    %75 = arith.divf %73, %74 : vector<1x32xf32>
    %76 = vector.extract_strided_slice %69 {offsets = [0, 32], sizes = [1, 32], strides = [1, 1]} : vector<1x128xf32> to vector<1x32xf32>
    %77 = arith.negf %76 : vector<1x32xf32>
    %78 = math.exp %77 : vector<1x32xf32>
    %cst_26 = arith.constant 1.000000e+00 : f32
    %79 = vector.broadcast %cst_26 : f32 to vector<1x32xf32>
    %80 = arith.addf %79, %78 : vector<1x32xf32>
    %81 = arith.divf %79, %80 : vector<1x32xf32>
    %82 = vector.extract_strided_slice %69 {offsets = [0, 64], sizes = [1, 32], strides = [1, 1]} : vector<1x128xf32> to vector<1x32xf32>
    %83 = math.tanh %82 : vector<1x32xf32>
    %84 = vector.extract_strided_slice %69 {offsets = [0, 96], sizes = [1, 32], strides = [1, 1]} : vector<1x128xf32> to vector<1x32xf32>
    %85 = arith.negf %84 : vector<1x32xf32>
    %86 = math.exp %85 : vector<1x32xf32>
    %cst_27 = arith.constant 1.000000e+00 : f32
    %87 = vector.broadcast %cst_27 : f32 to vector<1x32xf32>
    %88 = arith.addf %87, %86 : vector<1x32xf32>
    %89 = arith.divf %87, %88 : vector<1x32xf32>
    %90 = arith.mulf %81, %62 : vector<1x32xf32>
    %91 = arith.mulf %75, %83 : vector<1x32xf32>
    %92 = arith.addf %90, %91 : vector<1x32xf32>
    %93 = math.tanh %92 : vector<1x32xf32>
    %94 = arith.mulf %89, %93 : vector<1x32xf32>
    %c2_28 = arith.constant 2 : index
    %c0_29 = arith.constant 0 : index
    %95 = vector.load %arg25[%c2_28, %c0_29] : memref<8x32xf32, #tpu.memory_space<vmem>>, vector<1x32xf32>
    tpu.vector_store %arg25[%c2_28, %c0_29], %94 {strides = array<i32>} : memref<8x32xf32, #tpu.memory_space<vmem>>, vector<1x32xf32>,
    %c0_30 = arith.constant 0 : index
    %c3 = arith.constant 3 : index
    %c0_31 = arith.constant 0 : index
    %96 = vector.load %arg2[%c0_30, %c3, %c0_31] : memref<1x8x128xf32, #tpu.memory_space<vmem>>, vector<1x1x128xf32>
    %97 = vector.shape_cast %96 : vector<1x1x128xf32> to vector<1x128xf32>
    %cst_32 = arith.constant dense<0.000000e+00> : vector<1x128xf32>
    %98 = tpu.matmul %94, %5, %cst_32 {dimension_numbers = #tpu.dot_dimension_numbers<[1], [0], [0], [1], [0, 0, 1, 1], [], []>} : vector<1x32xf32>, vector<32x128xf32>, vector<1x128xf32> -> vector<1x128xf32>
    %99 = arith.addf %97, %98 : vector<1x128xf32>
    %100 = vector.extract_strided_slice %99 {offsets = [0, 0], sizes = [1, 32], strides = [1, 1]} : vector<1x128xf32> to vector<1x32xf32>
    %101 = arith.negf %100 : vector<1x32xf32>
    %102 = math.exp %101 : vector<1x32xf32>
    %cst_33 = arith.constant 1.000000e+00 : f32
    %103 = vector.broadcast %cst_33 : f32 to vector<1x32xf32>
    %104 = arith.addf %103, %102 : vector<1x32xf32>
    %105 = arith.divf %103, %104 : vector<1x32xf32>
    %106 = vector.extract_strided_slice %99 {offsets = [0, 32], sizes = [1, 32], strides = [1, 1]} : vector<1x128xf32> to vector<1x32xf32>
    %107 = arith.negf %106 : vector<1x32xf32>
    %108 = math.exp %107 : vector<1x32xf32>
    %cst_34 = arith.constant 1.000000e+00 : f32
    %109 = vector.broadcast %cst_34 : f32 to vector<1x32xf32>
    %110 = arith.addf %109, %108 : vector<1x32xf32>
    %111 = arith.divf %109, %110 : vector<1x32xf32>
    %112 = vector.extract_strided_slice %99 {offsets = [0, 64], sizes = [1, 32], strides = [1, 1]} : vector<1x128xf32> to vector<1x32xf32>
    %113 = math.tanh %112 : vector<1x32xf32>
    %114 = vector.extract_strided_slice %99 {offsets = [0, 96], sizes = [1, 32], strides = [1, 1]} : vector<1x128xf32> to vector<1x32xf32>
    %115 = arith.negf %114 : vector<1x32xf32>
    %116 = math.exp %115 : vector<1x32xf32>
    %cst_35 = arith.constant 1.000000e+00 : f32
    %117 = vector.broadcast %cst_35 : f32 to vector<1x32xf32>
    %118 = arith.addf %117, %116 : vector<1x32xf32>
    %119 = arith.divf %117, %118 : vector<1x32xf32>
    %120 = arith.mulf %111, %92 : vector<1x32xf32>
    %121 = arith.mulf %105, %113 : vector<1x32xf32>
    %122 = arith.addf %120, %121 : vector<1x32xf32>
    %123 = math.tanh %122 : vector<1x32xf32>
    %124 = arith.mulf %119, %123 : vector<1x32xf32>
    %c3_36 = arith.constant 3 : index
    %c0_37 = arith.constant 0 : index
    %125 = vector.load %arg25[%c3_36, %c0_37] : memref<8x32xf32, #tpu.memory_space<vmem>>, vector<1x32xf32>
    tpu.vector_store %arg25[%c3_36, %c0_37], %124 {strides = array<i32>} : memref<8x32xf32, #tpu.memory_space<vmem>>, vector<1x32xf32>,
    %c0_38 = arith.constant 0 : index
    %c4 = arith.constant 4 : index
    %c0_39 = arith.constant 0 : index
    %126 = vector.load %arg2[%c0_38, %c4, %c0_39] : memref<1x8x128xf32, #tpu.memory_space<vmem>>, vector<1x1x128xf32>
    %127 = vector.shape_cast %126 : vector<1x1x128xf32> to vector<1x128xf32>
    %cst_40 = arith.constant dense<0.000000e+00> : vector<1x128xf32>
    %128 = tpu.matmul %124, %5, %cst_40 {dimension_numbers = #tpu.dot_dimension_numbers<[1], [0], [0], [1], [0, 0, 1, 1], [], []>} : vector<1x32xf32>, vector<32x128xf32>, vector<1x128xf32> -> vector<1x128xf32>
    %129 = arith.addf %127, %128 : vector<1x128xf32>
    %130 = vector.extract_strided_slice %129 {offsets = [0, 0], sizes = [1, 32], strides = [1, 1]} : vector<1x128xf32> to vector<1x32xf32>
    %131 = arith.negf %130 : vector<1x32xf32>
    %132 = math.exp %131 : vector<1x32xf32>
    %cst_41 = arith.constant 1.000000e+00 : f32
    %133 = vector.broadcast %cst_41 : f32 to vector<1x32xf32>
    %134 = arith.addf %133, %132 : vector<1x32xf32>
    %135 = arith.divf %133, %134 : vector<1x32xf32>
    %136 = vector.extract_strided_slice %129 {offsets = [0, 32], sizes = [1, 32], strides = [1, 1]} : vector<1x128xf32> to vector<1x32xf32>
    %137 = arith.negf %136 : vector<1x32xf32>
    %138 = math.exp %137 : vector<1x32xf32>
    %cst_42 = arith.constant 1.000000e+00 : f32
    %139 = vector.broadcast %cst_42 : f32 to vector<1x32xf32>
    %140 = arith.addf %139, %138 : vector<1x32xf32>
    %141 = arith.divf %139, %140 : vector<1x32xf32>
    %142 = vector.extract_strided_slice %129 {offsets = [0, 64], sizes = [1, 32], strides = [1, 1]} : vector<1x128xf32> to vector<1x32xf32>
    %143 = math.tanh %142 : vector<1x32xf32>
    %144 = vector.extract_strided_slice %129 {offsets = [0, 96], sizes = [1, 32], strides = [1, 1]} : vector<1x128xf32> to vector<1x32xf32>
    %145 = arith.negf %144 : vector<1x32xf32>
    %146 = math.exp %145 : vector<1x32xf32>
    %cst_43 = arith.constant 1.000000e+00 : f32
    %147 = vector.broadcast %cst_43 : f32 to vector<1x32xf32>
    %148 = arith.addf %147, %146 : vector<1x32xf32>
    %149 = arith.divf %147, %148 : vector<1x32xf32>
    %150 = arith.mulf %141, %122 : vector<1x32xf32>
    %151 = arith.mulf %135, %143 : vector<1x32xf32>
    %152 = arith.addf %150, %151 : vector<1x32xf32>
    %153 = math.tanh %152 : vector<1x32xf32>
    %154 = arith.mulf %149, %153 : vector<1x32xf32>
    %c4_44 = arith.constant 4 : index
    %c0_45 = arith.constant 0 : index
    %155 = vector.load %arg25[%c4_44, %c0_45] : memref<8x32xf32, #tpu.memory_space<vmem>>, vector<1x32xf32>
    tpu.vector_store %arg25[%c4_44, %c0_45], %154 {strides = array<i32>} : memref<8x32xf32, #tpu.memory_space<vmem>>, vector<1x32xf32>,
    %c0_46 = arith.constant 0 : index
    %c5 = arith.constant 5 : index
    %c0_47 = arith.constant 0 : index
    %156 = vector.load %arg2[%c0_46, %c5, %c0_47] : memref<1x8x128xf32, #tpu.memory_space<vmem>>, vector<1x1x128xf32>
    %157 = vector.shape_cast %156 : vector<1x1x128xf32> to vector<1x128xf32>
    %cst_48 = arith.constant dense<0.000000e+00> : vector<1x128xf32>
    %158 = tpu.matmul %154, %5, %cst_48 {dimension_numbers = #tpu.dot_dimension_numbers<[1], [0], [0], [1], [0, 0, 1, 1], [], []>} : vector<1x32xf32>, vector<32x128xf32>, vector<1x128xf32> -> vector<1x128xf32>
    %159 = arith.addf %157, %158 : vector<1x128xf32>
    %160 = vector.extract_strided_slice %159 {offsets = [0, 0], sizes = [1, 32], strides = [1, 1]} : vector<1x128xf32> to vector<1x32xf32>
    %161 = arith.negf %160 : vector<1x32xf32>
    %162 = math.exp %161 : vector<1x32xf32>
    %cst_49 = arith.constant 1.000000e+00 : f32
    %163 = vector.broadcast %cst_49 : f32 to vector<1x32xf32>
    %164 = arith.addf %163, %162 : vector<1x32xf32>
    %165 = arith.divf %163, %164 : vector<1x32xf32>
    %166 = vector.extract_strided_slice %159 {offsets = [0, 32], sizes = [1, 32], strides = [1, 1]} : vector<1x128xf32> to vector<1x32xf32>
    %167 = arith.negf %166 : vector<1x32xf32>
    %168 = math.exp %167 : vector<1x32xf32>
    %cst_50 = arith.constant 1.000000e+00 : f32
    %169 = vector.broadcast %cst_50 : f32 to vector<1x32xf32>
    %170 = arith.addf %169, %168 : vector<1x32xf32>
    %171 = arith.divf %169, %170 : vector<1x32xf32>
    %172 = vector.extract_strided_slice %159 {offsets = [0, 64], sizes = [1, 32], strides = [1, 1]} : vector<1x128xf32> to vector<1x32xf32>
    %173 = math.tanh %172 : vector<1x32xf32>
    %174 = vector.extract_strided_slice %159 {offsets = [0, 96], sizes = [1, 32], strides = [1, 1]} : vector<1x128xf32> to vector<1x32xf32>
    %175 = arith.negf %174 : vector<1x32xf32>
    %176 = math.exp %175 : vector<1x32xf32>
    %cst_51 = arith.constant 1.000000e+00 : f32
    %177 = vector.broadcast %cst_51 : f32 to vector<1x32xf32>
    %178 = arith.addf %177, %176 : vector<1x32xf32>
    %179 = arith.divf %177, %178 : vector<1x32xf32>
    %180 = arith.mulf %171, %152 : vector<1x32xf32>
    %181 = arith.mulf %165, %173 : vector<1x32xf32>
    %182 = arith.addf %180, %181 : vector<1x32xf32>
    %183 = math.tanh %182 : vector<1x32xf32>
    %184 = arith.mulf %179, %183 : vector<1x32xf32>
    %c5_52 = arith.constant 5 : index
    %c0_53 = arith.constant 0 : index
    %185 = vector.load %arg25[%c5_52, %c0_53] : memref<8x32xf32, #tpu.memory_space<vmem>>, vector<1x32xf32>
    tpu.vector_store %arg25[%c5_52, %c0_53], %184 {strides = array<i32>} : memref<8x32xf32, #tpu.memory_space<vmem>>, vector<1x32xf32>,
    %c0_54 = arith.constant 0 : index
    %c6 = arith.constant 6 : index
    %c0_55 = arith.constant 0 : index
    %186 = vector.load %arg2[%c0_54, %c6, %c0_55] : memref<1x8x128xf32, #tpu.memory_space<vmem>>, vector<1x1x128xf32>
    %187 = vector.shape_cast %186 : vector<1x1x128xf32> to vector<1x128xf32>
    %cst_56 = arith.constant dense<0.000000e+00> : vector<1x128xf32>
    %188 = tpu.matmul %184, %5, %cst_56 {dimension_numbers = #tpu.dot_dimension_numbers<[1], [0], [0], [1], [0, 0, 1, 1], [], []>} : vector<1x32xf32>, vector<32x128xf32>, vector<1x128xf32> -> vector<1x128xf32>
    %189 = arith.addf %187, %188 : vector<1x128xf32>
    %190 = vector.extract_strided_slice %189 {offsets = [0, 0], sizes = [1, 32], strides = [1, 1]} : vector<1x128xf32> to vector<1x32xf32>
    %191 = arith.negf %190 : vector<1x32xf32>
    %192 = math.exp %191 : vector<1x32xf32>
    %cst_57 = arith.constant 1.000000e+00 : f32
    %193 = vector.broadcast %cst_57 : f32 to vector<1x32xf32>
    %194 = arith.addf %193, %192 : vector<1x32xf32>
    %195 = arith.divf %193, %194 : vector<1x32xf32>
    %196 = vector.extract_strided_slice %189 {offsets = [0, 32], sizes = [1, 32], strides = [1, 1]} : vector<1x128xf32> to vector<1x32xf32>
    %197 = arith.negf %196 : vector<1x32xf32>
    %198 = math.exp %197 : vector<1x32xf32>
    %cst_58 = arith.constant 1.000000e+00 : f32
    %199 = vector.broadcast %cst_58 : f32 to vector<1x32xf32>
    %200 = arith.addf %199, %198 : vector<1x32xf32>
    %201 = arith.divf %199, %200 : vector<1x32xf32>
    %202 = vector.extract_strided_slice %189 {offsets = [0, 64], sizes = [1, 32], strides = [1, 1]} : vector<1x128xf32> to vector<1x32xf32>
    %203 = math.tanh %202 : vector<1x32xf32>
    %204 = vector.extract_strided_slice %189 {offsets = [0, 96], sizes = [1, 32], strides = [1, 1]} : vector<1x128xf32> to vector<1x32xf32>
    %205 = arith.negf %204 : vector<1x32xf32>
    %206 = math.exp %205 : vector<1x32xf32>
    %cst_59 = arith.constant 1.000000e+00 : f32
    %207 = vector.broadcast %cst_59 : f32 to vector<1x32xf32>
    %208 = arith.addf %207, %206 : vector<1x32xf32>
    %209 = arith.divf %207, %208 : vector<1x32xf32>
    %210 = arith.mulf %201, %182 : vector<1x32xf32>
    %211 = arith.mulf %195, %203 : vector<1x32xf32>
    %212 = arith.addf %210, %211 : vector<1x32xf32>
    %213 = math.tanh %212 : vector<1x32xf32>
    %214 = arith.mulf %209, %213 : vector<1x32xf32>
    %c6_60 = arith.constant 6 : index
    %c0_61 = arith.constant 0 : index
    %215 = vector.load %arg25[%c6_60, %c0_61] : memref<8x32xf32, #tpu.memory_space<vmem>>, vector<1x32xf32>
    tpu.vector_store %arg25[%c6_60, %c0_61], %214 {strides = array<i32>} : memref<8x32xf32, #tpu.memory_space<vmem>>, vector<1x32xf32>,
    %c0_62 = arith.constant 0 : index
    %c7 = arith.constant 7 : index
    %c0_63 = arith.constant 0 : index
    %216 = vector.load %arg2[%c0_62, %c7, %c0_63] : memref<1x8x128xf32, #tpu.memory_space<vmem>>, vector<1x1x128xf32>
    %217 = vector.shape_cast %216 : vector<1x1x128xf32> to vector<1x128xf32>
    %cst_64 = arith.constant dense<0.000000e+00> : vector<1x128xf32>
    %218 = tpu.matmul %214, %5, %cst_64 {dimension_numbers = #tpu.dot_dimension_numbers<[1], [0], [0], [1], [0, 0, 1, 1], [], []>} : vector<1x32xf32>, vector<32x128xf32>, vector<1x128xf32> -> vector<1x128xf32>
    %219 = arith.addf %217, %218 : vector<1x128xf32>
    %220 = vector.extract_strided_slice %219 {offsets = [0, 0], sizes = [1, 32], strides = [1, 1]} : vector<1x128xf32> to vector<1x32xf32>
    %221 = arith.negf %220 : vector<1x32xf32>
    %222 = math.exp %221 : vector<1x32xf32>
    %cst_65 = arith.constant 1.000000e+00 : f32
    %223 = vector.broadcast %cst_65 : f32 to vector<1x32xf32>
    %224 = arith.addf %223, %222 : vector<1x32xf32>
    %225 = arith.divf %223, %224 : vector<1x32xf32>
    %226 = vector.extract_strided_slice %219 {offsets = [0, 32], sizes = [1, 32], strides = [1, 1]} : vector<1x128xf32> to vector<1x32xf32>
    %227 = arith.negf %226 : vector<1x32xf32>
    %228 = math.exp %227 : vector<1x32xf32>
    %cst_66 = arith.constant 1.000000e+00 : f32
    %229 = vector.broadcast %cst_66 : f32 to vector<1x32xf32>
    %230 = arith.addf %229, %228 : vector<1x32xf32>
    %231 = arith.divf %229, %230 : vector<1x32xf32>
    %232 = vector.extract_strided_slice %219 {offsets = [0, 64], sizes = [1, 32], strides = [1, 1]} : vector<1x128xf32> to vector<1x32xf32>
    %233 = math.tanh %232 : vector<1x32xf32>
    %234 = vector.extract_strided_slice %219 {offsets = [0, 96], sizes = [1, 32], strides = [1, 1]} : vector<1x128xf32> to vector<1x32xf32>
    %235 = arith.negf %234 : vector<1x32xf32>
    %236 = math.exp %235 : vector<1x32xf32>
    %cst_67 = arith.constant 1.000000e+00 : f32
    %237 = vector.broadcast %cst_67 : f32 to vector<1x32xf32>
    %238 = arith.addf %237, %236 : vector<1x32xf32>
    %239 = arith.divf %237, %238 : vector<1x32xf32>
    %240 = arith.mulf %231, %212 : vector<1x32xf32>
    %241 = arith.mulf %225, %233 : vector<1x32xf32>
    %242 = arith.addf %240, %241 : vector<1x32xf32>
    %243 = math.tanh %242 : vector<1x32xf32>
    %244 = arith.mulf %239, %243 : vector<1x32xf32>
    %c7_68 = arith.constant 7 : index
    %c0_69 = arith.constant 0 : index
    %245 = vector.load %arg25[%c7_68, %c0_69] : memref<8x32xf32, #tpu.memory_space<vmem>>, vector<1x32xf32>
    tpu.vector_store %arg25[%c7_68, %c0_69], %244 {strides = array<i32>} : memref<8x32xf32, #tpu.memory_space<vmem>>, vector<1x32xf32>,
    %c0_70 = arith.constant 0 : index
    %c0_71 = arith.constant 0 : index
    %246 = vector.load %arg23[%c0_70, %c0_71] : memref<1x32xf32, #tpu.memory_space<vmem>>, vector<1x32xf32>
    tpu.vector_store %arg23[%c0_70, %c0_71], %244 {strides = array<i32>} : memref<1x32xf32, #tpu.memory_space<vmem>>, vector<1x32xf32>,
    %c0_72 = arith.constant 0 : index
    %c0_73 = arith.constant 0 : index
    %247 = vector.load %arg24[%c0_72, %c0_73] : memref<1x32xf32, #tpu.memory_space<vmem>>, vector<1x32xf32>
    tpu.vector_store %arg24[%c0_72, %c0_73], %242 {strides = array<i32>} : memref<1x32xf32, #tpu.memory_space<vmem>>, vector<1x32xf32>,
    %c0_74 = arith.constant 0 : index
    %c0_75 = arith.constant 0 : index
    %248 = vector.load %arg25[%c0_74, %c0_75] : memref<8x32xf32, #tpu.memory_space<vmem>>, vector<8x32xf32>
    %c0_76 = arith.constant 0 : index
    %c0_77 = arith.constant 0 : index
    %c0_78 = arith.constant 0 : index
    %249 = vector.load %arg6[%c0_76, %c0_77, %c0_78] : memref<1x8x1xf32, #tpu.memory_space<vmem>>, vector<1x8x1xf32>
    %250 = vector.shape_cast %249 : vector<1x8x1xf32> to vector<8x1xf32>
    %251 = vector.broadcast %250 : vector<8x1xf32> to vector<8x32xf32>
    %252 = arith.mulf %248, %251 : vector<8x32xf32>
    %c0_79 = arith.constant 0 : index
    %c0_80 = arith.constant 0 : index
    %253 = vector.load %arg10[%c0_79, %c0_80] : memref<32x16xf32, #tpu.memory_space<vmem>>, vector<32x16xf32>
    %cst_81 = arith.constant dense<0.000000e+00> : vector<8x16xf32>
    %254 = tpu.matmul %252, %253, %cst_81 {dimension_numbers = #tpu.dot_dimension_numbers<[1], [0], [0], [1], [0, 0, 1, 1], [], []>} : vector<8x32xf32>, vector<32x16xf32>, vector<8x16xf32> -> vector<8x16xf32>
    %c0_82 = arith.constant 0 : index
    %c0_83 = arith.constant 0 : index
    %255 = vector.load %arg11[%c0_82, %c0_83] : memref<1x16xf32, #tpu.memory_space<vmem>>, vector<1x16xf32>
    %256 = vector.broadcast %255 : vector<1x16xf32> to vector<8x16xf32>
    %257 = arith.addf %254, %256 : vector<8x16xf32>
    %258 = vector.shape_cast %257 : vector<8x16xf32> to vector<8x16x1xf32>
    %c0_84 = arith.constant 0 : index
    %c0_85 = arith.constant 0 : index
    %c0_86 = arith.constant 0 : index
    %259 = vector.load %arg9[%c0_84, %c0_85, %c0_86] : memref<1x16x8xf32, #tpu.memory_space<vmem>>, vector<1x16x8xf32>
    %260 = vector.shape_cast %259 : vector<1x16x8xf32> to vector<16x8xf32>
    %261 = vector.shape_cast %260 : vector<16x8xf32> to vector<1x16x8xf32>
    %262 = vector.broadcast %258 : vector<8x16x1xf32> to vector<8x16x8xf32>
    %263 = vector.broadcast %261 : vector<1x16x8xf32> to vector<8x16x8xf32>
    %264 = arith.addf %262, %263 : vector<8x16x8xf32>
    %265 = math.tanh %264 : vector<8x16x8xf32>
    %c0_87 = arith.constant 0 : index
    %c0_88 = arith.constant 0 : index
    %266 = vector.load %arg12[%c0_87, %c0_88] : memref<1x16xf32, #tpu.memory_space<vmem>>, vector<1x16xf32>
    %267 = vector.shape_cast %266 : vector<1x16xf32> to vector<1x1x16xf32>
    %268 = vector.shape_cast %267 : vector<1x1x16xf32> to vector<1x1x16xf32>
    %269 = vector.broadcast %268 : vector<1x1x16xf32> to vector<8x1x16xf32>
    "tpu.trace_start"() <{level = 10 : i32, message = "tua,tas->tus"}> : () -> ()
    %cst_89 = arith.constant dense<0.000000e+00> : vector<8x1x8xf32>
    %270 = tpu.matmul %269, %265, %cst_89 {dimension_numbers = #tpu.dot_dimension_numbers<[2], [1], [1], [2], [0, 0, 0, 1, 1, 2], [0], [0]>} : vector<8x1x16xf32>, vector<8x16x8xf32>, vector<8x1x8xf32> -> vector<8x1x8xf32>
    "tpu.trace_stop"() : () -> ()
    %271 = vector.shape_cast %270 : vector<8x1x8xf32> to vector<8x8xf32>
    %c0_90 = arith.constant 0 : index
    %c0_91 = arith.constant 0 : index
    %272 = vector.load %arg13[%c0_90, %c0_91] : memref<1x1xf32, #tpu.memory_space<vmem>>, vector<1x1xf32>
    %273 = vector.broadcast %272 : vector<1x1xf32> to vector<8x8xf32>
    %274 = arith.addf %271, %273 : vector<8x8xf32>
    %cst_92 = arith.constant dense<0xFF800000> : vector<8xf32>
    %275 = vector.multi_reduction <maximumf>, %274, %cst_92 [1] : vector<8x8xf32> to vector<8xf32>
    %276 = vector.shape_cast %275 : vector<8xf32> to vector<8x1xf32>
    %277 = vector.broadcast %276 : vector<8x1xf32> to vector<8x8xf32>
    %278 = arith.subf %274, %277 : vector<8x8xf32>
    %279 = math.exp %278 : vector<8x8xf32>
    %cst_93 = arith.constant dense<0.000000e+00> : vector<8xf32>
    %280 = vector.multi_reduction <add>, %279, %cst_93 [1] : vector<8x8xf32> to vector<8xf32>
    %281 = vector.shape_cast %280 : vector<8xf32> to vector<8x1xf32>
    %282 = tpu.reciprocal %281 {approx = true} : vector<8x1xf32> -> vector<8x1xf32>
    %283 = vector.broadcast %282 : vector<8x1xf32> to vector<8x8xf32>
    %284 = arith.mulf %279, %283 : vector<8x8xf32>
    %c0_94 = arith.constant 0 : index
    %c0_95 = arith.constant 0 : index
    %c0_96 = arith.constant 0 : index
    %285 = vector.load %arg8[%c0_94, %c0_95, %c0_96] : memref<1x8x32xf32, #tpu.memory_space<vmem>>, vector<1x8x32xf32>
    %286 = vector.shape_cast %285 : vector<1x8x32xf32> to vector<8x32xf32>
    %cst_97 = arith.constant dense<0.000000e+00> : vector<8x32xf32>
    %287 = tpu.matmul %284, %286, %cst_97 {dimension_numbers = #tpu.dot_dimension_numbers<[1], [0], [0], [1], [0, 0, 1, 1], [], []>} : vector<8x8xf32>, vector<8x32xf32>, vector<8x32xf32> -> vector<8x32xf32>
    %c0_98 = arith.constant 0 : index
    %c0_99 = arith.constant 0 : index
    %288 = vector.load %arg14[%c0_98, %c0_99] : memref<32x33xf32, #tpu.memory_space<vmem>>, vector<32x33xf32>
    %cst_100 = arith.constant dense<0.000000e+00> : vector<8x33xf32>
    %289 = tpu.matmul %252, %288, %cst_100 {dimension_numbers = #tpu.dot_dimension_numbers<[1], [0], [0], [1], [0, 0, 1, 1], [], []>} : vector<8x32xf32>, vector<32x33xf32>, vector<8x33xf32> -> vector<8x33xf32>
    %c0_101 = arith.constant 0 : index
    %c0_102 = arith.constant 0 : index
    %290 = vector.load %arg15[%c0_101, %c0_102] : memref<32x33xf32, #tpu.memory_space<vmem>>, vector<32x33xf32>
    %cst_103 = arith.constant dense<0.000000e+00> : vector<8x33xf32>
    %291 = tpu.matmul %287, %290, %cst_103 {dimension_numbers = #tpu.dot_dimension_numbers<[1], [0], [0], [1], [0, 0, 1, 1], [], []>} : vector<8x32xf32>, vector<32x33xf32>, vector<8x33xf32> -> vector<8x33xf32>
    %292 = arith.addf %289, %291 : vector<8x33xf32>
    %c0_104 = arith.constant 0 : index
    %c0_105 = arith.constant 0 : index
    %293 = vector.load %arg16[%c0_104, %c0_105] : memref<1x33xf32, #tpu.memory_space<vmem>>, vector<1x33xf32>
    %294 = vector.broadcast %293 : vector<1x33xf32> to vector<8x33xf32>
    %295 = arith.addf %292, %294 : vector<8x33xf32>
    %296 = vector.extract_strided_slice %295 {offsets = [0, 0], sizes = [8, 32], strides = [1, 1]} : vector<8x33xf32> to vector<8x32xf32>
    %297 = vector.extract_strided_slice %295 {offsets = [0, 32], sizes = [8, 1], strides = [1, 1]} : vector<8x33xf32> to vector<8x1xf32>
    %c0_106 = arith.constant 0 : index
    %c0_107 = arith.constant 0 : index
    %c0_108 = arith.constant 0 : index
    %298 = vector.load %arg7[%c0_106, %c0_107, %c0_108] : memref<1x8x1xf32, #tpu.memory_space<vmem>>, vector<1x8x1xf32>
    %299 = vector.shape_cast %298 : vector<1x8x1xf32> to vector<8x1xf32>
    %300 = arith.addf %297, %299 : vector<8x1xf32>
    %301 = arith.negf %300 : vector<8x1xf32>
    %302 = math.exp %301 : vector<8x1xf32>
    %cst_109 = arith.constant 1.000000e+00 : f32
    %303 = vector.broadcast %cst_109 : f32 to vector<8x1xf32>
    %304 = arith.addf %303, %302 : vector<8x1xf32>
    %305 = arith.divf %303, %304 : vector<8x1xf32>
    %c0_110 = arith.constant 0 : index
    %c0_111 = arith.constant 0 : index
    %306 = vector.load %arg17[%c0_110, %c0_111] : memref<32x32xf32, #tpu.memory_space<vmem>>, vector<32x32xf32>
    %cst_112 = arith.constant dense<0.000000e+00> : vector<8x32xf32>
    %307 = tpu.matmul %296, %306, %cst_112 {dimension_numbers = #tpu.dot_dimension_numbers<[1], [0], [0], [1], [0, 0, 1, 1], [], []>} : vector<8x32xf32>, vector<32x32xf32>, vector<8x32xf32> -> vector<8x32xf32>
    %c0_113 = arith.constant 0 : index
    %c0_114 = arith.constant 0 : index
    %308 = vector.load %arg18[%c0_113, %c0_114] : memref<1x32xf32, #tpu.memory_space<vmem>>, vector<1x32xf32>
    %309 = vector.broadcast %308 : vector<1x32xf32> to vector<8x32xf32>
    %310 = arith.addf %307, %309 : vector<8x32xf32>
    %cst_115 = arith.constant dense<0xFF800000> : vector<8xf32>
    %311 = vector.multi_reduction <maximumf>, %310, %cst_115 [1] : vector<8x32xf32> to vector<8xf32>
    %312 = vector.shape_cast %311 : vector<8xf32> to vector<8x1xf32>
    %313 = vector.broadcast %312 : vector<8x1xf32> to vector<8x32xf32>
    %314 = arith.subf %310, %313 : vector<8x32xf32>
    %315 = math.exp %314 : vector<8x32xf32>
    %cst_116 = arith.constant dense<0.000000e+00> : vector<8xf32>
    %316 = vector.multi_reduction <add>, %315, %cst_116 [1] : vector<8x32xf32> to vector<8xf32>
    %317 = vector.shape_cast %316 : vector<8xf32> to vector<8x1xf32>
    %318 = tpu.reciprocal %317 {approx = true} : vector<8x1xf32> -> vector<8x1xf32>
    %319 = vector.broadcast %318 : vector<8x1xf32> to vector<8x32xf32>
    %320 = arith.mulf %315, %319 : vector<8x32xf32>
    %321 = vector.broadcast %305 : vector<8x1xf32> to vector<8x32xf32>
    %322 = arith.mulf %320, %321 : vector<8x32xf32>
    %c0_117 = arith.constant 0 : index
    %c0_118 = arith.constant 0 : index
    %c0_119 = arith.constant 0 : index
    %323 = vector.load %arg19[%c0_117, %c0_118, %c0_119] : memref<1x8x32xf32, #tpu.memory_space<vmem>>, vector<1x8x32xf32>
    %324 = vector.shape_cast %323 : vector<1x8x32xf32> to vector<8x32xf32>
    %325 = vector.shape_cast %322 : vector<8x32xf32> to vector<1x8x32xf32>
    tpu.vector_store %arg19[%c0_117, %c0_118, %c0_119], %325 {strides = array<i32>} : memref<1x8x32xf32, #tpu.memory_space<vmem>>, vector<1x8x32xf32>,
    %cst_120 = arith.constant 1.000000e+00 : f32
    %326 = vector.broadcast %cst_120 : f32 to vector<8x1xf32>
    %327 = arith.subf %326, %305 : vector<8x1xf32>
    %328 = vector.broadcast %327 : vector<8x1xf32> to vector<8x8xf32>
    %329 = arith.mulf %284, %328 : vector<8x8xf32>
    %c0_121 = arith.constant 0 : index
    %c0_122 = arith.constant 0 : index
    %c0_123 = arith.constant 0 : index
    %330 = vector.load %arg20[%c0_121, %c0_122, %c0_123] : memref<1x8x8xf32, #tpu.memory_space<vmem>>, vector<1x8x8xf32>
    %331 = vector.shape_cast %330 : vector<1x8x8xf32> to vector<8x8xf32>
    %332 = vector.shape_cast %329 : vector<8x8xf32> to vector<1x8x8xf32>
    tpu.vector_store %arg20[%c0_121, %c0_122, %c0_123], %332 {strides = array<i32>} : memref<1x8x8xf32, #tpu.memory_space<vmem>>, vector<1x8x8xf32>,
    %c0_124 = arith.constant 0 : index
    %c0_125 = arith.constant 0 : index
    %c0_126 = arith.constant 0 : index
    %333 = vector.load %arg21[%c0_124, %c0_125, %c0_126] : memref<1x8x1xf32, #tpu.memory_space<vmem>>, vector<1x8x1xf32>
    %334 = vector.shape_cast %333 : vector<1x8x1xf32> to vector<8x1xf32>
    %335 = vector.shape_cast %305 : vector<8x1xf32> to vector<1x8x1xf32>
    tpu.vector_store %arg21[%c0_124, %c0_125, %c0_126], %335 {strides = array<i32>} : memref<1x8x1xf32, #tpu.memory_space<vmem>>, vector<1x8x1xf32>,
    %c0_127 = arith.constant 0 : index
    %c0_128 = arith.constant 0 : index
    %c0_129 = arith.constant 0 : index
    %336 = vector.load %arg22[%c0_127, %c0_128, %c0_129] : memref<1x8x8xf32, #tpu.memory_space<vmem>>, vector<1x8x8xf32>
    %337 = vector.shape_cast %336 : vector<1x8x8xf32> to vector<8x8xf32>
    %338 = vector.shape_cast %284 : vector<8x8xf32> to vector<1x8x8xf32>
    tpu.vector_store %arg22[%c0_127, %c0_128, %c0_129], %338 {strides = array<i32>} : memref<1x8x8xf32, #tpu.memory_space<vmem>>, vector<1x8x8xf32>,
    return
  }
  func.func @transform_0(%arg0: i32, %arg1: i32) -> (i32, i32, i32) {
    %c0_i32 = arith.constant 0 : i32
    %c0_i32_0 = arith.constant 0 : i32
    return %arg0, %arg1, %c0_i32 : i32, i32, i32
  }
  func.func @transform_1(%arg0: i32, %arg1: i32) -> (i32, i32) {
    %c0_i32 = arith.constant 0 : i32
    %c0_i32_0 = arith.constant 0 : i32
    %c0_i32_1 = arith.constant 0 : i32
    return %c0_i32, %c0_i32_0 : i32, i32
  }
  func.func @transform_2(%arg0: i32, %arg1: i32) -> (i32, i32, i32) {
    %c0_i32 = arith.constant 0 : i32
    %c0_i32_0 = arith.constant 0 : i32
    %c0_i32_1 = arith.constant 0 : i32
    return %arg0, %c0_i32, %c0_i32_0 : i32, i32, i32
  }
  func.func @transform_3(%arg0: i32, %arg1: i32) -> (i32, i32, i32) {
    %c0_i32 = arith.constant 0 : i32
    %c0_i32_0 = arith.constant 0 : i32
    %c0_i32_1 = arith.constant 0 : i32
    return %arg0, %c0_i32, %c0_i32_0 : i32, i32, i32
  }
  func.func @transform_4(%arg0: i32, %arg1: i32) -> (i32, i32, i32) {
    %c0_i32 = arith.constant 0 : i32
    %c0_i32_0 = arith.constant 0 : i32
    return %arg0, %arg1, %c0_i32 : i32, i32, i32
  }
  func.func @transform_5(%arg0: i32, %arg1: i32) -> (i32, i32, i32) {
    %c0_i32 = arith.constant 0 : i32
    %c0_i32_0 = arith.constant 0 : i32
    return %arg0, %arg1, %c0_i32 : i32, i32, i32
  }
  func.func @transform_6(%arg0: i32, %arg1: i32) -> (i32, i32, i32) {
    %c0_i32 = arith.constant 0 : i32
    %c0_i32_0 = arith.constant 0 : i32
    %c0_i32_1 = arith.constant 0 : i32
    return %arg0, %c0_i32, %c0_i32_0 : i32, i32, i32
  }
  func.func @transform_7(%arg0: i32, %arg1: i32) -> (i32, i32, i32) {
    %c0_i32 = arith.constant 0 : i32
    %c0_i32_0 = arith.constant 0 : i32
    %c0_i32_1 = arith.constant 0 : i32
    return %arg0, %c0_i32, %c0_i32_0 : i32, i32, i32
  }
  func.func @transform_8(%arg0: i32, %arg1: i32) -> (i32, i32) {
    %c0_i32 = arith.constant 0 : i32
    %c0_i32_0 = arith.constant 0 : i32
    %c0_i32_1 = arith.constant 0 : i32
    return %c0_i32, %c0_i32_0 : i32, i32
  }
  func.func @transform_9(%arg0: i32, %arg1: i32) -> (i32, i32) {
    %c0_i32 = arith.constant 0 : i32
    %c0_i32_0 = arith.constant 0 : i32
    %c0_i32_1 = arith.constant 0 : i32
    return %c0_i32, %c0_i32_0 : i32, i32
  }
  func.func @transform_10(%arg0: i32, %arg1: i32) -> (i32, i32) {
    %c0_i32 = arith.constant 0 : i32
    %c0_i32_0 = arith.constant 0 : i32
    %c0_i32_1 = arith.constant 0 : i32
    return %c0_i32, %c0_i32_0 : i32, i32
  }
  func.func @transform_11(%arg0: i32, %arg1: i32) -> (i32, i32) {
    %c0_i32 = arith.constant 0 : i32
    %c0_i32_0 = arith.constant 0 : i32
    %c0_i32_1 = arith.constant 0 : i32
    return %c0_i32, %c0_i32_0 : i32, i32
  }
  func.func @transform_12(%arg0: i32, %arg1: i32) -> (i32, i32) {
    %c0_i32 = arith.constant 0 : i32
    %c0_i32_0 = arith.constant 0 : i32
    %c0_i32_1 = arith.constant 0 : i32
    return %c0_i32, %c0_i32_0 : i32, i32
  }
  func.func @transform_13(%arg0: i32, %arg1: i32) -> (i32, i32) {
    %c0_i32 = arith.constant 0 : i32
    %c0_i32_0 = arith.constant 0 : i32
    %c0_i32_1 = arith.constant 0 : i32
    return %c0_i32, %c0_i32_0 : i32, i32
  }
  func.func @transform_14(%arg0: i32, %arg1: i32) -> (i32, i32) {
    %c0_i32 = arith.constant 0 : i32
    %c0_i32_0 = arith.constant 0 : i32
    %c0_i32_1 = arith.constant 0 : i32
    return %c0_i32, %c0_i32_0 : i32, i32
  }
  func.func @transform_15(%arg0: i32, %arg1: i32) -> (i32, i32) {
    %c0_i32 = arith.constant 0 : i32
    %c0_i32_0 = arith.constant 0 : i32
    %c0_i32_1 = arith.constant 0 : i32
    return %c0_i32, %c0_i32_0 : i32, i32
  }
  func.func @transform_16(%arg0: i32, %arg1: i32) -> (i32, i32) {
    %c0_i32 = arith.constant 0 : i32
    %c0_i32_0 = arith.constant 0 : i32
    %c0_i32_1 = arith.constant 0 : i32
    return %c0_i32, %c0_i32_0 : i32, i32
  }
  func.func @transform_17(%arg0: i32, %arg1: i32) -> (i32, i32, i32) {
    %c0_i32 = arith.constant 0 : i32
    %c0_i32_0 = arith.constant 0 : i32
    return %arg0, %arg1, %c0_i32 : i32, i32, i32
  }
  func.func @transform_18(%arg0: i32, %arg1: i32) -> (i32, i32, i32) {
    %c0_i32 = arith.constant 0 : i32
    %c0_i32_0 = arith.constant 0 : i32
    return %arg0, %arg1, %c0_i32 : i32, i32, i32
  }
  func.func @transform_19(%arg0: i32, %arg1: i32) -> (i32, i32, i32) {
    %c0_i32 = arith.constant 0 : i32
    %c0_i32_0 = arith.constant 0 : i32
    return %arg0, %arg1, %c0_i32 : i32, i32, i32
  }
  func.func @transform_20(%arg0: i32, %arg1: i32) -> (i32, i32, i32) {
    %c0_i32 = arith.constant 0 : i32
    %c0_i32_0 = arith.constant 0 : i32
    return %arg0, %arg1, %c0_i32 : i32, i32, i32
  }
}

</mosaic_0001>

<llo_original>
// kernel: decoder_forward.1
$region0: #{decoder_forward.1}
  #allocation0 [shape = 'u32[]', space=smem, size = 0x4, offset = 0x4, fixed_abs, tag = 'smem constant byte address 0x4 - core index']
  #allocation1 [shape = 'u32[144,128]{1,0:T(1,128)}', space=vmem, size = 0x12000, scoped, tag = 'internal scratch']
  #allocation2 [shape = 'f32[1,32]{1,0:T(1,128)}', space=vmem, size = 0x200, scoped, tag = 'scratch operand']
  #allocation3 [shape = 'f32[1,32]{1,0:T(1,128)}', space=vmem, size = 0x200, scoped, tag = 'scratch operand']
  #allocation4 [shape = 'f32[8,32]{1,0:T(8,128)}', space=vmem, size = 0x1000, scoped, tag = 'scratch operand']
  #allocation5 [shape = 'f32[1,1]{1,0:T(1,128)S(1)}', space=vmem, size = 0x200, scoped, tag = 'scoped memory for decoder_forward.1']
  %s0 = inlined_call_operand.hbm [shape: f32[2,8,128], index: 0, kind: input, shape index: {}]
  %s1 = inlined_call_operand.hbm [shape: f32[32,128], index: 1, kind: input, shape index: {}]
  %s2 = inlined_call_operand.hbm [shape: f32[2,1,32], index: 2, kind: input, shape index: {}]
  %s3 = inlined_call_operand.hbm [shape: f32[2,1,32], index: 3, kind: input, shape index: {}]
  %s4 = inlined_call_operand.hbm [shape: f32[2,8,1], index: 4, kind: input, shape index: {}]
  %s5 = inlined_call_operand.hbm [shape: f32[2,8,1], index: 5, kind: input, shape index: {}]
  %s6 = inlined_call_operand.hbm [shape: f32[2,8,32], index: 6, kind: input, shape index: {}]
  %s7 = inlined_call_operand.hbm [shape: f32[2,16,8], index: 7, kind: input, shape index: {}]
  %s8 = inlined_call_operand.hbm [shape: f32[32,16], index: 8, kind: input, shape index: {}]
  %s9 = inlined_call_operand.hbm [shape: f32[1,16], index: 9, kind: input, shape index: {}]
  %s10 = inlined_call_operand.hbm [shape: f32[1,16], index: 10, kind: input, shape index: {}]
  %s11 = inlined_call_operand.<no memory space> [shape: f32[1,1], index: 11, kind: input, shape index: {}]
  %s12 = inlined_call_operand.hbm [shape: f32[32,33], index: 12, kind: input, shape index: {}]
  %s13 = inlined_call_operand.hbm [shape: f32[32,33], index: 13, kind: input, shape index: {}]
  %s14 = inlined_call_operand.hbm [shape: f32[1,33], index: 14, kind: input, shape index: {}]
  %s15 = inlined_call_operand.hbm [shape: f32[32,32], index: 15, kind: input, shape index: {}]
  %s16 = inlined_call_operand.hbm [shape: f32[1,32], index: 16, kind: input, shape index: {}]
  %s17 = inlined_call_operand.hbm [shape: f32[2,8,32], index: 17, kind: output, shape index: {0}]
  %s18 = inlined_call_operand.hbm [shape: f32[2,8,8], index: 18, kind: output, shape index: {1}]
  %s19 = inlined_call_operand.hbm [shape: f32[2,8,1], index: 19, kind: output, shape index: {2}]
  %s20 = inlined_call_operand.hbm [shape: f32[2,8,8], index: 20, kind: output, shape index: {3}]
  %21 = xla_tuple %s17, %s18, %s19, %s20
  %s22 = sld [smem:[#allocation0]]
  $region193: #{decoder_forward.1} parent=0
    _
  %s24 = ssub.s32 1, %s22
  %s25 = scalar_select 0, %s24, %s22
  %v26 = vstv %s11
  %27 = vst [vmem:[#allocation5] sm:$0x1] %v26
  $region1: #{decoder_forward.1} parent=0
    #allocation6 [shape = 'u8[8192]{0}', space=vmem, size = 0x2000, scoped, tag = 'input window, operand 0']
    #allocation7 [shape = 's32[2]{0}', space=sflag, size = 0x8, scoped, tag = 'scoped memory for decoder_forward.1']
    #allocation8 [shape = 's32[2]{0}', space=sflag, size = 0x8, scoped, tag = 'scoped memory for decoder_forward.1']
    #allocation9 [shape = 'u8[16384]{0}', space=vmem, size = 0x4000, scoped, tag = 'input window, operand 1, single buffered']
    #allocation10 [shape = 's32[1]{0}', space=sflag, size = 0x4, scoped, tag = 'scoped memory for decoder_forward.1']
    #allocation11 [shape = 'u8[1024]{0}', space=vmem, size = 0x400, scoped, tag = 'input window, operand 2']
    #allocation12 [shape = 'u8[1024]{0}', space=vmem, size = 0x400, scoped, tag = 'input window, operand 3']
    #allocation13 [shape = 'u8[8192]{0}', space=vmem, size = 0x2000, scoped, tag = 'input window, operand 4']
    #allocation14 [shape = 'u8[8192]{0}', space=vmem, size = 0x2000, scoped, tag = 'input window, operand 5']
    #allocation15 [shape = 'u8[8192]{0}', space=vmem, size = 0x2000, scoped, tag = 'input window, operand 6']
    #allocation16 [shape = 'u8[16384]{0}', space=vmem, size = 0x4000, scoped, tag = 'input window, operand 7']
    #allocation17 [shape = 'u8[16384]{0}', space=vmem, size = 0x4000, scoped, tag = 'input window, operand 8, single buffered']
    #allocation18 [shape = 'u8[512]{0}', space=vmem, size = 0x400, scoped, tag = 'input window, operand 9, single buffered']
    #allocation19 [shape = 's32[1]{0}', space=sflag, size = 0x4, scoped, tag = 'scoped memory for decoder_forward.1']
    #allocation20 [shape = 'u8[512]{0}', space=vmem, size = 0x400, scoped, tag = 'input window, operand 10, single buffered']
    #allocation21 [shape = 'u8[16384]{0}', space=vmem, size = 0x4000, scoped, tag = 'input window, operand 12, single buffered']
    #allocation22 [shape = 's32[1]{0}', space=sflag, size = 0x4, scoped, tag = 'scoped memory for decoder_forward.1']
    #allocation23 [shape = 'u8[16384]{0}', space=vmem, size = 0x4000, scoped, tag = 'input window, operand 13, single buffered']
    #allocation24 [shape = 'u8[512]{0}', space=vmem, size = 0x400, scoped, tag = 'input window, operand 14, single buffered']
    #allocation25 [shape = 's32[1]{0}', space=sflag, size = 0x4, scoped, tag = 'scoped memory for decoder_forward.1']
    #allocation26 [shape = 'u8[16384]{0}', space=vmem, size = 0x4000, scoped, tag = 'input window, operand 15, single buffered']
    #allocation27 [shape = 'u8[512]{0}', space=vmem, size = 0x400, scoped, tag = 'input window, operand 16, single buffered']
    #allocation28 [shape = 's32[1]{0}', space=sflag, size = 0x4, scoped, tag = 'scoped memory for decoder_forward.1']
    #allocation29 [shape = 'u8[8192]{0}', space=vmem, size = 0x2000, scoped, tag = 'output window, operand 0']
    #allocation30 [shape = 'u8[8192]{0}', space=vmem, size = 0x2000, scoped, tag = 'output window, operand 1']
    #allocation31 [shape = 's32[2]{0}', space=sflag, size = 0x8, scoped, tag = 'scoped memory for decoder_forward.1']
    #allocation32 [shape = 'u8[8192]{0}', space=vmem, size = 0x2000, scoped, tag = 'output window, operand 2']
    #allocation33 [shape = 'u8[8192]{0}', space=vmem, size = 0x2000, scoped, tag = 'output window, operand 3']
    #allocation34 [shape = 's32[2]{0}', space=sflag, size = 0x8, scoped, tag = 'scoped memory for decoder_forward.1']
    %28 = vsyncpa [#allocation7], 0
    %s29 = scalar_lea.sflag [#allocation7], 1
    %30 = vsyncpa %s29, 0
    %31 = vsyncpa [#allocation10], 0
    %32 = vsyncpa [#allocation19], 0
    %33 = vsyncpa [#allocation22], 0
    %34 = vsyncpa [#allocation25], 0
    %35 = vsyncpa [#allocation28], 0
    %36 = vsyncpa [#allocation8], 0
    %s37 = scalar_lea.sflag [#allocation8], 1
    %38 = vsyncpa %s37, 0
    %39 = vsyncpa [#allocation31], 0
    %s40 = scalar_lea.sflag [#allocation31], 1
    %41 = vsyncpa %s40, 0
    %42 = vsyncpa [#allocation34], 0
    %s43 = scalar_lea.sflag [#allocation34], 1
    %44 = vsyncpa %s43, 0
    loop: start=0, step=1, limit=4
    $region2: #{decoder_forward.1} parent=1 // loop_pre_header
      _
    $region3: #{decoder_forward.1} parent=1 // loop_header
      %s46 = sphi 0, %s50
      %p47 = scmp.ge.s32.totalorder %s46, 4
      %s53 = sphi 0, %s65
      %s54 = sphi 0, %s61
      %s55 = sphi 0, %s53
      %s56 = sphi 0, %s54
      %s57 = sphi 0, %s55
      %s58 = sphi 0, %s56
      %s70 = sphi 0, %s72
      %s73 = sphi 0, %s70
      %s74 = sphi 0, %s73
      %s90 = sphi 0, %s74
      %s94 = sphi 0, %s94
      %s96 = sphi 0, %s94
      %s97 = sphi 0, %s96
      %s111 = sphi 0, %s97
      %s117 = sphi 0, %s119
      %s120 = sphi 0, %s117
      %s121 = sphi 0, %s120
      %s137 = sphi 0, %s121
      %s143 = sphi 0, %s145
      %s146 = sphi 0, %s143
      %s147 = sphi 0, %s146
      %s163 = sphi 0, %s147
      %s171 = sphi 0, %s173
      %s174 = sphi 0, %s171
      %s175 = sphi 0, %s174
      %s191 = sphi 0, %s175
      %s199 = sphi 0, %s201
      %s202 = sphi 0, %s199
      %s203 = sphi 0, %s202
      %s219 = sphi 0, %s203
      %s225 = sphi 0, %s227
      %s228 = sphi 0, %s225
      %s229 = sphi 0, %s228
      %s245 = sphi 0, %s229
      %s251 = sphi 0, %s253
      %s254 = sphi 0, %s251
      %s255 = sphi 0, %s254
      %s271 = sphi 0, %s255
      %s275 = sphi 0, %s275
      %s277 = sphi 0, %s275
      %s278 = sphi 0, %s277
      %s292 = sphi 0, %s278
      %s296 = sphi 0, %s296
      %s298 = sphi 0, %s296
      %s299 = sphi 0, %s298
      %s313 = sphi 0, %s299
      %s317 = sphi 0, %s317
      %s319 = sphi 0, %s317
      %s320 = sphi 0, %s319
      %s334 = sphi 0, %s320
      %s338 = sphi 0, %s338
      %s340 = sphi 0, %s338
      %s341 = sphi 0, %s340
      %s355 = sphi 0, %s341
      %s359 = sphi 0, %s359
      %s361 = sphi 0, %s359
      %s362 = sphi 0, %s361
      %s376 = sphi 0, %s362
      %s380 = sphi 0, %s380
      %s382 = sphi 0, %s380
      %s383 = sphi 0, %s382
      %s397 = sphi 0, %s383
      %s401 = sphi 0, %s401
      %s403 = sphi 0, %s401
      %s404 = sphi 0, %s403
      %s418 = sphi 0, %s404
      %s422 = sphi 0, %s422
      %s424 = sphi 0, %s422
      %s425 = sphi 0, %s424
      %s439 = sphi 0, %s425
      %s443 = sphi 0, %s443
      %s445 = sphi 0, %s443
      %s446 = sphi 0, %s445
      %s460 = sphi 0, %s446
      %s468 = sphi 0, %s470
      %s471 = sphi 0, %s468
      %s472 = sphi 0, %s471
      %s488 = sphi 0, %s472
      %s496 = sphi 0, %s498
      %s499 = sphi 0, %s496
      %s500 = sphi 0, %s499
      %s516 = sphi 0, %s500
      %s524 = sphi 0, %s526
      %s527 = sphi 0, %s524
      %s528 = sphi 0, %s527
      %s544 = sphi 0, %s528
      %s552 = sphi 0, %s554
      %s555 = sphi 0, %s552
      %s556 = sphi 0, %s555
      %s572 = sphi 0, %s556
    $region4: #{decoder_forward.1} parent=1 // loop_header_branch
      %49 = sbr.rel (%p47) target = $region8
    $region5: #{decoder_forward.1} parent=1 // loop_body
      %s51 = ssub.s32 %s46, 1
      %s52 = ssub.s32 %s46, 2
      %s59 = sadd.s32 1, %s54
      %p60 = scmp.ge.s32.totalorder %s59, 1
      %s61 = scalar_select %p60, 0, %s59
      %s62 = sadd.s32 1, %s53
      %s63 = scalar_select %p60, %s62, %s53
      %p64 = scmp.ge.s32.totalorder %s63, 2
      %s65 = scalar_select %p64, 0, %s63
      %s66 = ssub.s32 %s53, %s65
      %s67 = ssub.s32 %s54, %s61
      %s68 = sor.u32 %s66, %s67
      %p69 = scmp.eq.s32.totalorder %s68, 0
      %s71 = sadd.s32 %s70, 1
      %s72 = scalar_select %p69, %s70, %s71
      %p75 = pneg %p69
      %p76 = scmp.eq.s32.totalorder %s46, 1
      %p77 = por %p75, %p76
      %p78 = scmp.ne.s32.totalorder %s70, %s73
      %p79 = scmp.eq.s32.totalorder %s46, 0
      %p80 = por %p78, %p79
      %p81 = scmp.ne.s32.totalorder %s70, %s73
      %p82 = scmp.eq.s32.totalorder %s51, 1
      %p83 = por %p81, %p82
      %p84 = scmp.ne.s32.totalorder %s73, %s74
      %p85 = scmp.eq.s32.totalorder %s51, 0
      %p86 = por %p84, %p85
      %p87 = scmp.ne.s32.totalorder %s73, %s74
      %p88 = scmp.eq.s32.totalorder %s52, 1
      %p89 = por %p87, %p88
      %p91 = scmp.ne.s32.totalorder %s74, %s90
      %p92 = scmp.eq.s32.totalorder %s52, 0
      %p93 = por %p91, %p92
      %s95 = sadd.s32 %s94, 1
      %p98 = scmp.eq.s32.totalorder %s46, 1
      %p99 = scmp.ne.s32.totalorder %s94, %s96
      %p100 = scmp.eq.s32.totalorder %s46, 0
      %p101 = por %p99, %p100
      %p102 = scmp.ne.s32.totalorder %s94, %s96
      %p103 = scmp.eq.s32.totalorder %s51, 1
      %p104 = por %p102, %p103
      %p105 = scmp.ne.s32.totalorder %s96, %s97
      %p106 = scmp.eq.s32.totalorder %s51, 0
      %p107 = por %p105, %p106
      %p108 = scmp.ne.s32.totalorder %s96, %s97
      %p109 = scmp.eq.s32.totalorder %s52, 1
      %p110 = por %p108, %p109
      %p112 = scmp.ne.s32.totalorder %s97, %s111
      %p113 = scmp.eq.s32.totalorder %s52, 0
      %p114 = por %p112, %p113
      %s115 = ssub.s32 %s53, %s65
      %p116 = scmp.eq.s32.totalorder %s115, 0
      %s118 = sadd.s32 %s117, 1
      %s119 = scalar_select %p116, %s117, %s118
      %p122 = pneg %p116
      %p123 = scmp.eq.s32.totalorder %s46, 1
      %p124 = por %p122, %p123
      %p125 = scmp.ne.s32.totalorder %s117, %s120
      %p126 = scmp.eq.s32.totalorder %s46, 0
      %p127 = por %p125, %p126
      %p128 = scmp.ne.s32.totalorder %s117, %s120
      %p129 = scmp.eq.s32.totalorder %s51, 1
      %p130 = por %p128, %p129
      %p131 = scmp.ne.s32.totalorder %s120, %s121
      %p132 = scmp.eq.s32.totalorder %s51, 0
      %p133 = por %p131, %p132
      %p134 = scmp.ne.s32.totalorder %s120, %s121
      %p135 = scmp.eq.s32.totalorder %s52, 1
      %p136 = por %p134, %p135
      %p138 = scmp.ne.s32.totalorder %s121, %s137
      %p139 = scmp.eq.s32.totalorder %s52, 0
      %p140 = por %p138, %p139
      %s141 = ssub.s32 %s53, %s65
      %p142 = scmp.eq.s32.totalorder %s141, 0
      %s144 = sadd.s32 %s143, 1
      %s145 = scalar_select %p142, %s143, %s144
      %p148 = pneg %p142
      %p149 = scmp.eq.s32.totalorder %s46, 1
      %p150 = por %p148, %p149
      %p151 = scmp.ne.s32.totalorder %s143, %s146
      %p152 = scmp.eq.s32.totalorder %s46, 0
      %p153 = por %p151, %p152
      %p154 = scmp.ne.s32.totalorder %s143, %s146
      %p155 = scmp.eq.s32.totalorder %s51, 1
      %p156 = por %p154, %p155
      %p157 = scmp.ne.s32.totalorder %s146, %s147
      %p158 = scmp.eq.s32.totalorder %s51, 0
      %p159 = por %p157, %p158
      %p160 = scmp.ne.s32.totalorder %s146, %s147
      %p161 = scmp.eq.s32.totalorder %s52, 1
      %p162 = por %p160, %p161
      %p164 = scmp.ne.s32.totalorder %s147, %s163
      %p165 = scmp.eq.s32.totalorder %s52, 0
      %p166 = por %p164, %p165
      %s167 = ssub.s32 %s53, %s65
      %s168 = ssub.s32 %s54, %s61
      %s169 = sor.u32 %s167, %s168
      %p170 = scmp.eq.s32.totalorder %s169, 0
      %s172 = sadd.s32 %s171, 1
      %s173 = scalar_select %p170, %s171, %s172
      %p176 = pneg %p170
      %p177 = scmp.eq.s32.totalorder %s46, 1
      %p178 = por %p176, %p177
      %p179 = scmp.ne.s32.totalorder %s171, %s174
      %p180 = scmp.eq.s32.totalorder %s46, 0
      %p181 = por %p179, %p180
      %p182 = scmp.ne.s32.totalorder %s171, %s174
      %p183 = scmp.eq.s32.totalorder %s51, 1
      %p184 = por %p182, %p183
      %p185 = scmp.ne.s32.totalorder %s174, %s175
      %p186 = scmp.eq.s32.totalorder %s51, 0
      %p187 = por %p185, %p186
      %p188 = scmp.ne.s32.totalorder %s174, %s175
      %p189 = scmp.eq.s32.totalorder %s52, 1
      %p190 = por %p188, %p189
      %p192 = scmp.ne.s32.totalorder %s175, %s191
      %p193 = scmp.eq.s32.totalorder %s52, 0
      %p194 = por %p192, %p193
      %s195 = ssub.s32 %s53, %s65
      %s196 = ssub.s32 %s54, %s61
      %s197 = sor.u32 %s195, %s196
      %p198 = scmp.eq.s32.totalorder %s197, 0
      %s200 = sadd.s32 %s199, 1
      %s201 = scalar_select %p198, %s199, %s200
      %p204 = pneg %p198
      %p205 = scmp.eq.s32.totalorder %s46, 1
      %p206 = por %p204, %p205
      %p207 = scmp.ne.s32.totalorder %s199, %s202
      %p208 = scmp.eq.s32.totalorder %s46, 0
      %p209 = por %p207, %p208
      %p210 = scmp.ne.s32.totalorder %s199, %s202
      %p211 = scmp.eq.s32.totalorder %s51, 1
      %p212 = por %p210, %p211
      %p213 = scmp.ne.s32.totalorder %s202, %s203
      %p214 = scmp.eq.s32.totalorder %s51, 0
      %p215 = por %p213, %p214
      %p216 = scmp.ne.s32.totalorder %s202, %s203
      %p217 = scmp.eq.s32.totalorder %s52, 1
      %p218 = por %p216, %p217
      %p220 = scmp.ne.s32.totalorder %s203, %s219
      %p221 = scmp.eq.s32.totalorder %s52, 0
      %p222 = por %p220, %p221
      %s223 = ssub.s32 %s53, %s65
      %p224 = scmp.eq.s32.totalorder %s223, 0
      %s226 = sadd.s32 %s225, 1
      %s227 = scalar_select %p224, %s225, %s226
      %p230 = pneg %p224
      %p231 = scmp.eq.s32.totalorder %s46, 1
      %p232 = por %p230, %p231
      %p233 = scmp.ne.s32.totalorder %s225, %s228
      %p234 = scmp.eq.s32.totalorder %s46, 0
      %p235 = por %p233, %p234
      %p236 = scmp.ne.s32.totalorder %s225, %s228
      %p237 = scmp.eq.s32.totalorder %s51, 1
      %p238 = por %p236, %p237
      %p239 = scmp.ne.s32.totalorder %s228, %s229
      %p240 = scmp.eq.s32.totalorder %s51, 0
      %p241 = por %p239, %p240
      %p242 = scmp.ne.s32.totalorder %s228, %s229
      %p243 = scmp.eq.s32.totalorder %s52, 1
      %p244 = por %p242, %p243
      %p246 = scmp.ne.s32.totalorder %s229, %s245
      %p247 = scmp.eq.s32.totalorder %s52, 0
      %p248 = por %p246, %p247
      %s249 = ssub.s32 %s53, %s65
      %p250 = scmp.eq.s32.totalorder %s249, 0
      %s252 = sadd.s32 %s251, 1
      %s253 = scalar_select %p250, %s251, %s252
      %p256 = pneg %p250
      %p257 = scmp.eq.s32.totalorder %s46, 1
      %p258 = por %p256, %p257
      %p259 = scmp.ne.s32.totalorder %s251, %s254
      %p260 = scmp.eq.s32.totalorder %s46, 0
      %p261 = por %p259, %p260
      %p262 = scmp.ne.s32.totalorder %s251, %s254
      %p263 = scmp.eq.s32.totalorder %s51, 1
      %p264 = por %p262, %p263
      %p265 = scmp.ne.s32.totalorder %s254, %s255
      %p266 = scmp.eq.s32.totalorder %s51, 0
      %p267 = por %p265, %p266
      %p268 = scmp.ne.s32.totalorder %s254, %s255
      %p269 = scmp.eq.s32.totalorder %s52, 1
      %p270 = por %p268, %p269
      %p272 = scmp.ne.s32.totalorder %s255, %s271
      %p273 = scmp.eq.s32.totalorder %s52, 0
      %p274 = por %p272, %p273
      %s276 = sadd.s32 %s275, 1
      %p279 = scmp.eq.s32.totalorder %s46, 1
      %p280 = scmp.ne.s32.totalorder %s275, %s277
      %p281 = scmp.eq.s32.totalorder %s46, 0
      %p282 = por %p280, %p281
      %p283 = scmp.ne.s32.totalorder %s275, %s277
      %p284 = scmp.eq.s32.totalorder %s51, 1
      %p285 = por %p283, %p284
      %p286 = scmp.ne.s32.totalorder %s277, %s278
      %p287 = scmp.eq.s32.totalorder %s51, 0
      %p288 = por %p286, %p287
      %p289 = scmp.ne.s32.totalorder %s277, %s278
      %p290 = scmp.eq.s32.totalorder %s52, 1
      %p291 = por %p289, %p290
      %p293 = scmp.ne.s32.totalorder %s278, %s292
      %p294 = scmp.eq.s32.totalorder %s52, 0
      %p295 = por %p293, %p294
      %s297 = sadd.s32 %s296, 1
      %p300 = scmp.eq.s32.totalorder %s46, 1
      %p301 = scmp.ne.s32.totalorder %s296, %s298
      %p302 = scmp.eq.s32.totalorder %s46, 0
      %p303 = por %p301, %p302
      %p304 = scmp.ne.s32.totalorder %s296, %s298
      %p305 = scmp.eq.s32.totalorder %s51, 1
      %p306 = por %p304, %p305
      %p307 = scmp.ne.s32.totalorder %s298, %s299
      %p308 = scmp.eq.s32.totalorder %s51, 0
      %p309 = por %p307, %p308
      %p310 = scmp.ne.s32.totalorder %s298, %s299
      %p311 = scmp.eq.s32.totalorder %s52, 1
      %p312 = por %p310, %p311
      %p314 = scmp.ne.s32.totalorder %s299, %s313
      %p315 = scmp.eq.s32.totalorder %s52, 0
      %p316 = por %p314, %p315
      %s318 = sadd.s32 %s317, 1
      %p321 = scmp.eq.s32.totalorder %s46, 1
      %p322 = scmp.ne.s32.totalorder %s317, %s319
      %p323 = scmp.eq.s32.totalorder %s46, 0
      %p324 = por %p322, %p323
      %p325 = scmp.ne.s32.totalorder %s317, %s319
      %p326 = scmp.eq.s32.totalorder %s51, 1
      %p327 = por %p325, %p326
      %p328 = scmp.ne.s32.totalorder %s319, %s320
      %p329 = scmp.eq.s32.totalorder %s51, 0
      %p330 = por %p328, %p329
      %p331 = scmp.ne.s32.totalorder %s319, %s320
      %p332 = scmp.eq.s32.totalorder %s52, 1
      %p333 = por %p331, %p332
      %p335 = scmp.ne.s32.totalorder %s320, %s334
      %p336 = scmp.eq.s32.totalorder %s52, 0
      %p337 = por %p335, %p336
      %s339 = sadd.s32 %s338, 1
      %p342 = scmp.eq.s32.totalorder %s46, 1
      %p343 = scmp.ne.s32.totalorder %s338, %s340
      %p344 = scmp.eq.s32.totalorder %s46, 0
      %p345 = por %p343, %p344
      %p346 = scmp.ne.s32.totalorder %s338, %s340
      %p347 = scmp.eq.s32.totalorder %s51, 1
      %p348 = por %p346, %p347
      %p349 = scmp.ne.s32.totalorder %s340, %s341
      %p350 = scmp.eq.s32.totalorder %s51, 0
      %p351 = por %p349, %p350
      %p352 = scmp.ne.s32.totalorder %s340, %s341
      %p353 = scmp.eq.s32.totalorder %s52, 1
      %p354 = por %p352, %p353
      %p356 = scmp.ne.s32.totalorder %s341, %s355
      %p357 = scmp.eq.s32.totalorder %s52, 0
      %p358 = por %p356, %p357
      %s360 = sadd.s32 %s359, 1
      %p363 = scmp.eq.s32.totalorder %s46, 1
      %p364 = scmp.ne.s32.totalorder %s359, %s361
      %p365 = scmp.eq.s32.totalorder %s46, 0
      %p366 = por %p364, %p365
      %p367 = scmp.ne.s32.totalorder %s359, %s361
      %p368 = scmp.eq.s32.totalorder %s51, 1
      %p369 = por %p367, %p368
      %p370 = scmp.ne.s32.totalorder %s361, %s362
      %p371 = scmp.eq.s32.totalorder %s51, 0
      %p372 = por %p370, %p371
      %p373 = scmp.ne.s32.totalorder %s361, %s362
      %p374 = scmp.eq.s32.totalorder %s52, 1
      %p375 = por %p373, %p374
      %p377 = scmp.ne.s32.totalorder %s362, %s376
      %p378 = scmp.eq.s32.totalorder %s52, 0
      %p379 = por %p377, %p378
      %s381 = sadd.s32 %s380, 1
      %p384 = scmp.eq.s32.totalorder %s46, 1
      %p385 = scmp.ne.s32.totalorder %s380, %s382
      %p386 = scmp.eq.s32.totalorder %s46, 0
      %p387 = por %p385, %p386
      %p388 = scmp.ne.s32.totalorder %s380, %s382
      %p389 = scmp.eq.s32.totalorder %s51, 1
      %p390 = por %p388, %p389
      %p391 = scmp.ne.s32.totalorder %s382, %s383
      %p392 = scmp.eq.s32.totalorder %s51, 0
      %p393 = por %p391, %p392
      %p394 = scmp.ne.s32.totalorder %s382, %s383
      %p395 = scmp.eq.s32.totalorder %s52, 1
      %p396 = por %p394, %p395
      %p398 = scmp.ne.s32.totalorder %s383, %s397
      %p399 = scmp.eq.s32.totalorder %s52, 0
      %p400 = por %p398, %p399
      %s402 = sadd.s32 %s401, 1
      %p405 = scmp.eq.s32.totalorder %s46, 1
      %p406 = scmp.ne.s32.totalorder %s401, %s403
      %p407 = scmp.eq.s32.totalorder %s46, 0
      %p408 = por %p406, %p407
      %p409 = scmp.ne.s32.totalorder %s401, %s403
      %p410 = scmp.eq.s32.totalorder %s51, 1
      %p411 = por %p409, %p410
      %p412 = scmp.ne.s32.totalorder %s403, %s404
      %p413 = scmp.eq.s32.totalorder %s51, 0
      %p414 = por %p412, %p413
      %p415 = scmp.ne.s32.totalorder %s403, %s404
      %p416 = scmp.eq.s32.totalorder %s52, 1
      %p417 = por %p415, %p416
      %p419 = scmp.ne.s32.totalorder %s404, %s418
      %p420 = scmp.eq.s32.totalorder %s52, 0
      %p421 = por %p419, %p420
      %s423 = sadd.s32 %s422, 1
      %p426 = scmp.eq.s32.totalorder %s46, 1
      %p427 = scmp.ne.s32.totalorder %s422, %s424
      %p428 = scmp.eq.s32.totalorder %s46, 0
      %p429 = por %p427, %p428
      %p430 = scmp.ne.s32.totalorder %s422, %s424
      %p431 = scmp.eq.s32.totalorder %s51, 1
      %p432 = por %p430, %p431
      %p433 = scmp.ne.s32.totalorder %s424, %s425
      %p434 = scmp.eq.s32.totalorder %s51, 0
      %p435 = por %p433, %p434
      %p436 = scmp.ne.s32.totalorder %s424, %s425
      %p437 = scmp.eq.s32.totalorder %s52, 1
      %p438 = por %p436, %p437
      %p440 = scmp.ne.s32.totalorder %s425, %s439
      %p441 = scmp.eq.s32.totalorder %s52, 0
      %p442 = por %p440, %p441
      %s444 = sadd.s32 %s443, 1
      %p447 = scmp.eq.s32.totalorder %s46, 1
      %p448 = scmp.ne.s32.totalorder %s443, %s445
      %p449 = scmp.eq.s32.totalorder %s46, 0
      %p450 = por %p448, %p449
      %p451 = scmp.ne.s32.totalorder %s443, %s445
      %p452 = scmp.eq.s32.totalorder %s51, 1
      %p453 = por %p451, %p452
      %p454 = scmp.ne.s32.totalorder %s445, %s446
      %p455 = scmp.eq.s32.totalorder %s51, 0
      %p456 = por %p454, %p455
      %p457 = scmp.ne.s32.totalorder %s445, %s446
      %p458 = scmp.eq.s32.totalorder %s52, 1
      %p459 = por %p457, %p458
      %p461 = scmp.ne.s32.totalorder %s446, %s460
      %p462 = scmp.eq.s32.totalorder %s52, 0
      %p463 = por %p461, %p462
      %s464 = ssub.s32 %s53, %s65
      %s465 = ssub.s32 %s54, %s61
      %s466 = sor.u32 %s464, %s465
      %p467 = scmp.eq.s32.totalorder %s466, 0
      %s469 = sadd.s32 %s468, 1
      %s470 = scalar_select %p467, %s468, %s469
      %p473 = pneg %p467
      %p474 = scmp.eq.s32.totalorder %s46, 1
      %p475 = por %p473, %p474
      %p476 = scmp.ne.s32.totalorder %s468, %s471
      %p477 = scmp.eq.s32.totalorder %s46, 0
      %p478 = por %p476, %p477
      %p479 = scmp.ne.s32.totalorder %s468, %s471
      %p480 = scmp.eq.s32.totalorder %s51, 1
      %p481 = por %p479, %p480
      %p482 = scmp.ne.s32.totalorder %s471, %s472
      %p483 = scmp.eq.s32.totalorder %s51, 0
      %p484 = por %p482, %p483
      %p485 = scmp.ne.s32.totalorder %s471, %s472
      %p486 = scmp.eq.s32.totalorder %s52, 1
      %p487 = por %p485, %p486
      %p489 = scmp.ne.s32.totalorder %s472, %s488
      %p490 = scmp.eq.s32.totalorder %s52, 0
      %p491 = por %p489, %p490
      %s492 = ssub.s32 %s53, %s65
      %s493 = ssub.s32 %s54, %s61
      %s494 = sor.u32 %s492, %s493
      %p495 = scmp.eq.s32.totalorder %s494, 0
      %s497 = sadd.s32 %s496, 1
      %s498 = scalar_select %p495, %s496, %s497
      %p501 = pneg %p495
      %p502 = scmp.eq.s32.totalorder %s46, 1
      %p503 = por %p501, %p502
      %p504 = scmp.ne.s32.totalorder %s496, %s499
      %p505 = scmp.eq.s32.totalorder %s46, 0
      %p506 = por %p504, %p505
      %p507 = scmp.ne.s32.totalorder %s496, %s499
      %p508 = scmp.eq.s32.totalorder %s51, 1
      %p509 = por %p507, %p508
      %p510 = scmp.ne.s32.totalorder %s499, %s500
      %p511 = scmp.eq.s32.totalorder %s51, 0
      %p512 = por %p510, %p511
      %p513 = scmp.ne.s32.totalorder %s499, %s500
      %p514 = scmp.eq.s32.totalorder %s52, 1
      %p515 = por %p513, %p514
      %p517 = scmp.ne.s32.totalorder %s500, %s516
      %p518 = scmp.eq.s32.totalorder %s52, 0
      %p519 = por %p517, %p518
      %s520 = ssub.s32 %s53, %s65
      %s521 = ssub.s32 %s54, %s61
      %s522 = sor.u32 %s520, %s521
      %p523 = scmp.eq.s32.totalorder %s522, 0
      %s525 = sadd.s32 %s524, 1
      %s526 = scalar_select %p523, %s524, %s525
      %p529 = pneg %p523
      %p530 = scmp.eq.s32.totalorder %s46, 1
      %p531 = por %p529, %p530
      %p532 = scmp.ne.s32.totalorder %s524, %s527
      %p533 = scmp.eq.s32.totalorder %s46, 0
      %p534 = por %p532, %p533
      %p535 = scmp.ne.s32.totalorder %s524, %s527
      %p536 = scmp.eq.s32.totalorder %s51, 1
      %p537 = por %p535, %p536
      %p538 = scmp.ne.s32.totalorder %s527, %s528
      %p539 = scmp.eq.s32.totalorder %s51, 0
      %p540 = por %p538, %p539
      %p541 = scmp.ne.s32.totalorder %s527, %s528
      %p542 = scmp.eq.s32.totalorder %s52, 1
      %p543 = por %p541, %p542
      %p545 = scmp.ne.s32.totalorder %s528, %s544
      %p546 = scmp.eq.s32.totalorder %s52, 0
      %p547 = por %p545, %p546
      %s548 = ssub.s32 %s53, %s65
      %s549 = ssub.s32 %s54, %s61
      %s550 = sor.u32 %s548, %s549
      %p551 = scmp.eq.s32.totalorder %s550, 0
      %s553 = sadd.s32 %s552, 1
      %s554 = scalar_select %p551, %s552, %s553
      %p557 = pneg %p551
      %p558 = scmp.eq.s32.totalorder %s46, 1
      %p559 = por %p557, %p558
      %p560 = scmp.ne.s32.totalorder %s552, %s555
      %p561 = scmp.eq.s32.totalorder %s46, 0
      %p562 = por %p560, %p561
      %p563 = scmp.ne.s32.totalorder %s552, %s555
      %p564 = scmp.eq.s32.totalorder %s51, 1
      %p565 = por %p563, %p564
      %p566 = scmp.ne.s32.totalorder %s555, %s556
      %p567 = scmp.eq.s32.totalorder %s51, 0
      %p568 = por %p566, %p567
      %p569 = scmp.ne.s32.totalorder %s555, %s556
      %p570 = scmp.eq.s32.totalorder %s52, 1
      %p571 = por %p569, %p570
      %p573 = scmp.ne.s32.totalorder %s556, %s572
      %p574 = scmp.eq.s32.totalorder %s52, 0
      %p575 = por %p573, %p574
      %p576 = scmp.le.s32.totalorder 1, %s46
      %p577 = scmp.lt.s32.totalorder %s46, 3
      %p578 = pnand %p576, %p577
      %p579 = pneg %p578
      // Predicated region
      $region9: #{decoder_forward.1} parent=5 // pred_check
        _
      $region10: #{decoder_forward.1} parent=5 // pred_check_branch
        %581 = sbr.rel (%p578) target = $region12
      $region11: #{decoder_forward.1} parent=5 // pred_region
        %s582 = ssub.s32 %s46, 1
        // Predicated region
        $region13: #{decoder_forward.1} parent=11 // pred_check
          %p583 = pneg %p107
        $region14: #{decoder_forward.1} parent=11 // pred_check_branch
          %585 = sbr.rel (%p583) target = $region16
        $region15: #{decoder_forward.1} parent=11 // pred_region
          %s587 = ssub.s32 512, 512
          %588 = vsyncadd [#allocation10], %s587
          %s589 = sshll.u32 [#allocation9], 4
          %s590 = int_to_ptr.vmem [resolvable:$true] %s589
          %595 = dma.hbm_to_vmem [thread:$0]  %s1, 512, %s590, [#allocation10], 128, 128, 8
        $region16: #{decoder_forward.1} parent=11 // pred_fallthru
          _
        // Predicated region
        $region17: #{decoder_forward.1} parent=11 // pred_check
          %p596 = pneg %p288
        $region18: #{decoder_forward.1} parent=11 // pred_check_branch
          %598 = sbr.rel (%p596) target = $region20
        $region19: #{decoder_forward.1} parent=11 // pred_region
          %s600 = ssub.s32 512, 512
          %601 = vsyncadd [#allocation10], %s600
          %s602 = sshll.u32 [#allocation17], 4
          %s603 = int_to_ptr.vmem [resolvable:$true] %s602
          %608 = dma.hbm_to_vmem [thread:$0]  %s8, 512, %s603, [#allocation10], 128, 128, 8
        $region20: #{decoder_forward.1} parent=11 // pred_fallthru
          _
        // Predicated region
        $region21: #{decoder_forward.1} parent=11 // pred_check
          %p609 = pneg %p309
        $region22: #{decoder_forward.1} parent=11 // pred_check_branch
          %611 = sbr.rel (%p609) target = $region24
        $region23: #{decoder_forward.1} parent=11 // pred_region
          %s613 = ssub.s32 16, 16
          %614 = vsyncadd [#allocation19], %s613
          %s616 = sshll.u32 [#allocation18], 4
          %s617 = int_to_ptr.vmem [resolvable:$true] %s616
          %619 = dma.hbm_to_vmem [thread:$0]  %s9, 16, %s617, [#allocation19]
        $region24: #{decoder_forward.1} parent=11 // pred_fallthru
          _
        // Predicated region
        $region25: #{decoder_forward.1} parent=11 // pred_check
          %p620 = pneg %p330
        $region26: #{decoder_forward.1} parent=11 // pred_check_branch
          %622 = sbr.rel (%p620) target = $region28
        $region27: #{decoder_forward.1} parent=11 // pred_region
          %s624 = ssub.s32 16, 16
          %625 = vsyncadd [#allocation19], %s624
          %s627 = sshll.u32 [#allocation20], 4
          %s628 = int_to_ptr.vmem [resolvable:$true] %s627
          %630 = dma.hbm_to_vmem [thread:$0]  %s10, 16, %s628, [#allocation19]
        $region28: #{decoder_forward.1} parent=11 // pred_fallthru
          _
        // Predicated region
        $region29: #{decoder_forward.1} parent=11 // pred_check
          %p631 = pneg %p351
        $region30: #{decoder_forward.1} parent=11 // pred_check_branch
          %633 = sbr.rel (%p631) target = $region32
        $region31: #{decoder_forward.1} parent=11 // pred_region
          _
        $region32: #{decoder_forward.1} parent=11 // pred_fallthru
          _
        // Predicated region
        $region33: #{decoder_forward.1} parent=11 // pred_check
          %p634 = pneg %p372
        $region34: #{decoder_forward.1} parent=11 // pred_check_branch
          %636 = sbr.rel (%p634) target = $region36
        $region35: #{decoder_forward.1} parent=11 // pred_region
          %s638 = ssub.s32 512, 512
          %639 = vsyncadd [#allocation22], %s638
          %s640 = sshll.u32 [#allocation21], 4
          %s641 = int_to_ptr.vmem [resolvable:$true] %s640
          %646 = dma.hbm_to_vmem [thread:$0]  %s12, 512, %s641, [#allocation22], 128, 128, 8
        $region36: #{decoder_forward.1} parent=11 // pred_fallthru
          _
        // Predicated region
        $region37: #{decoder_forward.1} parent=11 // pred_check
          %p647 = pneg %p393
        $region38: #{decoder_forward.1} parent=11 // pred_check_branch
          %649 = sbr.rel (%p647) target = $region40
        $region39: #{decoder_forward.1} parent=11 // pred_region
          %s651 = ssub.s32 512, 512
          %652 = vsyncadd [#allocation22], %s651
          %s653 = sshll.u32 [#allocation23], 4
          %s654 = int_to_ptr.vmem [resolvable:$true] %s653
          %659 = dma.hbm_to_vmem [thread:$0]  %s13, 512, %s654, [#allocation22], 128, 128, 8
        $region40: #{decoder_forward.1} parent=11 // pred_fallthru
          _
        // Predicated region
        $region41: #{decoder_forward.1} parent=11 // pred_check
          %p660 = pneg %p414
        $region42: #{decoder_forward.1} parent=11 // pred_check_branch
          %662 = sbr.rel (%p660) target = $region44
        $region43: #{decoder_forward.1} parent=11 // pred_region
          %s664 = ssub.s32 16, 16
          %665 = vsyncadd [#allocation25], %s664
          %s667 = sshll.u32 [#allocation24], 4
          %s668 = int_to_ptr.vmem [resolvable:$true] %s667
          %670 = dma.hbm_to_vmem [thread:$0]  %s14, 16, %s668, [#allocation25]
        $region44: #{decoder_forward.1} parent=11 // pred_fallthru
          _
        // Predicated region
        $region45: #{decoder_forward.1} parent=11 // pred_check
          %p671 = pneg %p435
        $region46: #{decoder_forward.1} parent=11 // pred_check_branch
          %673 = sbr.rel (%p671) target = $region48
        $region47: #{decoder_forward.1} parent=11 // pred_region
          %s675 = ssub.s32 512, 512
          %676 = vsyncadd [#allocation25], %s675
          %s677 = sshll.u32 [#allocation26], 4
          %s678 = int_to_ptr.vmem [resolvable:$true] %s677
          %683 = dma.hbm_to_vmem [thread:$0]  %s15, 512, %s678, [#allocation25], 128, 128, 8
        $region48: #{decoder_forward.1} parent=11 // pred_fallthru
          _
        // Predicated region
        $region49: #{decoder_forward.1} parent=11 // pred_check
          %p684 = pneg %p456
        $region50: #{decoder_forward.1} parent=11 // pred_check_branch
          %686 = sbr.rel (%p684) target = $region52
        $region51: #{decoder_forward.1} parent=11 // pred_region
          %s688 = ssub.s32 16, 16
          %689 = vsyncadd [#allocation28], %s688
          %s691 = sshll.u32 [#allocation27], 4
          %s692 = int_to_ptr.vmem [resolvable:$true] %s691
          %694 = dma.hbm_to_vmem [thread:$0]  %s16, 16, %s692, [#allocation28]
        $region52: #{decoder_forward.1} parent=11 // pred_fallthru
          _
      $region12: #{decoder_forward.1} parent=5 // pred_fallthru
        _
      %p695 = scmp.lt.s32.totalorder %s46, 2
      // Predicated region
      $region53: #{decoder_forward.1} parent=5 // pred_check
        %p696 = pneg %p695
      $region54: #{decoder_forward.1} parent=5 // pred_check_branch
        %698 = sbr.rel (%p696) target = $region56
      $region55: #{decoder_forward.1} parent=5 // pred_region
        // Predicated region
        $region57: #{decoder_forward.1} parent=55 // pred_check
          %p699 = pneg %p80
        $region58: #{decoder_forward.1} parent=55 // pred_check_branch
          %701 = sbr.rel (%p699) target = $region60
        $region59: #{decoder_forward.1} parent=55 // pred_region
          %s702 = sand.u32 %s46, 1
          %s703 = scalar_lea.sflag [#allocation7], %s702
          %s704 = sand.u32 %s70, 1
          %s705 = smul.addr %s704, 8
          %s706 = scalar_lea.vmem [#allocation6], %s705
          %s708 = ssub.s32 128, 128
          %709 = vsyncadd %s703, %s708
          %s710 = sadd.s32 %s54, %s53
          %s711 = smul.addr %s710, 128
          %s712 = scalar_lea.hbm %s0, %s711
          %s714 = sshll.u32 %s706, 4
          %s715 = int_to_ptr.vmem [resolvable:$true] %s714
          %717 = dma.hbm_to_vmem [thread:$0]  %s712, 128, %s715, %s703
        $region60: #{decoder_forward.1} parent=55 // pred_fallthru
          _
        // Predicated region
        $region61: #{decoder_forward.1} parent=55 // pred_check
          %p718 = pneg %p127
        $region62: #{decoder_forward.1} parent=55 // pred_check_branch
          %720 = sbr.rel (%p718) target = $region64
        $region63: #{decoder_forward.1} parent=55 // pred_region
          %s721 = sand.u32 %s46, 1
          %s722 = scalar_lea.sflag [#allocation7], %s721
          %s723 = sand.u32 %s117, 1
          %s724 = scalar_lea.vmem [#allocation11], %s723
          %s726 = ssub.s32 16, 16
          %727 = vsyncadd %s722, %s726
          %s728 = smul.addr %s53, 16
          %s729 = scalar_lea.hbm %s2, %s728
          %s731 = sshll.u32 %s724, 4
          %s732 = int_to_ptr.vmem [resolvable:$true] %s731
          %734 = dma.hbm_to_vmem [thread:$0]  %s729, 16, %s732, %s722
        $region64: #{decoder_forward.1} parent=55 // pred_fallthru
          _
        // Predicated region
        $region65: #{decoder_forward.1} parent=55 // pred_check
          %p735 = pneg %p153
        $region66: #{decoder_forward.1} parent=55 // pred_check_branch
          %737 = sbr.rel (%p735) target = $region68
        $region67: #{decoder_forward.1} parent=55 // pred_region
          %s738 = sand.u32 %s46, 1
          %s739 = scalar_lea.sflag [#allocation7], %s738
          %s740 = sand.u32 %s143, 1
          %s741 = scalar_lea.vmem [#allocation12], %s740
          %s743 = ssub.s32 16, 16
          %744 = vsyncadd %s739, %s743
          %s745 = smul.addr %s53, 16
          %s746 = scalar_lea.hbm %s3, %s745
          %s748 = sshll.u32 %s741, 4
          %s749 = int_to_ptr.vmem [resolvable:$true] %s748
          %751 = dma.hbm_to_vmem [thread:$0]  %s746, 16, %s749, %s739
        $region68: #{decoder_forward.1} parent=55 // pred_fallthru
          _
        // Predicated region
        $region69: #{decoder_forward.1} parent=55 // pred_check
          %p752 = pneg %p181
        $region70: #{decoder_forward.1} parent=55 // pred_check_branch
          %754 = sbr.rel (%p752) target = $region72
        $region71: #{decoder_forward.1} parent=55 // pred_region
          %s755 = sand.u32 %s46, 1
          %s756 = scalar_lea.sflag [#allocation7], %s755
          %s757 = sand.u32 %s171, 1
          %s758 = smul.addr %s757, 8
          %s759 = scalar_lea.vmem [#allocation13], %s758
          %s761 = ssub.s32 128, 128
          %762 = vsyncadd %s756, %s761
          %s763 = sadd.s32 %s54, %s53
          %s764 = smul.addr %s763, 128
          %s765 = scalar_lea.hbm %s4, %s764
          %s767 = sshll.u32 %s759, 4
          %s768 = int_to_ptr.vmem [resolvable:$true] %s767
          %770 = dma.hbm_to_vmem [thread:$0]  %s765, 128, %s768, %s756
        $region72: #{decoder_forward.1} parent=55 // pred_fallthru
          _
        // Predicated region
        $region73: #{decoder_forward.1} parent=55 // pred_check
          %p771 = pneg %p209
        $region74: #{decoder_forward.1} parent=55 // pred_check_branch
          %773 = sbr.rel (%p771) target = $region76
        $region75: #{decoder_forward.1} parent=55 // pred_region
          %s774 = sand.u32 %s46, 1
          %s775 = scalar_lea.sflag [#allocation7], %s774
          %s776 = sand.u32 %s199, 1
          %s777 = smul.addr %s776, 8
          %s778 = scalar_lea.vmem [#allocation14], %s777
          %s780 = ssub.s32 128, 128
          %781 = vsyncadd %s775, %s780
          %s782 = sadd.s32 %s54, %s53
          %s783 = smul.addr %s782, 128
          %s784 = scalar_lea.hbm %s5, %s783
          %s786 = sshll.u32 %s778, 4
          %s787 = int_to_ptr.vmem [resolvable:$true] %s786
          %789 = dma.hbm_to_vmem [thread:$0]  %s784, 128, %s787, %s775
        $region76: #{decoder_forward.1} parent=55 // pred_fallthru
          _
        // Predicated region
        $region77: #{decoder_forward.1} parent=55 // pred_check
          %p790 = pneg %p235
        $region78: #{decoder_forward.1} parent=55 // pred_check_branch
          %792 = sbr.rel (%p790) target = $region80
        $region79: #{decoder_forward.1} parent=55 // pred_region
          %s793 = sand.u32 %s46, 1
          %s794 = scalar_lea.sflag [#allocation7], %s793
          %s795 = sand.u32 %s225, 1
          %s796 = smul.addr %s795, 8
          %s797 = scalar_lea.vmem [#allocation15], %s796
          %s799 = ssub.s32 128, 128
          %800 = vsyncadd %s794, %s799
          %s801 = smul.addr %s53, 128
          %s802 = scalar_lea.hbm %s6, %s801
          %s804 = sshll.u32 %s797, 4
          %s805 = int_to_ptr.vmem [resolvable:$true] %s804
          %807 = dma.hbm_to_vmem [thread:$0]  %s802, 128, %s805, %s794
        $region80: #{decoder_forward.1} parent=55 // pred_fallthru
          _
        // Predicated region
        $region81: #{decoder_forward.1} parent=55 // pred_check
          %p808 = pneg %p261
        $region82: #{decoder_forward.1} parent=55 // pred_check_branch
          %810 = sbr.rel (%p808) target = $region84
        $region83: #{decoder_forward.1} parent=55 // pred_region
          %s811 = sand.u32 %s46, 1
          %s812 = scalar_lea.sflag [#allocation7], %s811
          %s813 = sand.u32 %s251, 1
          %s814 = smul.addr %s813, 16
          %s815 = scalar_lea.vmem [#allocation16], %s814
          %s817 = ssub.s32 256, 256
          %818 = vsyncadd %s812, %s817
          %s819 = smul.addr %s53, 2
          %s820 = smul.addr %s819, 128
          %s821 = scalar_lea.hbm %s7, %s820
          %s822 = sshll.u32 %s815, 4
          %s823 = int_to_ptr.vmem [resolvable:$true] %s822
          %828 = dma.hbm_to_vmem [thread:$0]  %s821, 256, %s823, %s812, 128, 128, 8
        $region84: #{decoder_forward.1} parent=55 // pred_fallthru
          _
      $region56: #{decoder_forward.1} parent=5 // pred_fallthru
        _
      %p829 = scmp.le.s32.totalorder 1, %s46
      %p830 = scmp.lt.s32.totalorder %s46, 3
      %p831 = pnand %p829, %p830
      %p832 = pneg %p831
      // Predicated region
      $region85: #{decoder_forward.1} parent=5 // pred_check
        _
      $region86: #{decoder_forward.1} parent=5 // pred_check_branch
        %834 = sbr.rel (%p831) target = $region88
      $region87: #{decoder_forward.1} parent=5 // pred_region
        %s835 = ssub.s32 %s46, 1
        %s836 = sand.u32 %s51, 1
        %s837 = scalar_lea.sflag [#allocation7], %s836
        %s838 = sand.u32 %s73, 1
        %s839 = smul.addr %s838, 8
        %s840 = scalar_lea.vmem [#allocation6], %s839
        // Predicated region
        $region89: #{decoder_forward.1} parent=87 // pred_check
          %p841 = pneg %p86
        $region90: #{decoder_forward.1} parent=87 // pred_check_branch
          %843 = sbr.rel (%p841) target = $region92
        $region91: #{decoder_forward.1} parent=87 // pred_region
          %844 = dma.done %s837, 128
        $region92: #{decoder_forward.1} parent=87 // pred_fallthru
          _
        // Predicated region
        $region93: #{decoder_forward.1} parent=87 // pred_check
          %p845 = pneg %p107
        $region94: #{decoder_forward.1} parent=87 // pred_check_branch
          %847 = sbr.rel (%p845) target = $region96
        $region95: #{decoder_forward.1} parent=87 // pred_region
          %848 = dma.done [#allocation10], 512
        $region96: #{decoder_forward.1} parent=87 // pred_fallthru
          _
        %s849 = sand.u32 %s51, 1
        %s850 = scalar_lea.sflag [#allocation7], %s849
        %s851 = sand.u32 %s120, 1
        %s852 = scalar_lea.vmem [#allocation11], %s851
        // Predicated region
        $region97: #{decoder_forward.1} parent=87 // pred_check
          %p853 = pneg %p133
        $region98: #{decoder_forward.1} parent=87 // pred_check_branch
          %855 = sbr.rel (%p853) target = $region100
        $region99: #{decoder_forward.1} parent=87 // pred_region
          %856 = dma.done %s850, 16
        $region100: #{decoder_forward.1} parent=87 // pred_fallthru
          _
        %s857 = sand.u32 %s51, 1
        %s858 = scalar_lea.sflag [#allocation7], %s857
        %s859 = sand.u32 %s146, 1
        %s860 = scalar_lea.vmem [#allocation12], %s859
        // Predicated region
        $region101: #{decoder_forward.1} parent=87 // pred_check
          %p861 = pneg %p159
        $region102: #{decoder_forward.1} parent=87 // pred_check_branch
          %863 = sbr.rel (%p861) target = $region104
        $region103: #{decoder_forward.1} parent=87 // pred_region
          %864 = dma.done %s858, 16
        $region104: #{decoder_forward.1} parent=87 // pred_fallthru
          _
        %s865 = sand.u32 %s51, 1
        %s866 = scalar_lea.sflag [#allocation7], %s865
        %s867 = sand.u32 %s174, 1
        %s868 = smul.addr %s867, 8
        %s869 = scalar_lea.vmem [#allocation13], %s868
        // Predicated region
        $region105: #{decoder_forward.1} parent=87 // pred_check
          %p870 = pneg %p187
        $region106: #{decoder_forward.1} parent=87 // pred_check_branch
          %872 = sbr.rel (%p870) target = $region108
        $region107: #{decoder_forward.1} parent=87 // pred_region
          %873 = dma.done %s866, 128
        $region108: #{decoder_forward.1} parent=87 // pred_fallthru
          _
        %s874 = sand.u32 %s51, 1
        %s875 = scalar_lea.sflag [#allocation7], %s874
        %s876 = sand.u32 %s202, 1
        %s877 = smul.addr %s876, 8
        %s878 = scalar_lea.vmem [#allocation14], %s877
        // Predicated region
        $region109: #{decoder_forward.1} parent=87 // pred_check
          %p879 = pneg %p215
        $region110: #{decoder_forward.1} parent=87 // pred_check_branch
          %881 = sbr.rel (%p879) target = $region112
        $region111: #{decoder_forward.1} parent=87 // pred_region
          %882 = dma.done %s875, 128
        $region112: #{decoder_forward.1} parent=87 // pred_fallthru
          _
        %s883 = sand.u32 %s51, 1
        %s884 = scalar_lea.sflag [#allocation7], %s883
        %s885 = sand.u32 %s228, 1
        %s886 = smul.addr %s885, 8
        %s887 = scalar_lea.vmem [#allocation15], %s886
        // Predicated region
        $region113: #{decoder_forward.1} parent=87 // pred_check
          %p888 = pneg %p241
        $region114: #{decoder_forward.1} parent=87 // pred_check_branch
          %890 = sbr.rel (%p888) target = $region116
        $region115: #{decoder_forward.1} parent=87 // pred_region
          %891 = dma.done %s884, 128
        $region116: #{decoder_forward.1} parent=87 // pred_fallthru
          _
        %s892 = sand.u32 %s51, 1
        %s893 = scalar_lea.sflag [#allocation7], %s892
        %s894 = sand.u32 %s254, 1
        %s895 = smul.addr %s894, 16
        %s896 = scalar_lea.vmem [#allocation16], %s895
        // Predicated region
        $region117: #{decoder_forward.1} parent=87 // pred_check
          %p897 = pneg %p267
        $region118: #{decoder_forward.1} parent=87 // pred_check_branch
          %899 = sbr.rel (%p897) target = $region120
        $region119: #{decoder_forward.1} parent=87 // pred_region
          %900 = dma.done %s893, 256
        $region120: #{decoder_forward.1} parent=87 // pred_fallthru
          _
        // Predicated region
        $region121: #{decoder_forward.1} parent=87 // pred_check
          %p901 = pneg %p288
        $region122: #{decoder_forward.1} parent=87 // pred_check_branch
          %903 = sbr.rel (%p901) target = $region124
        $region123: #{decoder_forward.1} parent=87 // pred_region
          %904 = dma.done [#allocation10], 512
        $region124: #{decoder_forward.1} parent=87 // pred_fallthru
          _
        // Predicated region
        $region125: #{decoder_forward.1} parent=87 // pred_check
          %p905 = pneg %p309
        $region126: #{decoder_forward.1} parent=87 // pred_check_branch
          %907 = sbr.rel (%p905) target = $region128
        $region127: #{decoder_forward.1} parent=87 // pred_region
          %908 = dma.done [#allocation19], 16
        $region128: #{decoder_forward.1} parent=87 // pred_fallthru
          _
        // Predicated region
        $region129: #{decoder_forward.1} parent=87 // pred_check
          %p909 = pneg %p330
        $region130: #{decoder_forward.1} parent=87 // pred_check_branch
          %911 = sbr.rel (%p909) target = $region132
        $region131: #{decoder_forward.1} parent=87 // pred_region
          %912 = dma.done [#allocation19], 16
        $region132: #{decoder_forward.1} parent=87 // pred_fallthru
          _
        // Predicated region
        $region133: #{decoder_forward.1} parent=87 // pred_check
          %p913 = pneg %p372
        $region134: #{decoder_forward.1} parent=87 // pred_check_branch
          %915 = sbr.rel (%p913) target = $region136
        $region135: #{decoder_forward.1} parent=87 // pred_region
          %916 = dma.done [#allocation22], 512
        $region136: #{decoder_forward.1} parent=87 // pred_fallthru
          _
        // Predicated region
        $region137: #{decoder_forward.1} parent=87 // pred_check
          %p917 = pneg %p393
        $region138: #{decoder_forward.1} parent=87 // pred_check_branch
          %919 = sbr.rel (%p917) target = $region140
        $region139: #{decoder_forward.1} parent=87 // pred_region
          %920 = dma.done [#allocation22], 512
        $region140: #{decoder_forward.1} parent=87 // pred_fallthru
          _
        // Predicated region
        $region141: #{decoder_forward.1} parent=87 // pred_check
          %p921 = pneg %p414
        $region142: #{decoder_forward.1} parent=87 // pred_check_branch
          %923 = sbr.rel (%p921) target = $region144
        $region143: #{decoder_forward.1} parent=87 // pred_region
          %924 = dma.done [#allocation25], 16
        $region144: #{decoder_forward.1} parent=87 // pred_fallthru
          _
        // Predicated region
        $region145: #{decoder_forward.1} parent=87 // pred_check
          %p925 = pneg %p435
        $region146: #{decoder_forward.1} parent=87 // pred_check_branch
          %927 = sbr.rel (%p925) target = $region148
        $region147: #{decoder_forward.1} parent=87 // pred_region
          %928 = dma.done [#allocation25], 512
        $region148: #{decoder_forward.1} parent=87 // pred_fallthru
          _
        // Predicated region
        $region149: #{decoder_forward.1} parent=87 // pred_check
          %p929 = pneg %p456
        $region150: #{decoder_forward.1} parent=87 // pred_check_branch
          %931 = sbr.rel (%p929) target = $region152
        $region151: #{decoder_forward.1} parent=87 // pred_region
          %932 = dma.done [#allocation28], 16
        $region152: #{decoder_forward.1} parent=87 // pred_fallthru
          _
        %s933 = sand.u32 %s51, 1
        %s934 = scalar_lea.sflag [#allocation7], %s933
        %s935 = sand.u32 %s73, 1
        %s936 = smul.addr %s935, 8
        %s937 = scalar_lea.vmem [#allocation6], %s936
        %p938 = pneg %p86
        %p939 = pneg %p83
        %p940 = pneg %p107
        %p941 = pneg %p104
        %s942 = sand.u32 %s51, 1
        %s943 = scalar_lea.sflag [#allocation7], %s942
        %s944 = sand.u32 %s120, 1
        %s945 = scalar_lea.vmem [#allocation11], %s944
        %p946 = pneg %p133
        %p947 = pneg %p130
        %s948 = sand.u32 %s51, 1
        %s949 = scalar_lea.sflag [#allocation7], %s948
        %s950 = sand.u32 %s146, 1
        %s951 = scalar_lea.vmem [#allocation12], %s950
        %p952 = pneg %p159
        %p953 = pneg %p156
        %s954 = sand.u32 %s51, 1
        %s955 = scalar_lea.sflag [#allocation7], %s954
        %s956 = sand.u32 %s174, 1
        %s957 = smul.addr %s956, 8
        %s958 = scalar_lea.vmem [#allocation13], %s957
        %p959 = pneg %p187
        %p960 = pneg %p184
        %s961 = sand.u32 %s51, 1
        %s962 = scalar_lea.sflag [#allocation7], %s961
        %s963 = sand.u32 %s202, 1
        %s964 = smul.addr %s963, 8
        %s965 = scalar_lea.vmem [#allocation14], %s964
        %p966 = pneg %p215
        %p967 = pneg %p212
        %s968 = sand.u32 %s51, 1
        %s969 = scalar_lea.sflag [#allocation7], %s968
        %s970 = sand.u32 %s228, 1
        %s971 = smul.addr %s970, 8
        %s972 = scalar_lea.vmem [#allocation15], %s971
        %p973 = pneg %p241
        %p974 = pneg %p238
        %s975 = sand.u32 %s51, 1
        %s976 = scalar_lea.sflag [#allocation7], %s975
        %s977 = sand.u32 %s254, 1
        %s978 = smul.addr %s977, 16
        %s979 = scalar_lea.vmem [#allocation16], %s978
        %p980 = pneg %p267
        %p981 = pneg %p264
        %p982 = pneg %p288
        %p983 = pneg %p285
        %p984 = pneg %p309
        %p985 = pneg %p306
        %p986 = pneg %p330
        %p987 = pneg %p327
        %p988 = pneg %p351
        %p989 = pneg %p348
        %p990 = pneg %p372
        %p991 = pneg %p369
        %p992 = pneg %p393
        %p993 = pneg %p390
        %p994 = pneg %p414
        %p995 = pneg %p411
        %p996 = pneg %p435
        %p997 = pneg %p432
        %p998 = pneg %p456
        %p999 = pneg %p453
        %p1000 = pneg %p484
        %p1001 = pneg %p481
        %s1002 = sand.u32 %s471, 1
        %s1003 = scalar_lea.sflag [#allocation8], %s1002
        %s1004 = sand.u32 %s471, 1
        %s1005 = smul.addr %s1004, 8
        %s1006 = scalar_lea.vmem [#allocation29], %s1005
        %p1007 = pneg %p512
        %p1008 = pneg %p509
        %s1009 = sand.u32 %s51, 1
        %s1010 = scalar_lea.sflag [#allocation31], %s1009
        %s1011 = sand.u32 %s499, 1
        %s1012 = smul.addr %s1011, 8
        %s1013 = scalar_lea.vmem [#allocation30], %s1012
        %p1014 = pneg %p540
        %p1015 = pneg %p537
        %s1016 = sand.u32 %s51, 1
        %s1017 = scalar_lea.sflag [#allocation31], %s1016
        %s1018 = sand.u32 %s527, 1
        %s1019 = smul.addr %s1018, 8
        %s1020 = scalar_lea.vmem [#allocation32], %s1019
        %p1021 = pneg %p568
        %p1022 = pneg %p565
        %s1023 = sand.u32 %s555, 1
        %s1024 = scalar_lea.sflag [#allocation34], %s1023
        %s1025 = sand.u32 %s555, 1
        %s1026 = smul.addr %s1025, 8
        %s1027 = scalar_lea.vmem [#allocation33], %s1026
        %p1028 = scmp.eq.s32.totalorder %s56, 0
        // Predicated region
        $region153: #{decoder_forward.1} parent=87 // pred_check
          %p1029 = pneg %p1028
        $region154: #{decoder_forward.1} parent=87 // pred_check_branch
          %1031 = sbr.rel (%p1029) target = $region156
        $region155: #{decoder_forward.1} parent=87 // pred_region
          %v1032 = vld [vmem:[%s852] sm:$0x1]
          %vm1033 = vcmask 253952
          %1034 = vst.msk [vmem:[#allocation2] sm:$0x1] %vm1033, %v1032
          %v1035 = vld [vmem:[%s860] sm:$0x1]
          %1036 = vst.msk [vmem:[#allocation3] sm:$0x1] %vm1033, %v1035
        $region156: #{decoder_forward.1} parent=87 // pred_fallthru
          _
        %v1037 = vld [vmem:[#allocation2] sm:$0x1]
        %v1038 = vld [vmem:[#allocation3] sm:$0x1]
        %v1039 = vld [vmem:[#allocation9] sm:$0xff]
        %v1040 = vld [vmem:[#allocation9 + $0x8] sm:$0xff]
        %v1041 = vld [vmem:[#allocation9 + $0x10] sm:$0xff]
        %v1042 = vld [vmem:[#allocation9 + $0x18] sm:$0xff]
        %v1043 = vld [vmem:[%s840] sm:$0x1]
        %vm1044 = vcmask 261120
        %v1046 = vsel %vm1044, %v1037, 0
        %1048 = vmatprep.subr.mxu0 0.0
        %1049 = vmatpush1.msra.mxu0 %v1039
        %1050 = vmatprep.subr.mxu0 0.0
        %1051 = vmatpush1.msra.mxu0 %v1040
        %1052 = vmatprep.subr.mxu0 0.0
        %1053 = vmatpush1.msra.mxu0 %v1041
        %1054 = vmatprep.subr.mxu0 0.0
        %1055 = vmatpush1.msra.mxu0 %v1042
        %1056 = vmatprep.subr.mxu0 0.0
        %1057 = vmatpush1.msra.mxu0 0.0
        %1058 = vmatprep.subr.mxu0 0.0
        %1059 = vmatpush1.msra.mxu0 0.0
        %1060 = vmatprep.subr.mxu0 0.0
        %1061 = vmatpush1.msra.mxu0 0.0
        %1062 = vmatprep.subr.mxu0 0.0
        %1063 = vmatpush1.msra.mxu0 0.0
        %1064 = vmatprep.subr.mxu0 0.0
        %1065 = vmatpush1.msra.mxu0 0.0
        %1066 = vmatprep.subr.mxu0 0.0
        %1067 = vmatpush1.msra.mxu0 0.0
        %1068 = vmatprep.subr.mxu0 0.0
        %1069 = vmatpush1.msra.mxu0 0.0
        %1070 = vmatprep.subr.mxu0 0.0
        %1071 = vmatpush1.msra.mxu0 0.0
        %1072 = vmatprep.subr.mxu0 0.0
        %1073 = vmatpush1.msra.mxu0 0.0
        %1074 = vmatprep.subr.mxu0 0.0
        %1075 = vmatpush1.msra.mxu0 0.0
        %1076 = vmatprep.subr.mxu0 0.0
        %1077 = vmatpush1.msra.mxu0 0.0
        %1078 = vmatprep.subr.mxu0 0.0
        %1079 = vmatpush1.msra.mxu0 0.0
        %1080 = vmatprep.subr.mxu0 0.0
        %1081 = vmatpush1.msra.mxu0 0.0
        %1082 = vmatprep.subr.mxu0 0.0
        %1083 = vmatpush1.msra.mxu0 0.0
        %1084 = vmatprep.subr.mxu0 0.0
        %1085 = vmatpush1.msra.mxu0 0.0
        %1086 = vmatprep.subr.mxu0 0.0
        %1087 = vmatpush1.msra.mxu0 0.0
        %1088 = vmatprep.subr.mxu0 0.0
        %1089 = vmatpush1.msra.mxu0 0.0
        %1090 = vmatprep.subr.mxu0 0.0
        %1091 = vmatpush1.msra.mxu0 0.0
        %1092 = vmatprep.subr.mxu0 0.0
        %1093 = vmatpush1.msra.mxu0 0.0
        %1094 = vmatprep.subr.mxu0 0.0
        %1095 = vmatpush1.msra.mxu0 0.0
        %1096 = vmatprep.subr.mxu0 0.0
        %1097 = vmatpush1.msra.mxu0 0.0
        %1098 = vmatprep.subr.mxu0 0.0
        %1099 = vmatpush1.msra.mxu0 0.0
        %1100 = vmatprep.subr.mxu0 0.0
        %1101 = vmatpush1.msra.mxu0 0.0
        %1102 = vmatprep.subr.mxu0 0.0
        %1103 = vmatpush1.msra.mxu0 0.0
        %1104 = vmatprep.subr.mxu0 0.0
        %1105 = vmatpush1.msra.mxu0 0.0
        %1106 = vmatprep.subr.mxu0 0.0
        %1107 = vmatpush1.msra.mxu0 0.0
        %1108 = vmatprep.subr.mxu0 0.0
        %1109 = vmatpush1.msra.mxu0 0.0
        %1110 = vmatprep.subr.mxu0 0.0
        %1111 = vmatpush1.msra.mxu0 0.0
        %1112 = vmatprep.mubr.f32.mxu0 0.0
        %1113 = vmatmul.mubr.f32.gmra.mrb[0].mxu0 %v1046
        %v1114 = vpop.f32.mrb[0].mxu0
        %v1115 = vadd.f32 0.0, %v1114
        %v1116 = vpop.f32.mrb[0].mxu0
        %1117 = vdwg.mxu0
        %v1118 = vadd.f32 %v1043, %v1115
        %v1119 = vxor.u32 %v1118, 2147483648
        %v1120 = vmul.f32 %v1119, 1.442695
        %v1121 = vpow.pop %v1120
        %v1122 = vadd.f32 %v1121, 1.0
        %v1123 = vrcp.pop %v1122
        %v1124 = vmul.f32 1.0, %v1123
        %v1125 = vtanh.pop %v1118
        %v1127 = vlaneseq
        %v1128 = vshrl.u32 %v1127, 7
        %v1129 = vsub.s32 0, %v1128
        %v1130 = vrot.slane %v1038, %v1129
        %1131 = vrot.lane.b32.xlu0 %v1130, 32
        %v1132 = vpop.permute.xlu0 %1131
        %v1134 = vmul.f32 %v1124, %v1132
        %1136 = vrot.lane.b32.xlu0 %v1125, 64
        %v1137 = vpop.permute.xlu0 %1136
        %v1139 = vmul.f32 %v1124, %v1137
        %1141 = vrot.lane.b32.xlu0 %v1139, 32
        %v1142 = vpop.permute.xlu0 %1141
        %v1144 = vadd.f32 %v1134, %v1142
        %v1145 = vtanh.pop %v1144
        %1147 = vrot.lane.b32.xlu0 %v1145, 64
        %v1148 = vpop.permute.xlu0 %1147
        %v1150 = vmul.f32 %v1124, %v1148
        %1152 = vrot.lane.b32.xlu0 %v1150, 32
        %v1153 = vpop.permute.xlu0 %1152
        %vm1155 = vcmask 253952
        %1156 = vst.msk [vmem:[#allocation4] sm:$0x1] %vm1155, %v1153
        %v1157 = vld [vmem:[%s840 + $0x1] sm:$0x1]
        %v1158 = vsel %vm1044, %v1153, 0
        %1160 = vmatprep.subr.mxu0 0.0
        %1161 = vmatpush1.msra.mxu0 %v1039
        %1162 = vmatprep.subr.mxu0 0.0
        %1163 = vmatpush1.msra.mxu0 %v1040
        %1164 = vmatprep.subr.mxu0 0.0
        %1165 = vmatpush1.msra.mxu0 %v1041
        %1166 = vmatprep.subr.mxu0 0.0
        %1167 = vmatpush1.msra.mxu0 %v1042
        %1168 = vmatprep.subr.mxu0 0.0
        %1169 = vmatpush1.msra.mxu0 0.0
        %1170 = vmatprep.subr.mxu0 0.0
        %1171 = vmatpush1.msra.mxu0 0.0
        %1172 = vmatprep.subr.mxu0 0.0
        %1173 = vmatpush1.msra.mxu0 0.0
        %1174 = vmatprep.subr.mxu0 0.0
        %1175 = vmatpush1.msra.mxu0 0.0
        %1176 = vmatprep.subr.mxu0 0.0
        %1177 = vmatpush1.msra.mxu0 0.0
        %1178 = vmatprep.subr.mxu0 0.0
        %1179 = vmatpush1.msra.mxu0 0.0
        %1180 = vmatprep.subr.mxu0 0.0
        %1181 = vmatpush1.msra.mxu0 0.0
        %1182 = vmatprep.subr.mxu0 0.0
        %1183 = vmatpush1.msra.mxu0 0.0
        %1184 = vmatprep.subr.mxu0 0.0
        %1185 = vmatpush1.msra.mxu0 0.0
        %1186 = vmatprep.subr.mxu0 0.0
        %1187 = vmatpush1.msra.mxu0 0.0
        %1188 = vmatprep.subr.mxu0 0.0
        %1189 = vmatpush1.msra.mxu0 0.0
        %1190 = vmatprep.subr.mxu0 0.0
        %1191 = vmatpush1.msra.mxu0 0.0
        %1192 = vmatprep.subr.mxu0 0.0
        %1193 = vmatpush1.msra.mxu0 0.0
        %1194 = vmatprep.subr.mxu0 0.0
        %1195 = vmatpush1.msra.mxu0 0.0
        %1196 = vmatprep.subr.mxu0 0.0
        %1197 = vmatpush1.msra.mxu0 0.0
        %1198 = vmatprep.subr.mxu0 0.0
        %1199 = vmatpush1.msra.mxu0 0.0
        %1200 = vmatprep.subr.mxu0 0.0
        %1201 = vmatpush1.msra.mxu0 0.0
        %1202 = vmatprep.subr.mxu0 0.0
        %1203 = vmatpush1.msra.mxu0 0.0
        %1204 = vmatprep.subr.mxu0 0.0
        %1205 = vmatpush1.msra.mxu0 0.0
        %1206 = vmatprep.subr.mxu0 0.0
        %1207 = vmatpush1.msra.mxu0 0.0
        %1208 = vmatprep.subr.mxu0 0.0
        %1209 = vmatpush1.msra.mxu0 0.0
        %1210 = vmatprep.subr.mxu0 0.0
        %1211 = vmatpush1.msra.mxu0 0.0
        %1212 = vmatprep.subr.mxu0 0.0
        %1213 = vmatpush1.msra.mxu0 0.0
        %1214 = vmatprep.subr.mxu0 0.0
        %1215 = vmatpush1.msra.mxu0 0.0
        %1216 = vmatprep.subr.mxu0 0.0
        %1217 = vmatpush1.msra.mxu0 0.0
        %1218 = vmatprep.subr.mxu0 0.0
        %1219 = vmatpush1.msra.mxu0 0.0
        %1220 = vmatprep.subr.mxu0 0.0
        %1221 = vmatpush1.msra.mxu0 0.0
        %1222 = vmatprep.subr.mxu0 0.0
        %1223 = vmatpush1.msra.mxu0 0.0
        %1224 = vmatprep.mubr.f32.mxu0 0.0
        %1225 = vmatmul.mubr.f32.gmra.mrb[0].mxu0 %v1158
        %v1226 = vpop.f32.mrb[0].mxu0
        %v1227 = vadd.f32 0.0, %v1226
        %v1228 = vpop.f32.mrb[0].mxu0
        %1229 = vdwg.mxu0
        %v1230 = vadd.f32 %v1157, %v1227
        %v1231 = vxor.u32 %v1230, 2147483648
        %v1232 = vmul.f32 %v1231, 1.442695
        %v1233 = vpow.pop %v1232
        %v1234 = vadd.f32 %v1233, 1.0
        %v1235 = vrcp.pop %v1234
        %v1236 = vmul.f32 1.0, %v1235
        %v1237 = vtanh.pop %v1230
        %v1238 = vmul.f32 %v1236, %v1144
        %1240 = vrot.lane.b32.xlu0 %v1237, 64
        %v1241 = vpop.permute.xlu0 %1240
        %v1243 = vmul.f32 %v1236, %v1241
        %1245 = vrot.lane.b32.xlu0 %v1243, 32
        %v1246 = vpop.permute.xlu0 %1245
        %v1248 = vadd.f32 %v1238, %v1246
        %v1249 = vtanh.pop %v1248
        %1251 = vrot.lane.b32.xlu0 %v1249, 64
        %v1252 = vpop.permute.xlu0 %1251
        %v1254 = vmul.f32 %v1236, %v1252
        %1256 = vrot.lane.b32.xlu0 %v1254, 32
        %v1257 = vpop.permute.xlu0 %1256
        %1259 = vst.msk [vmem:[#allocation4 + $0x1] sm:$0x1] %vm1155, %v1257
        %v1260 = vld [vmem:[%s840 + $0x2] sm:$0x1]
        %v1261 = vsel %vm1044, %v1257, 0
        %1263 = vmatprep.subr.mxu0 0.0
        %1264 = vmatpush1.msra.mxu0 %v1039
        %1265 = vmatprep.subr.mxu0 0.0
        %1266 = vmatpush1.msra.mxu0 %v1040
        %1267 = vmatprep.subr.mxu0 0.0
        %1268 = vmatpush1.msra.mxu0 %v1041
        %1269 = vmatprep.subr.mxu0 0.0
        %1270 = vmatpush1.msra.mxu0 %v1042
        %1271 = vmatprep.subr.mxu0 0.0
        %1272 = vmatpush1.msra.mxu0 0.0
        %1273 = vmatprep.subr.mxu0 0.0
        %1274 = vmatpush1.msra.mxu0 0.0
        %1275 = vmatprep.subr.mxu0 0.0
        %1276 = vmatpush1.msra.mxu0 0.0
        %1277 = vmatprep.subr.mxu0 0.0
        %1278 = vmatpush1.msra.mxu0 0.0
        %1279 = vmatprep.subr.mxu0 0.0
        %1280 = vmatpush1.msra.mxu0 0.0
        %1281 = vmatprep.subr.mxu0 0.0
        %1282 = vmatpush1.msra.mxu0 0.0
        %1283 = vmatprep.subr.mxu0 0.0
        %1284 = vmatpush1.msra.mxu0 0.0
        %1285 = vmatprep.subr.mxu0 0.0
        %1286 = vmatpush1.msra.mxu0 0.0
        %1287 = vmatprep.subr.mxu0 0.0
        %1288 = vmatpush1.msra.mxu0 0.0
        %1289 = vmatprep.subr.mxu0 0.0
        %1290 = vmatpush1.msra.mxu0 0.0
        %1291 = vmatprep.subr.mxu0 0.0
        %1292 = vmatpush1.msra.mxu0 0.0
        %1293 = vmatprep.subr.mxu0 0.0
        %1294 = vmatpush1.msra.mxu0 0.0
        %1295 = vmatprep.subr.mxu0 0.0
        %1296 = vmatpush1.msra.mxu0 0.0
        %1297 = vmatprep.subr.mxu0 0.0
        %1298 = vmatpush1.msra.mxu0 0.0
        %1299 = vmatprep.subr.mxu0 0.0
        %1300 = vmatpush1.msra.mxu0 0.0
        %1301 = vmatprep.subr.mxu0 0.0
        %1302 = vmatpush1.msra.mxu0 0.0
        %1303 = vmatprep.subr.mxu0 0.0
        %1304 = vmatpush1.msra.mxu0 0.0
        %1305 = vmatprep.subr.mxu0 0.0
        %1306 = vmatpush1.msra.mxu0 0.0
        %1307 = vmatprep.subr.mxu0 0.0
        %1308 = vmatpush1.msra.mxu0 0.0
        %1309 = vmatprep.subr.mxu0 0.0
        %1310 = vmatpush1.msra.mxu0 0.0
        %1311 = vmatprep.subr.mxu0 0.0
        %1312 = vmatpush1.msra.mxu0 0.0
        %1313 = vmatprep.subr.mxu0 0.0
        %1314 = vmatpush1.msra.mxu0 0.0
        %1315 = vmatprep.subr.mxu0 0.0
        %1316 = vmatpush1.msra.mxu0 0.0
        %1317 = vmatprep.subr.mxu0 0.0
        %1318 = vmatpush1.msra.mxu0 0.0
        %1319 = vmatprep.subr.mxu0 0.0
        %1320 = vmatpush1.msra.mxu0 0.0
        %1321 = vmatprep.subr.mxu0 0.0
        %1322 = vmatpush1.msra.mxu0 0.0
        %1323 = vmatprep.subr.mxu0 0.0
        %1324 = vmatpush1.msra.mxu0 0.0
        %1325 = vmatprep.subr.mxu0 0.0
        %1326 = vmatpush1.msra.mxu0 0.0
        %1327 = vmatprep.mubr.f32.mxu0 0.0
        %1328 = vmatmul.mubr.f32.gmra.mrb[0].mxu0 %v1261
        %v1329 = vpop.f32.mrb[0].mxu0
        %v1330 = vadd.f32 0.0, %v1329
        %v1331 = vpop.f32.mrb[0].mxu0
        %1332 = vdwg.mxu0
        %v1333 = vadd.f32 %v1260, %v1330
        %v1334 = vxor.u32 %v1333, 2147483648
        %v1335 = vmul.f32 %v1334, 1.442695
        %v1336 = vpow.pop %v1335
        %v1337 = vadd.f32 %v1336, 1.0
        %v1338 = vrcp.pop %v1337
        %v1339 = vmul.f32 1.0, %v1338
        %v1340 = vtanh.pop %v1333
        %v1341 = vmul.f32 %v1339, %v1248
        %1343 = vrot.lane.b32.xlu0 %v1340, 64
        %v1344 = vpop.permute.xlu0 %1343
        %v1346 = vmul.f32 %v1339, %v1344
        %1348 = vrot.lane.b32.xlu0 %v1346, 32
        %v1349 = vpop.permute.xlu0 %1348
        %v1351 = vadd.f32 %v1341, %v1349
        %v1352 = vtanh.pop %v1351
        %1354 = vrot.lane.b32.xlu0 %v1352, 64
        %v1355 = vpop.permute.xlu0 %1354
        %v1357 = vmul.f32 %v1339, %v1355
        %1359 = vrot.lane.b32.xlu0 %v1357, 32
        %v1360 = vpop.permute.xlu0 %1359
        %1362 = vst.msk [vmem:[#allocation4 + $0x2] sm:$0x1] %vm1155, %v1360
        %v1363 = vld [vmem:[%s840 + $0x3] sm:$0x1]
        %v1364 = vsel %vm1044, %v1360, 0
        %1366 = vmatprep.subr.mxu0 0.0
        %1367 = vmatpush1.msra.mxu0 %v1039
        %1368 = vmatprep.subr.mxu0 0.0
        %1369 = vmatpush1.msra.mxu0 %v1040
        %1370 = vmatprep.subr.mxu0 0.0
        %1371 = vmatpush1.msra.mxu0 %v1041
        %1372 = vmatprep.subr.mxu0 0.0
        %1373 = vmatpush1.msra.mxu0 %v1042
        %1374 = vmatprep.subr.mxu0 0.0
        %1375 = vmatpush1.msra.mxu0 0.0
        %1376 = vmatprep.subr.mxu0 0.0
        %1377 = vmatpush1.msra.mxu0 0.0
        %1378 = vmatprep.subr.mxu0 0.0
        %1379 = vmatpush1.msra.mxu0 0.0
        %1380 = vmatprep.subr.mxu0 0.0
        %1381 = vmatpush1.msra.mxu0 0.0
        %1382 = vmatprep.subr.mxu0 0.0
        %1383 = vmatpush1.msra.mxu0 0.0
        %1384 = vmatprep.subr.mxu0 0.0
        %1385 = vmatpush1.msra.mxu0 0.0
        %1386 = vmatprep.subr.mxu0 0.0
        %1387 = vmatpush1.msra.mxu0 0.0
        %1388 = vmatprep.subr.mxu0 0.0
        %1389 = vmatpush1.msra.mxu0 0.0
        %1390 = vmatprep.subr.mxu0 0.0
        %1391 = vmatpush1.msra.mxu0 0.0
        %1392 = vmatprep.subr.mxu0 0.0
        %1393 = vmatpush1.msra.mxu0 0.0
        %1394 = vmatprep.subr.mxu0 0.0
        %1395 = vmatpush1.msra.mxu0 0.0
        %1396 = vmatprep.subr.mxu0 0.0
        %1397 = vmatpush1.msra.mxu0 0.0
        %1398 = vmatprep.subr.mxu0 0.0
        %1399 = vmatpush1.msra.mxu0 0.0
        %1400 = vmatprep.subr.mxu0 0.0
        %1401 = vmatpush1.msra.mxu0 0.0
        %1402 = vmatprep.subr.mxu0 0.0
        %1403 = vmatpush1.msra.mxu0 0.0
        %1404 = vmatprep.subr.mxu0 0.0
        %1405 = vmatpush1.msra.mxu0 0.0
        %1406 = vmatprep.subr.mxu0 0.0
        %1407 = vmatpush1.msra.mxu0 0.0
        %1408 = vmatprep.subr.mxu0 0.0
        %1409 = vmatpush1.msra.mxu0 0.0
        %1410 = vmatprep.subr.mxu0 0.0
        %1411 = vmatpush1.msra.mxu0 0.0
        %1412 = vmatprep.subr.mxu0 0.0
        %1413 = vmatpush1.msra.mxu0 0.0
        %1414 = vmatprep.subr.mxu0 0.0
        %1415 = vmatpush1.msra.mxu0 0.0
        %1416 = vmatprep.subr.mxu0 0.0
        %1417 = vmatpush1.msra.mxu0 0.0
        %1418 = vmatprep.subr.mxu0 0.0
        %1419 = vmatpush1.msra.mxu0 0.0
        %1420 = vmatprep.subr.mxu0 0.0
        %1421 = vmatpush1.msra.mxu0 0.0
        %1422 = vmatprep.subr.mxu0 0.0
        %1423 = vmatpush1.msra.mxu0 0.0
        %1424 = vmatprep.subr.mxu0 0.0
        %1425 = vmatpush1.msra.mxu0 0.0
        %1426 = vmatprep.subr.mxu0 0.0
        %1427 = vmatpush1.msra.mxu0 0.0
        %1428 = vmatprep.subr.mxu0 0.0
        %1429 = vmatpush1.msra.mxu0 0.0
        %1430 = vmatprep.mubr.f32.mxu0 0.0
        %1431 = vmatmul.mubr.f32.gmra.mrb[0].mxu0 %v1364
        %v1432 = vpop.f32.mrb[0].mxu0
        %v1433 = vadd.f32 0.0, %v1432
        %v1434 = vpop.f32.mrb[0].mxu0
        %1435 = vdwg.mxu0
        %v1436 = vadd.f32 %v1363, %v1433
        %v1437 = vxor.u32 %v1436, 2147483648
        %v1438 = vmul.f32 %v1437, 1.442695
        %v1439 = vpow.pop %v1438
        %v1440 = vadd.f32 %v1439, 1.0
        %v1441 = vrcp.pop %v1440
        %v1442 = vmul.f32 1.0, %v1441
        %v1443 = vtanh.pop %v1436
        %v1444 = vmul.f32 %v1442, %v1351
        %1446 = vrot.lane.b32.xlu0 %v1443, 64
        %v1447 = vpop.permute.xlu0 %1446
        %v1449 = vmul.f32 %v1442, %v1447
        %1451 = vrot.lane.b32.xlu0 %v1449, 32
        %v1452 = vpop.permute.xlu0 %1451
        %v1454 = vadd.f32 %v1444, %v1452
        %v1455 = vtanh.pop %v1454
        %1457 = vrot.lane.b32.xlu0 %v1455, 64
        %v1458 = vpop.permute.xlu0 %1457
        %v1460 = vmul.f32 %v1442, %v1458
        %1462 = vrot.lane.b32.xlu0 %v1460, 32
        %v1463 = vpop.permute.xlu0 %1462
        %1465 = vst.msk [vmem:[#allocation4 + $0x3] sm:$0x1] %vm1155, %v1463
        %v1466 = vld [vmem:[%s840 + $0x4] sm:$0x1]
        %v1467 = vsel %vm1044, %v1463, 0
        %1469 = vmatprep.subr.mxu0 0.0
        %1470 = vmatpush1.msra.mxu0 %v1039
        %1471 = vmatprep.subr.mxu0 0.0
        %1472 = vmatpush1.msra.mxu0 %v1040
        %1473 = vmatprep.subr.mxu0 0.0
        %1474 = vmatpush1.msra.mxu0 %v1041
        %1475 = vmatprep.subr.mxu0 0.0
        %1476 = vmatpush1.msra.mxu0 %v1042
        %1477 = vmatprep.subr.mxu0 0.0
        %1478 = vmatpush1.msra.mxu0 0.0
        %1479 = vmatprep.subr.mxu0 0.0
        %1480 = vmatpush1.msra.mxu0 0.0
        %1481 = vmatprep.subr.mxu0 0.0
        %1482 = vmatpush1.msra.mxu0 0.0
        %1483 = vmatprep.subr.mxu0 0.0
        %1484 = vmatpush1.msra.mxu0 0.0
        %1485 = vmatprep.subr.mxu0 0.0
        %1486 = vmatpush1.msra.mxu0 0.0
        %1487 = vmatprep.subr.mxu0 0.0
        %1488 = vmatpush1.msra.mxu0 0.0
        %1489 = vmatprep.subr.mxu0 0.0
        %1490 = vmatpush1.msra.mxu0 0.0
        %1491 = vmatprep.subr.mxu0 0.0
        %1492 = vmatpush1.msra.mxu0 0.0
        %1493 = vmatprep.subr.mxu0 0.0
        %1494 = vmatpush1.msra.mxu0 0.0
        %1495 = vmatprep.subr.mxu0 0.0
        %1496 = vmatpush1.msra.mxu0 0.0
        %1497 = vmatprep.subr.mxu0 0.0
        %1498 = vmatpush1.msra.mxu0 0.0
        %1499 = vmatprep.subr.mxu0 0.0
        %1500 = vmatpush1.msra.mxu0 0.0
        %1501 = vmatprep.subr.mxu0 0.0
        %1502 = vmatpush1.msra.mxu0 0.0
        %1503 = vmatprep.subr.mxu0 0.0
        %1504 = vmatpush1.msra.mxu0 0.0
        %1505 = vmatprep.subr.mxu0 0.0
        %1506 = vmatpush1.msra.mxu0 0.0
        %1507 = vmatprep.subr.mxu0 0.0
        %1508 = vmatpush1.msra.mxu0 0.0
        %1509 = vmatprep.subr.mxu0 0.0
        %1510 = vmatpush1.msra.mxu0 0.0
        %1511 = vmatprep.subr.mxu0 0.0
        %1512 = vmatpush1.msra.mxu0 0.0
        %1513 = vmatprep.subr.mxu0 0.0
        %1514 = vmatpush1.msra.mxu0 0.0
        %1515 = vmatprep.subr.mxu0 0.0
        %1516 = vmatpush1.msra.mxu0 0.0
        %1517 = vmatprep.subr.mxu0 0.0
        %1518 = vmatpush1.msra.mxu0 0.0
        %1519 = vmatprep.subr.mxu0 0.0
        %1520 = vmatpush1.msra.mxu0 0.0
        %1521 = vmatprep.subr.mxu0 0.0
        %1522 = vmatpush1.msra.mxu0 0.0
        %1523 = vmatprep.subr.mxu0 0.0
        %1524 = vmatpush1.msra.mxu0 0.0
        %1525 = vmatprep.subr.mxu0 0.0
        %1526 = vmatpush1.msra.mxu0 0.0
        %1527 = vmatprep.subr.mxu0 0.0
        %1528 = vmatpush1.msra.mxu0 0.0
        %1529 = vmatprep.subr.mxu0 0.0
        %1530 = vmatpush1.msra.mxu0 0.0
        %1531 = vmatprep.subr.mxu0 0.0
        %1532 = vmatpush1.msra.mxu0 0.0
        %1533 = vmatprep.mubr.f32.mxu0 0.0
        %1534 = vmatmul.mubr.f32.gmra.mrb[0].mxu0 %v1467
        %v1535 = vpop.f32.mrb[0].mxu0
        %v1536 = vadd.f32 0.0, %v1535
        %v1537 = vpop.f32.mrb[0].mxu0
        %1538 = vdwg.mxu0
        %v1539 = vadd.f32 %v1466, %v1536
        %v1540 = vxor.u32 %v1539, 2147483648
        %v1541 = vmul.f32 %v1540, 1.442695
        %v1542 = vpow.pop %v1541
        %v1543 = vadd.f32 %v1542, 1.0
        %v1544 = vrcp.pop %v1543
        %v1545 = vmul.f32 1.0, %v1544
        %v1546 = vtanh.pop %v1539
        %v1547 = vmul.f32 %v1545, %v1454
        %1549 = vrot.lane.b32.xlu0 %v1546, 64
        %v1550 = vpop.permute.xlu0 %1549
        %v1552 = vmul.f32 %v1545, %v1550
        %1554 = vrot.lane.b32.xlu0 %v1552, 32
        %v1555 = vpop.permute.xlu0 %1554
        %v1557 = vadd.f32 %v1547, %v1555
        %v1558 = vtanh.pop %v1557
        %1560 = vrot.lane.b32.xlu0 %v1558, 64
        %v1561 = vpop.permute.xlu0 %1560
        %v1563 = vmul.f32 %v1545, %v1561
        %1565 = vrot.lane.b32.xlu0 %v1563, 32
        %v1566 = vpop.permute.xlu0 %1565
        %1568 = vst.msk [vmem:[#allocation4 + $0x4] sm:$0x1] %vm1155, %v1566
        %v1569 = vld [vmem:[%s840 + $0x5] sm:$0x1]
        %v1570 = vsel %vm1044, %v1566, 0
        %1572 = vmatprep.subr.mxu0 0.0
        %1573 = vmatpush1.msra.mxu0 %v1039
        %1574 = vmatprep.subr.mxu0 0.0
        %1575 = vmatpush1.msra.mxu0 %v1040
        %1576 = vmatprep.subr.mxu0 0.0
        %1577 = vmatpush1.msra.mxu0 %v1041
        %1578 = vmatprep.subr.mxu0 0.0
        %1579 = vmatpush1.msra.mxu0 %v1042
        %1580 = vmatprep.subr.mxu0 0.0
        %1581 = vmatpush1.msra.mxu0 0.0
        %1582 = vmatprep.subr.mxu0 0.0
        %1583 = vmatpush1.msra.mxu0 0.0
        %1584 = vmatprep.subr.mxu0 0.0
        %1585 = vmatpush1.msra.mxu0 0.0
        %1586 = vmatprep.subr.mxu0 0.0
        %1587 = vmatpush1.msra.mxu0 0.0
        %1588 = vmatprep.subr.mxu0 0.0
        %1589 = vmatpush1.msra.mxu0 0.0
        %1590 = vmatprep.subr.mxu0 0.0
        %1591 = vmatpush1.msra.mxu0 0.0
        %1592 = vmatprep.subr.mxu0 0.0
        %1593 = vmatpush1.msra.mxu0 0.0
        %1594 = vmatprep.subr.mxu0 0.0
        %1595 = vmatpush1.msra.mxu0 0.0
        %1596 = vmatprep.subr.mxu0 0.0
        %1597 = vmatpush1.msra.mxu0 0.0
        %1598 = vmatprep.subr.mxu0 0.0
        %1599 = vmatpush1.msra.mxu0 0.0
        %1600 = vmatprep.subr.mxu0 0.0
        %1601 = vmatpush1.msra.mxu0 0.0
        %1602 = vmatprep.subr.mxu0 0.0
        %1603 = vmatpush1.msra.mxu0 0.0
        %1604 = vmatprep.subr.mxu0 0.0
        %1605 = vmatpush1.msra.mxu0 0.0
        %1606 = vmatprep.subr.mxu0 0.0
        %1607 = vmatpush1.msra.mxu0 0.0
        %1608 = vmatprep.subr.mxu0 0.0
        %1609 = vmatpush1.msra.mxu0 0.0
        %1610 = vmatprep.subr.mxu0 0.0
        %1611 = vmatpush1.msra.mxu0 0.0
        %1612 = vmatprep.subr.mxu0 0.0
        %1613 = vmatpush1.msra.mxu0 0.0
        %1614 = vmatprep.subr.mxu0 0.0
        %1615 = vmatpush1.msra.mxu0 0.0
        %1616 = vmatprep.subr.mxu0 0.0
        %1617 = vmatpush1.msra.mxu0 0.0
        %1618 = vmatprep.subr.mxu0 0.0
        %1619 = vmatpush1.msra.mxu0 0.0
        %1620 = vmatprep.subr.mxu0 0.0
        %1621 = vmatpush1.msra.mxu0 0.0
        %1622 = vmatprep.subr.mxu0 0.0
        %1623 = vmatpush1.msra.mxu0 0.0
        %1624 = vmatprep.subr.mxu0 0.0
        %1625 = vmatpush1.msra.mxu0 0.0
        %1626 = vmatprep.subr.mxu0 0.0
        %1627 = vmatpush1.msra.mxu0 0.0
        %1628 = vmatprep.subr.mxu0 0.0
        %1629 = vmatpush1.msra.mxu0 0.0
        %1630 = vmatprep.subr.mxu0 0.0
        %1631 = vmatpush1.msra.mxu0 0.0
        %1632 = vmatprep.subr.mxu0 0.0
        %1633 = vmatpush1.msra.mxu0 0.0
        %1634 = vmatprep.subr.mxu0 0.0
        %1635 = vmatpush1.msra.mxu0 0.0
        %1636 = vmatprep.mubr.f32.mxu0 0.0
        %1637 = vmatmul.mubr.f32.gmra.mrb[0].mxu0 %v1570
        %v1638 = vpop.f32.mrb[0].mxu0
        %v1639 = vadd.f32 0.0, %v1638
        %v1640 = vpop.f32.mrb[0].mxu0
        %1641 = vdwg.mxu0
        %v1642 = vadd.f32 %v1569, %v1639
        %v1643 = vxor.u32 %v1642, 2147483648
        %v1644 = vmul.f32 %v1643, 1.442695
        %v1645 = vpow.pop %v1644
        %v1646 = vadd.f32 %v1645, 1.0
        %v1647 = vrcp.pop %v1646
        %v1648 = vmul.f32 1.0, %v1647
        %v1649 = vtanh.pop %v1642
        %v1650 = vmul.f32 %v1648, %v1557
        %1652 = vrot.lane.b32.xlu0 %v1649, 64
        %v1653 = vpop.permute.xlu0 %1652
        %v1655 = vmul.f32 %v1648, %v1653
        %1657 = vrot.lane.b32.xlu0 %v1655, 32
        %v1658 = vpop.permute.xlu0 %1657
        %v1660 = vadd.f32 %v1650, %v1658
        %v1661 = vtanh.pop %v1660
        %1663 = vrot.lane.b32.xlu0 %v1661, 64
        %v1664 = vpop.permute.xlu0 %1663
        %v1666 = vmul.f32 %v1648, %v1664
        %1668 = vrot.lane.b32.xlu0 %v1666, 32
        %v1669 = vpop.permute.xlu0 %1668
        %1671 = vst.msk [vmem:[#allocation4 + $0x5] sm:$0x1] %vm1155, %v1669
        %v1672 = vld [vmem:[%s840 + $0x6] sm:$0x1]
        %v1673 = vsel %vm1044, %v1669, 0
        %1675 = vmatprep.subr.mxu0 0.0
        %1676 = vmatpush1.msra.mxu0 %v1039
        %1677 = vmatprep.subr.mxu0 0.0
        %1678 = vmatpush1.msra.mxu0 %v1040
        %1679 = vmatprep.subr.mxu0 0.0
        %1680 = vmatpush1.msra.mxu0 %v1041
        %1681 = vmatprep.subr.mxu0 0.0
        %1682 = vmatpush1.msra.mxu0 %v1042
        %1683 = vmatprep.subr.mxu0 0.0
        %1684 = vmatpush1.msra.mxu0 0.0
        %1685 = vmatprep.subr.mxu0 0.0
        %1686 = vmatpush1.msra.mxu0 0.0
        %1687 = vmatprep.subr.mxu0 0.0
        %1688 = vmatpush1.msra.mxu0 0.0
        %1689 = vmatprep.subr.mxu0 0.0
        %1690 = vmatpush1.msra.mxu0 0.0
        %1691 = vmatprep.subr.mxu0 0.0
        %1692 = vmatpush1.msra.mxu0 0.0
        %1693 = vmatprep.subr.mxu0 0.0
        %1694 = vmatpush1.msra.mxu0 0.0
        %1695 = vmatprep.subr.mxu0 0.0
        %1696 = vmatpush1.msra.mxu0 0.0
        %1697 = vmatprep.subr.mxu0 0.0
        %1698 = vmatpush1.msra.mxu0 0.0
        %1699 = vmatprep.subr.mxu0 0.0
        %1700 = vmatpush1.msra.mxu0 0.0
        %1701 = vmatprep.subr.mxu0 0.0
        %1702 = vmatpush1.msra.mxu0 0.0
        %1703 = vmatprep.subr.mxu0 0.0
        %1704 = vmatpush1.msra.mxu0 0.0
        %1705 = vmatprep.subr.mxu0 0.0
        %1706 = vmatpush1.msra.mxu0 0.0
        %1707 = vmatprep.subr.mxu0 0.0
        %1708 = vmatpush1.msra.mxu0 0.0
        %1709 = vmatprep.subr.mxu0 0.0
        %1710 = vmatpush1.msra.mxu0 0.0
        %1711 = vmatprep.subr.mxu0 0.0
        %1712 = vmatpush1.msra.mxu0 0.0
        %1713 = vmatprep.subr.mxu0 0.0
        %1714 = vmatpush1.msra.mxu0 0.0
        %1715 = vmatprep.subr.mxu0 0.0
        %1716 = vmatpush1.msra.mxu0 0.0
        %1717 = vmatprep.subr.mxu0 0.0
        %1718 = vmatpush1.msra.mxu0 0.0
        %1719 = vmatprep.subr.mxu0 0.0
        %1720 = vmatpush1.msra.mxu0 0.0
        %1721 = vmatprep.subr.mxu0 0.0
        %1722 = vmatpush1.msra.mxu0 0.0
        %1723 = vmatprep.subr.mxu0 0.0
        %1724 = vmatpush1.msra.mxu0 0.0
        %1725 = vmatprep.subr.mxu0 0.0
        %1726 = vmatpush1.msra.mxu0 0.0
        %1727 = vmatprep.subr.mxu0 0.0
        %1728 = vmatpush1.msra.mxu0 0.0
        %1729 = vmatprep.subr.mxu0 0.0
        %1730 = vmatpush1.msra.mxu0 0.0
        %1731 = vmatprep.subr.mxu0 0.0
        %1732 = vmatpush1.msra.mxu0 0.0
        %1733 = vmatprep.subr.mxu0 0.0
        %1734 = vmatpush1.msra.mxu0 0.0
        %1735 = vmatprep.subr.mxu0 0.0
        %1736 = vmatpush1.msra.mxu0 0.0
        %1737 = vmatprep.subr.mxu0 0.0
        %1738 = vmatpush1.msra.mxu0 0.0
        %1739 = vmatprep.mubr.f32.mxu0 0.0
        %1740 = vmatmul.mubr.f32.gmra.mrb[0].mxu0 %v1673
        %v1741 = vpop.f32.mrb[0].mxu0
        %v1742 = vadd.f32 0.0, %v1741
        %v1743 = vpop.f32.mrb[0].mxu0
        %1744 = vdwg.mxu0
        %v1745 = vadd.f32 %v1672, %v1742
        %v1746 = vxor.u32 %v1745, 2147483648
        %v1747 = vmul.f32 %v1746, 1.442695
        %v1748 = vpow.pop %v1747
        %v1749 = vadd.f32 %v1748, 1.0
        %v1750 = vrcp.pop %v1749
        %v1751 = vmul.f32 1.0, %v1750
        %v1752 = vtanh.pop %v1745
        %v1753 = vmul.f32 %v1751, %v1660
        %1755 = vrot.lane.b32.xlu0 %v1752, 64
        %v1756 = vpop.permute.xlu0 %1755
        %v1758 = vmul.f32 %v1751, %v1756
        %1760 = vrot.lane.b32.xlu0 %v1758, 32
        %v1761 = vpop.permute.xlu0 %1760
        %v1763 = vadd.f32 %v1753, %v1761
        %v1764 = vtanh.pop %v1763
        %1766 = vrot.lane.b32.xlu0 %v1764, 64
        %v1767 = vpop.permute.xlu0 %1766
        %v1769 = vmul.f32 %v1751, %v1767
        %1771 = vrot.lane.b32.xlu0 %v1769, 32
        %v1772 = vpop.permute.xlu0 %1771
        %1774 = vst.msk [vmem:[#allocation4 + $0x6] sm:$0x1] %vm1155, %v1772
        %v1775 = vld [vmem:[%s840 + $0x7] sm:$0x1]
        %v1776 = vsel %vm1044, %v1772, 0
        %1778 = vmatprep.subr.mxu0 0.0
        %1779 = vmatpush1.msra.mxu0 %v1039
        %1780 = vmatprep.subr.mxu0 0.0
        %1781 = vmatpush1.msra.mxu0 %v1040
        %1782 = vmatprep.subr.mxu0 0.0
        %1783 = vmatpush1.msra.mxu0 %v1041
        %1784 = vmatprep.subr.mxu0 0.0
        %1785 = vmatpush1.msra.mxu0 %v1042
        %1786 = vmatprep.subr.mxu0 0.0
        %1787 = vmatpush1.msra.mxu0 0.0
        %1788 = vmatprep.subr.mxu0 0.0
        %1789 = vmatpush1.msra.mxu0 0.0
        %1790 = vmatprep.subr.mxu0 0.0
        %1791 = vmatpush1.msra.mxu0 0.0
        %1792 = vmatprep.subr.mxu0 0.0
        %1793 = vmatpush1.msra.mxu0 0.0
        %1794 = vmatprep.subr.mxu0 0.0
        %1795 = vmatpush1.msra.mxu0 0.0
        %1796 = vmatprep.subr.mxu0 0.0
        %1797 = vmatpush1.msra.mxu0 0.0
        %1798 = vmatprep.subr.mxu0 0.0
        %1799 = vmatpush1.msra.mxu0 0.0
        %1800 = vmatprep.subr.mxu0 0.0
        %1801 = vmatpush1.msra.mxu0 0.0
        %1802 = vmatprep.subr.mxu0 0.0
        %1803 = vmatpush1.msra.mxu0 0.0
        %1804 = vmatprep.subr.mxu0 0.0
        %1805 = vmatpush1.msra.mxu0 0.0
        %1806 = vmatprep.subr.mxu0 0.0
        %1807 = vmatpush1.msra.mxu0 0.0
        %1808 = vmatprep.subr.mxu0 0.0
        %1809 = vmatpush1.msra.mxu0 0.0
        %1810 = vmatprep.subr.mxu0 0.0
        %1811 = vmatpush1.msra.mxu0 0.0
        %1812 = vmatprep.subr.mxu0 0.0
        %1813 = vmatpush1.msra.mxu0 0.0
        %1814 = vmatprep.subr.mxu0 0.0
        %1815 = vmatpush1.msra.mxu0 0.0
        %1816 = vmatprep.subr.mxu0 0.0
        %1817 = vmatpush1.msra.mxu0 0.0
        %1818 = vmatprep.subr.mxu0 0.0
        %1819 = vmatpush1.msra.mxu0 0.0
        %1820 = vmatprep.subr.mxu0 0.0
        %1821 = vmatpush1.msra.mxu0 0.0
        %1822 = vmatprep.subr.mxu0 0.0
        %1823 = vmatpush1.msra.mxu0 0.0
        %1824 = vmatprep.subr.mxu0 0.0
        %1825 = vmatpush1.msra.mxu0 0.0
        %1826 = vmatprep.subr.mxu0 0.0
        %1827 = vmatpush1.msra.mxu0 0.0
        %1828 = vmatprep.subr.mxu0 0.0
        %1829 = vmatpush1.msra.mxu0 0.0
        %1830 = vmatprep.subr.mxu0 0.0
        %1831 = vmatpush1.msra.mxu0 0.0
        %1832 = vmatprep.subr.mxu0 0.0
        %1833 = vmatpush1.msra.mxu0 0.0
        %1834 = vmatprep.subr.mxu0 0.0
        %1835 = vmatpush1.msra.mxu0 0.0
        %1836 = vmatprep.subr.mxu0 0.0
        %1837 = vmatpush1.msra.mxu0 0.0
        %1838 = vmatprep.subr.mxu0 0.0
        %1839 = vmatpush1.msra.mxu0 0.0
        %1840 = vmatprep.subr.mxu0 0.0
        %1841 = vmatpush1.msra.mxu0 0.0
        %1842 = vmatprep.mubr.f32.mxu0 0.0
        %1843 = vmatmul.mubr.f32.gmra.mrb[0].mxu0 %v1776
        %v1844 = vpop.f32.mrb[0].mxu0
        %v1845 = vadd.f32 0.0, %v1844
        %v1846 = vpop.f32.mrb[0].mxu0
        %1847 = vdwg.mxu0
        %v1848 = vadd.f32 %v1775, %v1845
        %v1849 = vxor.u32 %v1848, 2147483648
        %v1850 = vmul.f32 %v1849, 1.442695
        %v1851 = vpow.pop %v1850
        %v1852 = vadd.f32 %v1851, 1.0
        %v1853 = vrcp.pop %v1852
        %v1854 = vmul.f32 1.0, %v1853
        %v1855 = vtanh.pop %v1848
        %v1856 = vmul.f32 %v1854, %v1763
        %1858 = vrot.lane.b32.xlu0 %v1855, 64
        %v1859 = vpop.permute.xlu0 %1858
        %v1861 = vmul.f32 %v1854, %v1859
        %1863 = vrot.lane.b32.xlu0 %v1861, 32
        %v1864 = vpop.permute.xlu0 %1863
        %v1866 = vadd.f32 %v1856, %v1864
        %v1867 = vtanh.pop %v1866
        %1869 = vrot.lane.b32.xlu0 %v1867, 64
        %v1870 = vpop.permute.xlu0 %1869
        %v1872 = vmul.f32 %v1854, %v1870
        %1874 = vrot.lane.b32.xlu0 %v1872, 32
        %v1875 = vpop.permute.xlu0 %1874
        %1877 = vst.msk [vmem:[#allocation4 + $0x7] sm:$0x1] %vm1155, %v1875
        %1878 = vst.msk [vmem:[#allocation2] sm:$0x1] %vm1155, %v1875
        %1880 = vrot.lane.b32.xlu0 %v1866, 96
        %v1881 = vpop.permute.xlu0 %1880
        %1883 = vst.msk [vmem:[#allocation3] sm:$0x1] %vm1155, %v1881
        %v1884 = vld [vmem:[#allocation4] sm:$0xff]
        %v1885 = vld [vmem:[%s869] sm:$0xff]
        %1887 = vset.pattern.permute.xlu0 0
        %1888 = vperm.xlu0 %1887, %v1885
        %v1889 = vpop.permute.xlu0 %1888
        %v1891 = vmul.f32 %v1884, %v1889
        %v1892 = vld [vmem:[#allocation17] sm:$0xff]
        %v1893 = vld [vmem:[#allocation17 + $0x8] sm:$0xff]
        %v1894 = vld [vmem:[#allocation17 + $0x10] sm:$0xff]
        %v1895 = vld [vmem:[#allocation17 + $0x18] sm:$0xff]
        %v1896 = vld [vmem:[#allocation18] sm:$0x1]
        %v1898 = vlaneseq
        %v1899 = vshrl.u32 %v1898, 7
        %v1900 = vsub.s32 0, %v1899
        %v1901 = vrot.slane %v1896, %v1900
        %v1904 = vsel %vm1044, %v1891, 0
        %1906 = vmatprep.subr.mxu0 0.0
        %1907 = vmatpush1.msra.mxu0 %v1892
        %1908 = vmatprep.subr.mxu0 0.0
        %1909 = vmatpush1.msra.mxu0 %v1893
        %1910 = vmatprep.subr.mxu0 0.0
        %1911 = vmatpush1.msra.mxu0 %v1894
        %1912 = vmatprep.subr.mxu0 0.0
        %1913 = vmatpush1.msra.mxu0 %v1895
        %1914 = vmatprep.subr.mxu0 0.0
        %1915 = vmatpush1.msra.mxu0 0.0
        %1916 = vmatprep.subr.mxu0 0.0
        %1917 = vmatpush1.msra.mxu0 0.0
        %1918 = vmatprep.subr.mxu0 0.0
        %1919 = vmatpush1.msra.mxu0 0.0
        %1920 = vmatprep.subr.mxu0 0.0
        %1921 = vmatpush1.msra.mxu0 0.0
        %1922 = vmatprep.subr.mxu0 0.0
        %1923 = vmatpush1.msra.mxu0 0.0
        %1924 = vmatprep.subr.mxu0 0.0
        %1925 = vmatpush1.msra.mxu0 0.0
        %1926 = vmatprep.subr.mxu0 0.0
        %1927 = vmatpush1.msra.mxu0 0.0
        %1928 = vmatprep.subr.mxu0 0.0
        %1929 = vmatpush1.msra.mxu0 0.0
        %1930 = vmatprep.subr.mxu0 0.0
        %1931 = vmatpush1.msra.mxu0 0.0
        %1932 = vmatprep.subr.mxu0 0.0
        %1933 = vmatpush1.msra.mxu0 0.0
        %1934 = vmatprep.subr.mxu0 0.0
        %1935 = vmatpush1.msra.mxu0 0.0
        %1936 = vmatprep.subr.mxu0 0.0
        %1937 = vmatpush1.msra.mxu0 0.0
        %1938 = vmatprep.subr.mxu0 0.0
        %1939 = vmatpush1.msra.mxu0 0.0
        %1940 = vmatprep.subr.mxu0 0.0
        %1941 = vmatpush1.msra.mxu0 0.0
        %1942 = vmatprep.subr.mxu0 0.0
        %1943 = vmatpush1.msra.mxu0 0.0
        %1944 = vmatprep.subr.mxu0 0.0
        %1945 = vmatpush1.msra.mxu0 0.0
        %1946 = vmatprep.subr.mxu0 0.0
        %1947 = vmatpush1.msra.mxu0 0.0
        %1948 = vmatprep.subr.mxu0 0.0
        %1949 = vmatpush1.msra.mxu0 0.0
        %1950 = vmatprep.subr.mxu0 0.0
        %1951 = vmatpush1.msra.mxu0 0.0
        %1952 = vmatprep.subr.mxu0 0.0
        %1953 = vmatpush1.msra.mxu0 0.0
        %1954 = vmatprep.subr.mxu0 0.0
        %1955 = vmatpush1.msra.mxu0 0.0
        %1956 = vmatprep.subr.mxu0 0.0
        %1957 = vmatpush1.msra.mxu0 0.0
        %1958 = vmatprep.subr.mxu0 0.0
        %1959 = vmatpush1.msra.mxu0 0.0
        %1960 = vmatprep.subr.mxu0 0.0
        %1961 = vmatpush1.msra.mxu0 0.0
        %1962 = vmatprep.subr.mxu0 0.0
        %1963 = vmatpush1.msra.mxu0 0.0
        %1964 = vmatprep.subr.mxu0 0.0
        %1965 = vmatpush1.msra.mxu0 0.0
        %1966 = vmatprep.subr.mxu0 0.0
        %1967 = vmatpush1.msra.mxu0 0.0
        %1968 = vmatprep.subr.mxu0 0.0
        %1969 = vmatpush1.msra.mxu0 0.0
        %1970 = vmatprep.mubr.f32.mxu0 0.0
        %1971 = vmatmul.mubr.f32.gmra.mrb[0].mxu0 %v1904
        %v1972 = vpop.f32.mrb[0].mxu0
        %v1973 = vadd.f32 %v1901, %v1972
        %v1974 = vpop.f32.mrb[0].mxu0
        %1975 = vdwg.mxu0
        %v1976 = vlaneseq
        %v1977 = vshrl.u32 %v1976, 7
        %v1978 = vsub.s32 0, %v1977
        %v1979 = vrot.slane %v1973, %v1978
        %1981 = vbcast.lane.b32.xlu0 %v1979, 256
        %v1982 = vpop.permute.xlu0 %1981
        %s1984 = sor.u32 256, 8
        %1985 = vbcast.lane.b32.xlu0 %v1979, %s1984
        %v1986 = vpop.permute.xlu0 %1985
        %v1987 = vlaneseq
        %v1988 = vshrl.u32 %v1987, 7
        %v1989 = vsub.s32 1, %v1988
        %v1990 = vrot.slane %v1973, %v1989
        %1992 = vbcast.lane.b32.xlu0 %v1990, 256
        %v1993 = vpop.permute.xlu0 %1992
        %s1995 = sor.u32 256, 8
        %1996 = vbcast.lane.b32.xlu0 %v1990, %s1995
        %v1997 = vpop.permute.xlu0 %1996
        %v1998 = vlaneseq
        %v1999 = vshrl.u32 %v1998, 7
        %v2000 = vsub.s32 2, %v1999
        %v2001 = vrot.slane %v1973, %v2000
        %2003 = vbcast.lane.b32.xlu0 %v2001, 256
        %v2004 = vpop.permute.xlu0 %2003
        %s2006 = sor.u32 256, 8
        %2007 = vbcast.lane.b32.xlu0 %v2001, %s2006
        %v2008 = vpop.permute.xlu0 %2007
        %v2009 = vlaneseq
        %v2010 = vshrl.u32 %v2009, 7
        %v2011 = vsub.s32 3, %v2010
        %v2012 = vrot.slane %v1973, %v2011
        %2014 = vbcast.lane.b32.xlu0 %v2012, 256
        %v2015 = vpop.permute.xlu0 %2014
        %s2017 = sor.u32 256, 8
        %2018 = vbcast.lane.b32.xlu0 %v2012, %s2017
        %v2019 = vpop.permute.xlu0 %2018
        %v2020 = vlaneseq
        %v2021 = vshrl.u32 %v2020, 7
        %v2022 = vsub.s32 4, %v2021
        %v2023 = vrot.slane %v1973, %v2022
        %2025 = vbcast.lane.b32.xlu0 %v2023, 256
        %v2026 = vpop.permute.xlu0 %2025
        %s2028 = sor.u32 256, 8
        %2029 = vbcast.lane.b32.xlu0 %v2023, %s2028
        %v2030 = vpop.permute.xlu0 %2029
        %v2031 = vlaneseq
        %v2032 = vshrl.u32 %v2031, 7
        %v2033 = vsub.s32 5, %v2032
        %v2034 = vrot.slane %v1973, %v2033
        %2036 = vbcast.lane.b32.xlu0 %v2034, 256
        %v2037 = vpop.permute.xlu0 %2036
        %s2039 = sor.u32 256, 8
        %2040 = vbcast.lane.b32.xlu0 %v2034, %s2039
        %v2041 = vpop.permute.xlu0 %2040
        %v2042 = vlaneseq
        %v2043 = vshrl.u32 %v2042, 7
        %v2044 = vsub.s32 6, %v2043
        %v2045 = vrot.slane %v1973, %v2044
        %2047 = vbcast.lane.b32.xlu0 %v2045, 256
        %v2048 = vpop.permute.xlu0 %2047
        %s2050 = sor.u32 256, 8
        %2051 = vbcast.lane.b32.xlu0 %v2045, %s2050
        %v2052 = vpop.permute.xlu0 %2051
        %v2053 = vlaneseq
        %v2054 = vshrl.u32 %v2053, 7
        %v2055 = vsub.s32 7, %v2054
        %v2056 = vrot.slane %v1973, %v2055
        %2058 = vbcast.lane.b32.xlu0 %v2056, 256
        %v2059 = vpop.permute.xlu0 %2058
        %s2061 = sor.u32 256, 8
        %2062 = vbcast.lane.b32.xlu0 %v2056, %s2061
        %v2063 = vpop.permute.xlu0 %2062
        %v2064 = vld [vmem:[%s896] sm:$0xff]
        %v2065 = vld [vmem:[%s896 + $0x8] sm:$0xff]
        %v2066 = vadd.f32 %v1982, %v2064
        %v2067 = vadd.f32 %v1986, %v2065
        %v2068 = vadd.f32 %v1993, %v2064
        %v2069 = vadd.f32 %v1997, %v2065
        %v2070 = vadd.f32 %v2004, %v2064
        %v2071 = vadd.f32 %v2008, %v2065
        %v2072 = vadd.f32 %v2015, %v2064
        %v2073 = vadd.f32 %v2019, %v2065
        %v2074 = vadd.f32 %v2026, %v2064
        %v2075 = vadd.f32 %v2030, %v2065
        %v2076 = vadd.f32 %v2037, %v2064
        %v2077 = vadd.f32 %v2041, %v2065
        %v2078 = vadd.f32 %v2048, %v2064
        %v2079 = vadd.f32 %v2052, %v2065
        %v2080 = vadd.f32 %v2059, %v2064
        %v2081 = vadd.f32 %v2063, %v2065
        %v2082 = vtanh.pop %v2066
        %v2083 = vtanh.pop %v2067
        %v2084 = vtanh.pop %v2068
        %v2085 = vtanh.pop %v2069
        %v2086 = vtanh.pop %v2070
        %v2087 = vtanh.pop %v2071
        %v2088 = vtanh.pop %v2072
        %v2089 = vtanh.pop %v2073
        %v2090 = vtanh.pop %v2074
        %v2091 = vtanh.pop %v2075
        %v2092 = vtanh.pop %v2076
        %v2093 = vtanh.pop %v2077
        %v2094 = vtanh.pop %v2078
        %v2095 = vtanh.pop %v2079
        %v2096 = vtanh.pop %v2080
        %v2097 = vtanh.pop %v2081
        %v2098 = vld [vmem:[#allocation20] sm:$0x1]
        %vm2099 = vcmask 130048
        %v2101 = vsel %vm2099, %v2098, 0
        %2103 = vmatprep.subr.mxu0 0.0
        %2104 = vmatpush1.msra.mxu0 %v2082
        %2105 = vmatprep.subr.mxu0 0.0
        %2106 = vmatpush1.msra.mxu0 %v2083
        %2107 = vmatprep.subr.mxu0 0.0
        %2108 = vmatpush1.msra.mxu0 0.0
        %2109 = vmatprep.subr.mxu0 0.0
        %2110 = vmatpush1.msra.mxu0 0.0
        %2111 = vmatprep.subr.mxu0 0.0
        %2112 = vmatpush1.msra.mxu0 0.0
        %2113 = vmatprep.subr.mxu0 0.0
        %2114 = vmatpush1.msra.mxu0 0.0
        %2115 = vmatprep.subr.mxu0 0.0
        %2116 = vmatpush1.msra.mxu0 0.0
        %2117 = vmatprep.subr.mxu0 0.0
        %2118 = vmatpush1.msra.mxu0 0.0
        %2119 = vmatprep.subr.mxu0 0.0
        %2120 = vmatpush1.msra.mxu0 0.0
        %2121 = vmatprep.subr.mxu0 0.0
        %2122 = vmatpush1.msra.mxu0 0.0
        %2123 = vmatprep.subr.mxu0 0.0
        %2124 = vmatpush1.msra.mxu0 0.0
        %2125 = vmatprep.subr.mxu0 0.0
        %2126 = vmatpush1.msra.mxu0 0.0
        %2127 = vmatprep.subr.mxu0 0.0
        %2128 = vmatpush1.msra.mxu0 0.0
        %2129 = vmatprep.subr.mxu0 0.0
        %2130 = vmatpush1.msra.mxu0 0.0
        %2131 = vmatprep.subr.mxu0 0.0
        %2132 = vmatpush1.msra.mxu0 0.0
        %2133 = vmatprep.subr.mxu0 0.0
        %2134 = vmatpush1.msra.mxu0 0.0
        %2135 = vmatprep.subr.mxu0 0.0
        %2136 = vmatpush1.msra.mxu0 0.0
        %2137 = vmatprep.subr.mxu0 0.0
        %2138 = vmatpush1.msra.mxu0 0.0
        %2139 = vmatprep.subr.mxu0 0.0
        %2140 = vmatpush1.msra.mxu0 0.0
        %2141 = vmatprep.subr.mxu0 0.0
        %2142 = vmatpush1.msra.mxu0 0.0
        %2143 = vmatprep.subr.mxu0 0.0
        %2144 = vmatpush1.msra.mxu0 0.0
        %2145 = vmatprep.subr.mxu0 0.0
        %2146 = vmatpush1.msra.mxu0 0.0
        %2147 = vmatprep.subr.mxu0 0.0
        %2148 = vmatpush1.msra.mxu0 0.0
        %2149 = vmatprep.subr.mxu0 0.0
        %2150 = vmatpush1.msra.mxu0 0.0
        %2151 = vmatprep.subr.mxu0 0.0
        %2152 = vmatpush1.msra.mxu0 0.0
        %2153 = vmatprep.subr.mxu0 0.0
        %2154 = vmatpush1.msra.mxu0 0.0
        %2155 = vmatprep.subr.mxu0 0.0
        %2156 = vmatpush1.msra.mxu0 0.0
        %2157 = vmatprep.subr.mxu0 0.0
        %2158 = vmatpush1.msra.mxu0 0.0
        %2159 = vmatprep.subr.mxu0 0.0
        %2160 = vmatpush1.msra.mxu0 0.0
        %2161 = vmatprep.subr.mxu0 0.0
        %2162 = vmatpush1.msra.mxu0 0.0
        %2163 = vmatprep.subr.mxu0 0.0
        %2164 = vmatpush1.msra.mxu0 0.0
        %2165 = vmatprep.subr.mxu0 0.0
        %2166 = vmatpush1.msra.mxu0 0.0
        %2167 = vmatprep.mubr.f32.mxu0 0.0
        %2168 = vmatmul.mubr.f32.gmra.mrb[0].mxu0 %v2101
        %v2169 = vpop.f32.mrb[0].mxu0
        %v2170 = vadd.f32 0.0, %v2169
        %v2171 = vpop.f32.mrb[0].mxu0
        %2172 = vdwg.mxu0
        %2173 = vmatprep.subr.mxu0 0.0
        %2174 = vmatpush1.msra.mxu0 %v2084
        %2175 = vmatprep.subr.mxu0 0.0
        %2176 = vmatpush1.msra.mxu0 %v2085
        %2177 = vmatprep.subr.mxu0 0.0
        %2178 = vmatpush1.msra.mxu0 0.0
        %2179 = vmatprep.subr.mxu0 0.0
        %2180 = vmatpush1.msra.mxu0 0.0
        %2181 = vmatprep.subr.mxu0 0.0
        %2182 = vmatpush1.msra.mxu0 0.0
        %2183 = vmatprep.subr.mxu0 0.0
        %2184 = vmatpush1.msra.mxu0 0.0
        %2185 = vmatprep.subr.mxu0 0.0
        %2186 = vmatpush1.msra.mxu0 0.0
        %2187 = vmatprep.subr.mxu0 0.0
        %2188 = vmatpush1.msra.mxu0 0.0
        %2189 = vmatprep.subr.mxu0 0.0
        %2190 = vmatpush1.msra.mxu0 0.0
        %2191 = vmatprep.subr.mxu0 0.0
        %2192 = vmatpush1.msra.mxu0 0.0
        %2193 = vmatprep.subr.mxu0 0.0
        %2194 = vmatpush1.msra.mxu0 0.0
        %2195 = vmatprep.subr.mxu0 0.0
        %2196 = vmatpush1.msra.mxu0 0.0
        %2197 = vmatprep.subr.mxu0 0.0
        %2198 = vmatpush1.msra.mxu0 0.0
        %2199 = vmatprep.subr.mxu0 0.0
        %2200 = vmatpush1.msra.mxu0 0.0
        %2201 = vmatprep.subr.mxu0 0.0
        %2202 = vmatpush1.msra.mxu0 0.0
        %2203 = vmatprep.subr.mxu0 0.0
        %2204 = vmatpush1.msra.mxu0 0.0
        %2205 = vmatprep.subr.mxu0 0.0
        %2206 = vmatpush1.msra.mxu0 0.0
        %2207 = vmatprep.subr.mxu0 0.0
        %2208 = vmatpush1.msra.mxu0 0.0
        %2209 = vmatprep.subr.mxu0 0.0
        %2210 = vmatpush1.msra.mxu0 0.0
        %2211 = vmatprep.subr.mxu0 0.0
        %2212 = vmatpush1.msra.mxu0 0.0
        %2213 = vmatprep.subr.mxu0 0.0
        %2214 = vmatpush1.msra.mxu0 0.0
        %2215 = vmatprep.subr.mxu0 0.0
        %2216 = vmatpush1.msra.mxu0 0.0
        %2217 = vmatprep.subr.mxu0 0.0
        %2218 = vmatpush1.msra.mxu0 0.0
        %2219 = vmatprep.subr.mxu0 0.0
        %2220 = vmatpush1.msra.mxu0 0.0
        %2221 = vmatprep.subr.mxu0 0.0
        %2222 = vmatpush1.msra.mxu0 0.0
        %2223 = vmatprep.subr.mxu0 0.0
        %2224 = vmatpush1.msra.mxu0 0.0
        %2225 = vmatprep.subr.mxu0 0.0
        %2226 = vmatpush1.msra.mxu0 0.0
        %2227 = vmatprep.subr.mxu0 0.0
        %2228 = vmatpush1.msra.mxu0 0.0
        %2229 = vmatprep.subr.mxu0 0.0
        %2230 = vmatpush1.msra.mxu0 0.0
        %2231 = vmatprep.subr.mxu0 0.0
        %2232 = vmatpush1.msra.mxu0 0.0
        %2233 = vmatprep.subr.mxu0 0.0
        %2234 = vmatpush1.msra.mxu0 0.0
        %2235 = vmatprep.subr.mxu0 0.0
        %2236 = vmatpush1.msra.mxu0 0.0
        %2237 = vmatprep.mubr.f32.mxu0 0.0
        %2238 = vmatmul.mubr.f32.gmra.mrb[0].mxu0 %v2101
        %v2239 = vpop.f32.mrb[0].mxu0
        %v2240 = vadd.f32 0.0, %v2239
        %v2241 = vpop.f32.mrb[0].mxu0
        %2242 = vdwg.mxu0
        %2243 = vmatprep.subr.mxu0 0.0
        %2244 = vmatpush1.msra.mxu0 %v2086
        %2245 = vmatprep.subr.mxu0 0.0
        %2246 = vmatpush1.msra.mxu0 %v2087
        %2247 = vmatprep.subr.mxu0 0.0
        %2248 = vmatpush1.msra.mxu0 0.0
        %2249 = vmatprep.subr.mxu0 0.0
        %2250 = vmatpush1.msra.mxu0 0.0
        %2251 = vmatprep.subr.mxu0 0.0
        %2252 = vmatpush1.msra.mxu0 0.0
        %2253 = vmatprep.subr.mxu0 0.0
        %2254 = vmatpush1.msra.mxu0 0.0
        %2255 = vmatprep.subr.mxu0 0.0
        %2256 = vmatpush1.msra.mxu0 0.0
        %2257 = vmatprep.subr.mxu0 0.0
        %2258 = vmatpush1.msra.mxu0 0.0
        %2259 = vmatprep.subr.mxu0 0.0
        %2260 = vmatpush1.msra.mxu0 0.0
        %2261 = vmatprep.subr.mxu0 0.0
        %2262 = vmatpush1.msra.mxu0 0.0
        %2263 = vmatprep.subr.mxu0 0.0
        %2264 = vmatpush1.msra.mxu0 0.0
        %2265 = vmatprep.subr.mxu0 0.0
        %2266 = vmatpush1.msra.mxu0 0.0
        %2267 = vmatprep.subr.mxu0 0.0
        %2268 = vmatpush1.msra.mxu0 0.0
        %2269 = vmatprep.subr.mxu0 0.0
        %2270 = vmatpush1.msra.mxu0 0.0
        %2271 = vmatprep.subr.mxu0 0.0
        %2272 = vmatpush1.msra.mxu0 0.0
        %2273 = vmatprep.subr.mxu0 0.0
        %2274 = vmatpush1.msra.mxu0 0.0
        %2275 = vmatprep.subr.mxu0 0.0
        %2276 = vmatpush1.msra.mxu0 0.0
        %2277 = vmatprep.subr.mxu0 0.0
        %2278 = vmatpush1.msra.mxu0 0.0
        %2279 = vmatprep.subr.mxu0 0.0
        %2280 = vmatpush1.msra.mxu0 0.0
        %2281 = vmatprep.subr.mxu0 0.0
        %2282 = vmatpush1.msra.mxu0 0.0
        %2283 = vmatprep.subr.mxu0 0.0
        %2284 = vmatpush1.msra.mxu0 0.0
        %2285 = vmatprep.subr.mxu0 0.0
        %2286 = vmatpush1.msra.mxu0 0.0
        %2287 = vmatprep.subr.mxu0 0.0
        %2288 = vmatpush1.msra.mxu0 0.0
        %2289 = vmatprep.subr.mxu0 0.0
        %2290 = vmatpush1.msra.mxu0 0.0
        %2291 = vmatprep.subr.mxu0 0.0
        %2292 = vmatpush1.msra.mxu0 0.0
        %2293 = vmatprep.subr.mxu0 0.0
        %2294 = vmatpush1.msra.mxu0 0.0
        %2295 = vmatprep.subr.mxu0 0.0
        %2296 = vmatpush1.msra.mxu0 0.0
        %2297 = vmatprep.subr.mxu0 0.0
        %2298 = vmatpush1.msra.mxu0 0.0
        %2299 = vmatprep.subr.mxu0 0.0
        %2300 = vmatpush1.msra.mxu0 0.0
        %2301 = vmatprep.subr.mxu0 0.0
        %2302 = vmatpush1.msra.mxu0 0.0
        %2303 = vmatprep.subr.mxu0 0.0
        %2304 = vmatpush1.msra.mxu0 0.0
        %2305 = vmatprep.subr.mxu0 0.0
        %2306 = vmatpush1.msra.mxu0 0.0
        %2307 = vmatprep.mubr.f32.mxu0 0.0
        %2308 = vmatmul.mubr.f32.gmra.mrb[0].mxu0 %v2101
        %v2309 = vpop.f32.mrb[0].mxu0
        %v2310 = vadd.f32 0.0, %v2309
        %v2311 = vpop.f32.mrb[0].mxu0
        %2312 = vdwg.mxu0
        %2313 = vmatprep.subr.mxu0 0.0
        %2314 = vmatpush1.msra.mxu0 %v2088
        %2315 = vmatprep.subr.mxu0 0.0
        %2316 = vmatpush1.msra.mxu0 %v2089
        %2317 = vmatprep.subr.mxu0 0.0
        %2318 = vmatpush1.msra.mxu0 0.0
        %2319 = vmatprep.subr.mxu0 0.0
        %2320 = vmatpush1.msra.mxu0 0.0
        %2321 = vmatprep.subr.mxu0 0.0
        %2322 = vmatpush1.msra.mxu0 0.0
        %2323 = vmatprep.subr.mxu0 0.0
        %2324 = vmatpush1.msra.mxu0 0.0
        %2325 = vmatprep.subr.mxu0 0.0
        %2326 = vmatpush1.msra.mxu0 0.0
        %2327 = vmatprep.subr.mxu0 0.0
        %2328 = vmatpush1.msra.mxu0 0.0
        %2329 = vmatprep.subr.mxu0 0.0
        %2330 = vmatpush1.msra.mxu0 0.0
        %2331 = vmatprep.subr.mxu0 0.0
        %2332 = vmatpush1.msra.mxu0 0.0
        %2333 = vmatprep.subr.mxu0 0.0
        %2334 = vmatpush1.msra.mxu0 0.0
        %2335 = vmatprep.subr.mxu0 0.0
        %2336 = vmatpush1.msra.mxu0 0.0
        %2337 = vmatprep.subr.mxu0 0.0
        %2338 = vmatpush1.msra.mxu0 0.0
        %2339 = vmatprep.subr.mxu0 0.0
        %2340 = vmatpush1.msra.mxu0 0.0
        %2341 = vmatprep.subr.mxu0 0.0
        %2342 = vmatpush1.msra.mxu0 0.0
        %2343 = vmatprep.subr.mxu0 0.0
        %2344 = vmatpush1.msra.mxu0 0.0
        %2345 = vmatprep.subr.mxu0 0.0
        %2346 = vmatpush1.msra.mxu0 0.0
        %2347 = vmatprep.subr.mxu0 0.0
        %2348 = vmatpush1.msra.mxu0 0.0
        %2349 = vmatprep.subr.mxu0 0.0
        %2350 = vmatpush1.msra.mxu0 0.0
        %2351 = vmatprep.subr.mxu0 0.0
        %2352 = vmatpush1.msra.mxu0 0.0
        %2353 = vmatprep.subr.mxu0 0.0
        %2354 = vmatpush1.msra.mxu0 0.0
        %2355 = vmatprep.subr.mxu0 0.0
        %2356 = vmatpush1.msra.mxu0 0.0
        %2357 = vmatprep.subr.mxu0 0.0
        %2358 = vmatpush1.msra.mxu0 0.0
        %2359 = vmatprep.subr.mxu0 0.0
        %2360 = vmatpush1.msra.mxu0 0.0
        %2361 = vmatprep.subr.mxu0 0.0
        %2362 = vmatpush1.msra.mxu0 0.0
        %2363 = vmatprep.subr.mxu0 0.0
        %2364 = vmatpush1.msra.mxu0 0.0
        %2365 = vmatprep.subr.mxu0 0.0
        %2366 = vmatpush1.msra.mxu0 0.0
        %2367 = vmatprep.subr.mxu0 0.0
        %2368 = vmatpush1.msra.mxu0 0.0
        %2369 = vmatprep.subr.mxu0 0.0
        %2370 = vmatpush1.msra.mxu0 0.0
        %2371 = vmatprep.subr.mxu0 0.0
        %2372 = vmatpush1.msra.mxu0 0.0
        %2373 = vmatprep.subr.mxu0 0.0
        %2374 = vmatpush1.msra.mxu0 0.0
        %2375 = vmatprep.subr.mxu0 0.0
        %2376 = vmatpush1.msra.mxu0 0.0
        %2377 = vmatprep.mubr.f32.mxu0 0.0
        %2378 = vmatmul.mubr.f32.gmra.mrb[0].mxu0 %v2101
        %v2379 = vpop.f32.mrb[0].mxu0
        %v2380 = vadd.f32 0.0, %v2379
        %v2381 = vpop.f32.mrb[0].mxu0
        %2382 = vdwg.mxu0
        %2383 = vmatprep.subr.mxu0 0.0
        %2384 = vmatpush1.msra.mxu0 %v2090
        %2385 = vmatprep.subr.mxu0 0.0
        %2386 = vmatpush1.msra.mxu0 %v2091
        %2387 = vmatprep.subr.mxu0 0.0
        %2388 = vmatpush1.msra.mxu0 0.0
        %2389 = vmatprep.subr.mxu0 0.0
        %2390 = vmatpush1.msra.mxu0 0.0
        %2391 = vmatprep.subr.mxu0 0.0
        %2392 = vmatpush1.msra.mxu0 0.0
        %2393 = vmatprep.subr.mxu0 0.0
        %2394 = vmatpush1.msra.mxu0 0.0
        %2395 = vmatprep.subr.mxu0 0.0
        %2396 = vmatpush1.msra.mxu0 0.0
        %2397 = vmatprep.subr.mxu0 0.0
        %2398 = vmatpush1.msra.mxu0 0.0
        %2399 = vmatprep.subr.mxu0 0.0
        %2400 = vmatpush1.msra.mxu0 0.0
        %2401 = vmatprep.subr.mxu0 0.0
        %2402 = vmatpush1.msra.mxu0 0.0
        %2403 = vmatprep.subr.mxu0 0.0
        %2404 = vmatpush1.msra.mxu0 0.0
        %2405 = vmatprep.subr.mxu0 0.0
        %2406 = vmatpush1.msra.mxu0 0.0
        %2407 = vmatprep.subr.mxu0 0.0
        %2408 = vmatpush1.msra.mxu0 0.0
        %2409 = vmatprep.subr.mxu0 0.0
        %2410 = vmatpush1.msra.mxu0 0.0
        %2411 = vmatprep.subr.mxu0 0.0
        %2412 = vmatpush1.msra.mxu0 0.0
        %2413 = vmatprep.subr.mxu0 0.0
        %2414 = vmatpush1.msra.mxu0 0.0
        %2415 = vmatprep.subr.mxu0 0.0
        %2416 = vmatpush1.msra.mxu0 0.0
        %2417 = vmatprep.subr.mxu0 0.0
        %2418 = vmatpush1.msra.mxu0 0.0
        %2419 = vmatprep.subr.mxu0 0.0
        %2420 = vmatpush1.msra.mxu0 0.0
        %2421 = vmatprep.subr.mxu0 0.0
        %2422 = vmatpush1.msra.mxu0 0.0
        %2423 = vmatprep.subr.mxu0 0.0
        %2424 = vmatpush1.msra.mxu0 0.0
        %2425 = vmatprep.subr.mxu0 0.0
        %2426 = vmatpush1.msra.mxu0 0.0
        %2427 = vmatprep.subr.mxu0 0.0
        %2428 = vmatpush1.msra.mxu0 0.0
        %2429 = vmatprep.subr.mxu0 0.0
        %2430 = vmatpush1.msra.mxu0 0.0
        %2431 = vmatprep.subr.mxu0 0.0
        %2432 = vmatpush1.msra.mxu0 0.0
        %2433 = vmatprep.subr.mxu0 0.0
        %2434 = vmatpush1.msra.mxu0 0.0
        %2435 = vmatprep.subr.mxu0 0.0
        %2436 = vmatpush1.msra.mxu0 0.0
        %2437 = vmatprep.subr.mxu0 0.0
        %2438 = vmatpush1.msra.mxu0 0.0
        %2439 = vmatprep.subr.mxu0 0.0
        %2440 = vmatpush1.msra.mxu0 0.0
        %2441 = vmatprep.subr.mxu0 0.0
        %2442 = vmatpush1.msra.mxu0 0.0
        %2443 = vmatprep.subr.mxu0 0.0
        %2444 = vmatpush1.msra.mxu0 0.0
        %2445 = vmatprep.subr.mxu0 0.0
        %2446 = vmatpush1.msra.mxu0 0.0
        %2447 = vmatprep.mubr.f32.mxu0 0.0
        %2448 = vmatmul.mubr.f32.gmra.mrb[0].mxu0 %v2101
        %v2449 = vpop.f32.mrb[0].mxu0
        %v2450 = vadd.f32 0.0, %v2449
        %v2451 = vpop.f32.mrb[0].mxu0
        %2452 = vdwg.mxu0
        %2453 = vmatprep.subr.mxu0 0.0
        %2454 = vmatpush1.msra.mxu0 %v2092
        %2455 = vmatprep.subr.mxu0 0.0
        %2456 = vmatpush1.msra.mxu0 %v2093
        %2457 = vmatprep.subr.mxu0 0.0
        %2458 = vmatpush1.msra.mxu0 0.0
        %2459 = vmatprep.subr.mxu0 0.0
        %2460 = vmatpush1.msra.mxu0 0.0
        %2461 = vmatprep.subr.mxu0 0.0
        %2462 = vmatpush1.msra.mxu0 0.0
        %2463 = vmatprep.subr.mxu0 0.0
        %2464 = vmatpush1.msra.mxu0 0.0
        %2465 = vmatprep.subr.mxu0 0.0
        %2466 = vmatpush1.msra.mxu0 0.0
        %2467 = vmatprep.subr.mxu0 0.0
        %2468 = vmatpush1.msra.mxu0 0.0
        %2469 = vmatprep.subr.mxu0 0.0
        %2470 = vmatpush1.msra.mxu0 0.0
        %2471 = vmatprep.subr.mxu0 0.0
        %2472 = vmatpush1.msra.mxu0 0.0
        %2473 = vmatprep.subr.mxu0 0.0
        %2474 = vmatpush1.msra.mxu0 0.0
        %2475 = vmatprep.subr.mxu0 0.0
        %2476 = vmatpush1.msra.mxu0 0.0
        %2477 = vmatprep.subr.mxu0 0.0
        %2478 = vmatpush1.msra.mxu0 0.0
        %2479 = vmatprep.subr.mxu0 0.0
        %2480 = vmatpush1.msra.mxu0 0.0
        %2481 = vmatprep.subr.mxu0 0.0
        %2482 = vmatpush1.msra.mxu0 0.0
        %2483 = vmatprep.subr.mxu0 0.0
        %2484 = vmatpush1.msra.mxu0 0.0
        %2485 = vmatprep.subr.mxu0 0.0
        %2486 = vmatpush1.msra.mxu0 0.0
        %2487 = vmatprep.subr.mxu0 0.0
        %2488 = vmatpush1.msra.mxu0 0.0
        %2489 = vmatprep.subr.mxu0 0.0
        %2490 = vmatpush1.msra.mxu0 0.0
        %2491 = vmatprep.subr.mxu0 0.0
        %2492 = vmatpush1.msra.mxu0 0.0
        %2493 = vmatprep.subr.mxu0 0.0
        %2494 = vmatpush1.msra.mxu0 0.0
        %2495 = vmatprep.subr.mxu0 0.0
        %2496 = vmatpush1.msra.mxu0 0.0
        %2497 = vmatprep.subr.mxu0 0.0
        %2498 = vmatpush1.msra.mxu0 0.0
        %2499 = vmatprep.subr.mxu0 0.0
        %2500 = vmatpush1.msra.mxu0 0.0
        %2501 = vmatprep.subr.mxu0 0.0
        %2502 = vmatpush1.msra.mxu0 0.0
        %2503 = vmatprep.subr.mxu0 0.0
        %2504 = vmatpush1.msra.mxu0 0.0
        %2505 = vmatprep.subr.mxu0 0.0
        %2506 = vmatpush1.msra.mxu0 0.0
        %2507 = vmatprep.subr.mxu0 0.0
        %2508 = vmatpush1.msra.mxu0 0.0
        %2509 = vmatprep.subr.mxu0 0.0
        %2510 = vmatpush1.msra.mxu0 0.0
        %2511 = vmatprep.subr.mxu0 0.0
        %2512 = vmatpush1.msra.mxu0 0.0
        %2513 = vmatprep.subr.mxu0 0.0
        %2514 = vmatpush1.msra.mxu0 0.0
        %2515 = vmatprep.subr.mxu0 0.0
        %2516 = vmatpush1.msra.mxu0 0.0
        %2517 = vmatprep.mubr.f32.mxu0 0.0
        %2518 = vmatmul.mubr.f32.gmra.mrb[0].mxu0 %v2101
        %v2519 = vpop.f32.mrb[0].mxu0
        %v2520 = vadd.f32 0.0, %v2519
        %v2521 = vpop.f32.mrb[0].mxu0
        %2522 = vdwg.mxu0
        %2523 = vmatprep.subr.mxu0 0.0
        %2524 = vmatpush1.msra.mxu0 %v2094
        %2525 = vmatprep.subr.mxu0 0.0
        %2526 = vmatpush1.msra.mxu0 %v2095
        %2527 = vmatprep.subr.mxu0 0.0
        %2528 = vmatpush1.msra.mxu0 0.0
        %2529 = vmatprep.subr.mxu0 0.0
        %2530 = vmatpush1.msra.mxu0 0.0
        %2531 = vmatprep.subr.mxu0 0.0
        %2532 = vmatpush1.msra.mxu0 0.0
        %2533 = vmatprep.subr.mxu0 0.0
        %2534 = vmatpush1.msra.mxu0 0.0
        %2535 = vmatprep.subr.mxu0 0.0
        %2536 = vmatpush1.msra.mxu0 0.0
        %2537 = vmatprep.subr.mxu0 0.0
        %2538 = vmatpush1.msra.mxu0 0.0
        %2539 = vmatprep.subr.mxu0 0.0
        %2540 = vmatpush1.msra.mxu0 0.0
        %2541 = vmatprep.subr.mxu0 0.0
        %2542 = vmatpush1.msra.mxu0 0.0
        %2543 = vmatprep.subr.mxu0 0.0
        %2544 = vmatpush1.msra.mxu0 0.0
        %2545 = vmatprep.subr.mxu0 0.0
        %2546 = vmatpush1.msra.mxu0 0.0
        %2547 = vmatprep.subr.mxu0 0.0
        %2548 = vmatpush1.msra.mxu0 0.0
        %2549 = vmatprep.subr.mxu0 0.0
        %2550 = vmatpush1.msra.mxu0 0.0
        %2551 = vmatprep.subr.mxu0 0.0
        %2552 = vmatpush1.msra.mxu0 0.0
        %2553 = vmatprep.subr.mxu0 0.0
        %2554 = vmatpush1.msra.mxu0 0.0
        %2555 = vmatprep.subr.mxu0 0.0
        %2556 = vmatpush1.msra.mxu0 0.0
        %2557 = vmatprep.subr.mxu0 0.0
        %2558 = vmatpush1.msra.mxu0 0.0
        %2559 = vmatprep.subr.mxu0 0.0
        %2560 = vmatpush1.msra.mxu0 0.0
        %2561 = vmatprep.subr.mxu0 0.0
        %2562 = vmatpush1.msra.mxu0 0.0
        %2563 = vmatprep.subr.mxu0 0.0
        %2564 = vmatpush1.msra.mxu0 0.0
        %2565 = vmatprep.subr.mxu0 0.0
        %2566 = vmatpush1.msra.mxu0 0.0
        %2567 = vmatprep.subr.mxu0 0.0
        %2568 = vmatpush1.msra.mxu0 0.0
        %2569 = vmatprep.subr.mxu0 0.0
        %2570 = vmatpush1.msra.mxu0 0.0
        %2571 = vmatprep.subr.mxu0 0.0
        %2572 = vmatpush1.msra.mxu0 0.0
        %2573 = vmatprep.subr.mxu0 0.0
        %2574 = vmatpush1.msra.mxu0 0.0
        %2575 = vmatprep.subr.mxu0 0.0
        %2576 = vmatpush1.msra.mxu0 0.0
        %2577 = vmatprep.subr.mxu0 0.0
        %2578 = vmatpush1.msra.mxu0 0.0
        %2579 = vmatprep.subr.mxu0 0.0
        %2580 = vmatpush1.msra.mxu0 0.0
        %2581 = vmatprep.subr.mxu0 0.0
        %2582 = vmatpush1.msra.mxu0 0.0
        %2583 = vmatprep.subr.mxu0 0.0
        %2584 = vmatpush1.msra.mxu0 0.0
        %2585 = vmatprep.subr.mxu0 0.0
        %2586 = vmatpush1.msra.mxu0 0.0
        %2587 = vmatprep.mubr.f32.mxu0 0.0
        %2588 = vmatmul.mubr.f32.gmra.mrb[0].mxu0 %v2101
        %v2589 = vpop.f32.mrb[0].mxu0
        %v2590 = vadd.f32 0.0, %v2589
        %v2591 = vpop.f32.mrb[0].mxu0
        %2592 = vdwg.mxu0
        %2593 = vmatprep.subr.mxu0 0.0
        %2594 = vmatpush1.msra.mxu0 %v2096
        %2595 = vmatprep.subr.mxu0 0.0
        %2596 = vmatpush1.msra.mxu0 %v2097
        %2597 = vmatprep.subr.mxu0 0.0
        %2598 = vmatpush1.msra.mxu0 0.0
        %2599 = vmatprep.subr.mxu0 0.0
        %2600 = vmatpush1.msra.mxu0 0.0
        %2601 = vmatprep.subr.mxu0 0.0
        %2602 = vmatpush1.msra.mxu0 0.0
        %2603 = vmatprep.subr.mxu0 0.0
        %2604 = vmatpush1.msra.mxu0 0.0
        %2605 = vmatprep.subr.mxu0 0.0
        %2606 = vmatpush1.msra.mxu0 0.0
        %2607 = vmatprep.subr.mxu0 0.0
        %2608 = vmatpush1.msra.mxu0 0.0
        %2609 = vmatprep.subr.mxu0 0.0
        %2610 = vmatpush1.msra.mxu0 0.0
        %2611 = vmatprep.subr.mxu0 0.0
        %2612 = vmatpush1.msra.mxu0 0.0
        %2613 = vmatprep.subr.mxu0 0.0
        %2614 = vmatpush1.msra.mxu0 0.0
        %2615 = vmatprep.subr.mxu0 0.0
        %2616 = vmatpush1.msra.mxu0 0.0
        %2617 = vmatprep.subr.mxu0 0.0
        %2618 = vmatpush1.msra.mxu0 0.0
        %2619 = vmatprep.subr.mxu0 0.0
        %2620 = vmatpush1.msra.mxu0 0.0
        %2621 = vmatprep.subr.mxu0 0.0
        %2622 = vmatpush1.msra.mxu0 0.0
        %2623 = vmatprep.subr.mxu0 0.0
        %2624 = vmatpush1.msra.mxu0 0.0
        %2625 = vmatprep.subr.mxu0 0.0
        %2626 = vmatpush1.msra.mxu0 0.0
        %2627 = vmatprep.subr.mxu0 0.0
        %2628 = vmatpush1.msra.mxu0 0.0
        %2629 = vmatprep.subr.mxu0 0.0
        %2630 = vmatpush1.msra.mxu0 0.0
        %2631 = vmatprep.subr.mxu0 0.0
        %2632 = vmatpush1.msra.mxu0 0.0
        %2633 = vmatprep.subr.mxu0 0.0
        %2634 = vmatpush1.msra.mxu0 0.0
        %2635 = vmatprep.subr.mxu0 0.0
        %2636 = vmatpush1.msra.mxu0 0.0
        %2637 = vmatprep.subr.mxu0 0.0
        %2638 = vmatpush1.msra.mxu0 0.0
        %2639 = vmatprep.subr.mxu0 0.0
        %2640 = vmatpush1.msra.mxu0 0.0
        %2641 = vmatprep.subr.mxu0 0.0
        %2642 = vmatpush1.msra.mxu0 0.0
        %2643 = vmatprep.subr.mxu0 0.0
        %2644 = vmatpush1.msra.mxu0 0.0
        %2645 = vmatprep.subr.mxu0 0.0
        %2646 = vmatpush1.msra.mxu0 0.0
        %2647 = vmatprep.subr.mxu0 0.0
        %2648 = vmatpush1.msra.mxu0 0.0
        %2649 = vmatprep.subr.mxu0 0.0
        %2650 = vmatpush1.msra.mxu0 0.0
        %2651 = vmatprep.subr.mxu0 0.0
        %2652 = vmatpush1.msra.mxu0 0.0
        %2653 = vmatprep.subr.mxu0 0.0
        %2654 = vmatpush1.msra.mxu0 0.0
        %2655 = vmatprep.subr.mxu0 0.0
        %2656 = vmatpush1.msra.mxu0 0.0
        %2657 = vmatprep.mubr.f32.mxu0 0.0
        %2658 = vmatmul.mubr.f32.gmra.mrb[0].mxu0 %v2101
        %v2659 = vpop.f32.mrb[0].mxu0
        %v2660 = vadd.f32 0.0, %v2659
        %v2661 = vpop.f32.mrb[0].mxu0
        %2662 = vdwg.mxu0
        %v2663 = vld [vmem:[#allocation5] sm:$0x1]
        %v2665 = vlaneseq
        %v2666 = vshrl.u32 %v2665, 7
        %v2667 = vsub.s32 0, %v2666
        %v2668 = vrot.slane %v2663, %v2667
        %2669 = vset.pattern.permute.xlu0 0
        %2670 = vperm.xlu0 %2669, %v2668
        %v2671 = vpop.permute.xlu0 %2670
        %v2673 = vadd.f32 %v2170, %v2671
        %v2674 = vadd.f32 %v2240, %v2671
        %v2675 = vadd.f32 %v2310, %v2671
        %v2676 = vadd.f32 %v2380, %v2671
        %v2677 = vadd.f32 %v2450, %v2671
        %v2678 = vadd.f32 %v2520, %v2671
        %v2679 = vadd.f32 %v2590, %v2671
        %v2680 = vadd.f32 %v2660, %v2671
        %v2689 = vrot.slane %v2674, 7
        %vm2690 = vcmask 1041409
        %v2691 = vsel %vm2690, %v2689, %v2673
        %v2692 = vrot.slane %v2675, 6
        %vm2693 = vcmask 1042434
        %v2694 = vsel %vm2693, %v2692, %v2691
        %v2695 = vrot.slane %v2676, 5
        %vm2696 = vcmask 1043459
        %v2697 = vsel %vm2696, %v2695, %v2694
        %v2698 = vrot.slane %v2677, 4
        %vm2699 = vcmask 1044484
        %v2700 = vsel %vm2699, %v2698, %v2697
        %v2701 = vrot.slane %v2678, 3
        %vm2702 = vcmask 1045509
        %v2703 = vsel %vm2702, %v2701, %v2700
        %v2704 = vrot.slane %v2679, 2
        %vm2705 = vcmask 1046534
        %v2706 = vsel %vm2705, %v2704, %v2703
        %v2707 = vrot.slane %v2680, 1
        %vm2708 = vcmask 1047559
        %v2709 = vsel %vm2708, %v2707, %v2706
        %vm2711 = vcmask 64512
        %v2712 = vsel %vm2711, %v2709, -inf
        %2713 = vmax.xlane.f32.xlu0 %v2712
        %v2714 = vpop.xlane.xlu0 %2713
        %v2716 = vrot.slane %v2714, 1
        %v2717 = vrot.slane %v2714, 2
        %v2718 = vrot.slane %v2714, 3
        %v2719 = vrot.slane %v2714, 4
        %v2720 = vrot.slane %v2714, 5
        %v2721 = vrot.slane %v2714, 6
        %v2722 = vrot.slane %v2714, 7
        %v2731 = vsub.f32 %v2673, %v2714
        %v2732 = vsub.f32 %v2674, %v2716
        %v2733 = vsub.f32 %v2675, %v2717
        %v2734 = vsub.f32 %v2676, %v2718
        %v2735 = vsub.f32 %v2677, %v2719
        %v2736 = vsub.f32 %v2678, %v2720
        %v2737 = vsub.f32 %v2679, %v2721
        %v2738 = vsub.f32 %v2680, %v2722
        %v2739 = vmul.f32 %v2731, 1.442695
        %v2740 = vpow.pop %v2739
        %v2741 = vmul.f32 %v2732, 1.442695
        %v2742 = vpow.pop %v2741
        %v2743 = vmul.f32 %v2733, 1.442695
        %v2744 = vpow.pop %v2743
        %v2745 = vmul.f32 %v2734, 1.442695
        %v2746 = vpow.pop %v2745
        %v2747 = vmul.f32 %v2735, 1.442695
        %v2748 = vpow.pop %v2747
        %v2749 = vmul.f32 %v2736, 1.442695
        %v2750 = vpow.pop %v2749
        %v2751 = vmul.f32 %v2737, 1.442695
        %v2752 = vpow.pop %v2751
        %v2753 = vmul.f32 %v2738, 1.442695
        %v2754 = vpow.pop %v2753
        %v2763 = vrot.slane %v2742, 7
        %v2764 = vsel %vm2690, %v2763, %v2740
        %v2765 = vrot.slane %v2744, 6
        %v2766 = vsel %vm2693, %v2765, %v2764
        %v2767 = vrot.slane %v2746, 5
        %v2768 = vsel %vm2696, %v2767, %v2766
        %v2769 = vrot.slane %v2748, 4
        %v2770 = vsel %vm2699, %v2769, %v2768
        %v2771 = vrot.slane %v2750, 3
        %v2772 = vsel %vm2702, %v2771, %v2770
        %v2773 = vrot.slane %v2752, 2
        %v2774 = vsel %vm2705, %v2773, %v2772
        %v2775 = vrot.slane %v2754, 1
        %v2776 = vsel %vm2708, %v2775, %v2774
        %v2778 = vsel %vm2711, %v2776, 0.0
        %2779 = vadd.xlane.f32.xlu0 %v2778
        %v2780 = vpop.xlane.xlu0 %2779
        %v2781 = vrcp.pop %v2780
        %v2783 = vrot.slane %v2781, 1
        %v2784 = vrot.slane %v2781, 2
        %v2785 = vrot.slane %v2781, 3
        %v2786 = vrot.slane %v2781, 4
        %v2787 = vrot.slane %v2781, 5
        %v2788 = vrot.slane %v2781, 6
        %v2789 = vrot.slane %v2781, 7
        %v2798 = vmul.f32 %v2740, %v2781
        %v2799 = vmul.f32 %v2742, %v2783
        %v2800 = vmul.f32 %v2744, %v2784
        %v2801 = vmul.f32 %v2746, %v2785
        %v2802 = vmul.f32 %v2748, %v2786
        %v2803 = vmul.f32 %v2750, %v2787
        %v2804 = vmul.f32 %v2752, %v2788
        %v2805 = vmul.f32 %v2754, %v2789
        %v2806 = vld [vmem:[%s887] sm:$0xff]
        %v2815 = vrot.slane %v2799, 7
        %v2816 = vsel %vm2690, %v2815, %v2798
        %v2817 = vrot.slane %v2800, 6
        %v2818 = vsel %vm2693, %v2817, %v2816
        %v2819 = vrot.slane %v2801, 5
        %v2820 = vsel %vm2696, %v2819, %v2818
        %v2821 = vrot.slane %v2802, 4
        %v2822 = vsel %vm2699, %v2821, %v2820
        %v2823 = vrot.slane %v2803, 3
        %v2824 = vsel %vm2702, %v2823, %v2822
        %v2825 = vrot.slane %v2804, 2
        %v2826 = vsel %vm2705, %v2825, %v2824
        %v2827 = vrot.slane %v2805, 1
        %v2828 = vsel %vm2708, %v2827, %v2826
        %v2829 = vsel %vm2711, %v2828, 0
        %2831 = vmatprep.subr.mxu0 0.0
        %2832 = vmatpush1.msra.mxu0 %v2806
        %2833 = vmatprep.subr.mxu0 0.0
        %2834 = vmatpush1.msra.mxu0 0.0
        %2835 = vmatprep.subr.mxu0 0.0
        %2836 = vmatpush1.msra.mxu0 0.0
        %2837 = vmatprep.subr.mxu0 0.0
        %2838 = vmatpush1.msra.mxu0 0.0
        %2839 = vmatprep.subr.mxu0 0.0
        %2840 = vmatpush1.msra.mxu0 0.0
        %2841 = vmatprep.subr.mxu0 0.0
        %2842 = vmatpush1.msra.mxu0 0.0
        %2843 = vmatprep.subr.mxu0 0.0
        %2844 = vmatpush1.msra.mxu0 0.0
        %2845 = vmatprep.subr.mxu0 0.0
        %2846 = vmatpush1.msra.mxu0 0.0
        %2847 = vmatprep.subr.mxu0 0.0
        %2848 = vmatpush1.msra.mxu0 0.0
        %2849 = vmatprep.subr.mxu0 0.0
        %2850 = vmatpush1.msra.mxu0 0.0
        %2851 = vmatprep.subr.mxu0 0.0
        %2852 = vmatpush1.msra.mxu0 0.0
        %2853 = vmatprep.subr.mxu0 0.0
        %2854 = vmatpush1.msra.mxu0 0.0
        %2855 = vmatprep.subr.mxu0 0.0
        %2856 = vmatpush1.msra.mxu0 0.0
        %2857 = vmatprep.subr.mxu0 0.0
        %2858 = vmatpush1.msra.mxu0 0.0
        %2859 = vmatprep.subr.mxu0 0.0
        %2860 = vmatpush1.msra.mxu0 0.0
        %2861 = vmatprep.subr.mxu0 0.0
        %2862 = vmatpush1.msra.mxu0 0.0
        %2863 = vmatprep.subr.mxu0 0.0
        %2864 = vmatpush1.msra.mxu0 0.0
        %2865 = vmatprep.subr.mxu0 0.0
        %2866 = vmatpush1.msra.mxu0 0.0
        %2867 = vmatprep.subr.mxu0 0.0
        %2868 = vmatpush1.msra.mxu0 0.0
        %2869 = vmatprep.subr.mxu0 0.0
        %2870 = vmatpush1.msra.mxu0 0.0
        %2871 = vmatprep.subr.mxu0 0.0
        %2872 = vmatpush1.msra.mxu0 0.0
        %2873 = vmatprep.subr.mxu0 0.0
        %2874 = vmatpush1.msra.mxu0 0.0
        %2875 = vmatprep.subr.mxu0 0.0
        %2876 = vmatpush1.msra.mxu0 0.0
        %2877 = vmatprep.subr.mxu0 0.0
        %2878 = vmatpush1.msra.mxu0 0.0
        %2879 = vmatprep.subr.mxu0 0.0
        %2880 = vmatpush1.msra.mxu0 0.0
        %2881 = vmatprep.subr.mxu0 0.0
        %2882 = vmatpush1.msra.mxu0 0.0
        %2883 = vmatprep.subr.mxu0 0.0
        %2884 = vmatpush1.msra.mxu0 0.0
        %2885 = vmatprep.subr.mxu0 0.0
        %2886 = vmatpush1.msra.mxu0 0.0
        %2887 = vmatprep.subr.mxu0 0.0
        %2888 = vmatpush1.msra.mxu0 0.0
        %2889 = vmatprep.subr.mxu0 0.0
        %2890 = vmatpush1.msra.mxu0 0.0
        %2891 = vmatprep.subr.mxu0 0.0
        %2892 = vmatpush1.msra.mxu0 0.0
        %2893 = vmatprep.subr.mxu0 0.0
        %2894 = vmatpush1.msra.mxu0 0.0
        %2895 = vmatprep.mubr.f32.mxu0 0.0
        %2896 = vmatmul.mubr.f32.gmra.mrb[0].mxu0 %v2829
        %v2897 = vpop.f32.mrb[0].mxu0
        %v2898 = vadd.f32 0.0, %v2897
        %v2899 = vpop.f32.mrb[0].mxu0
        %2900 = vdwg.mxu0
        %v2901 = vld [vmem:[#allocation21] sm:$0xff]
        %v2902 = vld [vmem:[#allocation21 + $0x8] sm:$0xff]
        %v2903 = vld [vmem:[#allocation21 + $0x10] sm:$0xff]
        %v2904 = vld [vmem:[#allocation21 + $0x18] sm:$0xff]
        %v2905 = vld [vmem:[#allocation23] sm:$0xff]
        %v2906 = vld [vmem:[#allocation23 + $0x8] sm:$0xff]
        %v2907 = vld [vmem:[#allocation23 + $0x10] sm:$0xff]
        %v2908 = vld [vmem:[#allocation23 + $0x18] sm:$0xff]
        %v2910 = vsel %vm1044, %v2898, 0
        %2912 = vmatprep.subr.mxu0 0.0
        %2913 = vmatpush1.msra.mxu0 %v2905
        %2914 = vmatprep.subr.mxu0 0.0
        %2915 = vmatpush1.msra.mxu0 %v2906
        %2916 = vmatprep.subr.mxu0 0.0
        %2917 = vmatpush1.msra.mxu0 %v2907
        %2918 = vmatprep.subr.mxu0 0.0
        %2919 = vmatpush1.msra.mxu0 %v2908
        %2920 = vmatprep.subr.mxu0 0.0
        %2921 = vmatpush1.msra.mxu0 0.0
        %2922 = vmatprep.subr.mxu0 0.0
        %2923 = vmatpush1.msra.mxu0 0.0
        %2924 = vmatprep.subr.mxu0 0.0
        %2925 = vmatpush1.msra.mxu0 0.0
        %2926 = vmatprep.subr.mxu0 0.0
        %2927 = vmatpush1.msra.mxu0 0.0
        %2928 = vmatprep.subr.mxu0 0.0
        %2929 = vmatpush1.msra.mxu0 0.0
        %2930 = vmatprep.subr.mxu0 0.0
        %2931 = vmatpush1.msra.mxu0 0.0
        %2932 = vmatprep.subr.mxu0 0.0
        %2933 = vmatpush1.msra.mxu0 0.0
        %2934 = vmatprep.subr.mxu0 0.0
        %2935 = vmatpush1.msra.mxu0 0.0
        %2936 = vmatprep.subr.mxu0 0.0
        %2937 = vmatpush1.msra.mxu0 0.0
        %2938 = vmatprep.subr.mxu0 0.0
        %2939 = vmatpush1.msra.mxu0 0.0
        %2940 = vmatprep.subr.mxu0 0.0
        %2941 = vmatpush1.msra.mxu0 0.0
        %2942 = vmatprep.subr.mxu0 0.0
        %2943 = vmatpush1.msra.mxu0 0.0
        %2944 = vmatprep.subr.mxu0 0.0
        %2945 = vmatpush1.msra.mxu0 0.0
        %2946 = vmatprep.subr.mxu0 0.0
        %2947 = vmatpush1.msra.mxu0 0.0
        %2948 = vmatprep.subr.mxu0 0.0
        %2949 = vmatpush1.msra.mxu0 0.0
        %2950 = vmatprep.subr.mxu0 0.0
        %2951 = vmatpush1.msra.mxu0 0.0
        %2952 = vmatprep.subr.mxu0 0.0
        %2953 = vmatpush1.msra.mxu0 0.0
        %2954 = vmatprep.subr.mxu0 0.0
        %2955 = vmatpush1.msra.mxu0 0.0
        %2956 = vmatprep.subr.mxu0 0.0
        %2957 = vmatpush1.msra.mxu0 0.0
        %2958 = vmatprep.subr.mxu0 0.0
        %2959 = vmatpush1.msra.mxu0 0.0
        %2960 = vmatprep.subr.mxu0 0.0
        %2961 = vmatpush1.msra.mxu0 0.0
        %2962 = vmatprep.subr.mxu0 0.0
        %2963 = vmatpush1.msra.mxu0 0.0
        %2964 = vmatprep.subr.mxu0 0.0
        %2965 = vmatpush1.msra.mxu0 0.0
        %2966 = vmatprep.subr.mxu0 0.0
        %2967 = vmatpush1.msra.mxu0 0.0
        %2968 = vmatprep.subr.mxu0 0.0
        %2969 = vmatpush1.msra.mxu0 0.0
        %2970 = vmatprep.subr.mxu0 0.0
        %2971 = vmatpush1.msra.mxu0 0.0
        %2972 = vmatprep.subr.mxu0 0.0
        %2973 = vmatpush1.msra.mxu0 0.0
        %2974 = vmatprep.subr.mxu0 0.0
        %2975 = vmatpush1.msra.mxu0 0.0
        %2976 = vmatprep.mubr.f32.mxu0 0.0
        %2977 = vmatmul.mubr.f32.gmra.mrb[0].mxu0 %v2910
        %v2978 = vpop.f32.mrb[0].mxu0
        %v2979 = vadd.f32 0.0, %v2978
        %v2980 = vpop.f32.mrb[0].mxu0
        %2981 = vdwg.mxu0
        %2982 = vmatprep.subr.mxu0 0.0
        %2983 = vmatpush1.msra.mxu0 %v2901
        %2984 = vmatprep.subr.mxu0 0.0
        %2985 = vmatpush1.msra.mxu0 %v2902
        %2986 = vmatprep.subr.mxu0 0.0
        %2987 = vmatpush1.msra.mxu0 %v2903
        %2988 = vmatprep.subr.mxu0 0.0
        %2989 = vmatpush1.msra.mxu0 %v2904
        %2990 = vmatprep.subr.mxu0 0.0
        %2991 = vmatpush1.msra.mxu0 0.0
        %2992 = vmatprep.subr.mxu0 0.0
        %2993 = vmatpush1.msra.mxu0 0.0
        %2994 = vmatprep.subr.mxu0 0.0
        %2995 = vmatpush1.msra.mxu0 0.0
        %2996 = vmatprep.subr.mxu0 0.0
        %2997 = vmatpush1.msra.mxu0 0.0
        %2998 = vmatprep.subr.mxu0 0.0
        %2999 = vmatpush1.msra.mxu0 0.0
        %3000 = vmatprep.subr.mxu0 0.0
        %3001 = vmatpush1.msra.mxu0 0.0
        %3002 = vmatprep.subr.mxu0 0.0
        %3003 = vmatpush1.msra.mxu0 0.0
        %3004 = vmatprep.subr.mxu0 0.0
        %3005 = vmatpush1.msra.mxu0 0.0
        %3006 = vmatprep.subr.mxu0 0.0
        %3007 = vmatpush1.msra.mxu0 0.0
        %3008 = vmatprep.subr.mxu0 0.0
        %3009 = vmatpush1.msra.mxu0 0.0
        %3010 = vmatprep.subr.mxu0 0.0
        %3011 = vmatpush1.msra.mxu0 0.0
        %3012 = vmatprep.subr.mxu0 0.0
        %3013 = vmatpush1.msra.mxu0 0.0
        %3014 = vmatprep.subr.mxu0 0.0
        %3015 = vmatpush1.msra.mxu0 0.0
        %3016 = vmatprep.subr.mxu0 0.0
        %3017 = vmatpush1.msra.mxu0 0.0
        %3018 = vmatprep.subr.mxu0 0.0
        %3019 = vmatpush1.msra.mxu0 0.0
        %3020 = vmatprep.subr.mxu0 0.0
        %3021 = vmatpush1.msra.mxu0 0.0
        %3022 = vmatprep.subr.mxu0 0.0
        %3023 = vmatpush1.msra.mxu0 0.0
        %3024 = vmatprep.subr.mxu0 0.0
        %3025 = vmatpush1.msra.mxu0 0.0
        %3026 = vmatprep.subr.mxu0 0.0
        %3027 = vmatpush1.msra.mxu0 0.0
        %3028 = vmatprep.subr.mxu0 0.0
        %3029 = vmatpush1.msra.mxu0 0.0
        %3030 = vmatprep.subr.mxu0 0.0
        %3031 = vmatpush1.msra.mxu0 0.0
        %3032 = vmatprep.subr.mxu0 0.0
        %3033 = vmatpush1.msra.mxu0 0.0
        %3034 = vmatprep.subr.mxu0 0.0
        %3035 = vmatpush1.msra.mxu0 0.0
        %3036 = vmatprep.subr.mxu0 0.0
        %3037 = vmatpush1.msra.mxu0 0.0
        %3038 = vmatprep.subr.mxu0 0.0
        %3039 = vmatpush1.msra.mxu0 0.0
        %3040 = vmatprep.subr.mxu0 0.0
        %3041 = vmatpush1.msra.mxu0 0.0
        %3042 = vmatprep.subr.mxu0 0.0
        %3043 = vmatpush1.msra.mxu0 0.0
        %3044 = vmatprep.subr.mxu0 0.0
        %3045 = vmatpush1.msra.mxu0 0.0
        %3046 = vmatprep.mubr.f32.mxu0 0.0
        %3047 = vmatmul.mubr.f32.gmra.mrb[0].mxu0 %v1904
        %v3048 = vpop.f32.mrb[0].mxu0
        %v3049 = vadd.f32 %v2979, %v3048
        %v3050 = vpop.f32.mrb[0].mxu0
        %3051 = vdwg.mxu0
        %v3052 = vld [vmem:[#allocation24] sm:$0x1]
        %v3054 = vlaneseq
        %v3055 = vshrl.u32 %v3054, 7
        %v3056 = vsub.s32 0, %v3055
        %v3057 = vrot.slane %v3052, %v3056
        %v3059 = vadd.f32 %v3049, %v3057
        %v3060 = vld [vmem:[%s878] sm:$0xff]
        %3062 = vrot.lane.b32.xlu0 %v3060, 32
        %v3063 = vpop.permute.xlu0 %3062
        %v3065 = vadd.f32 %v3059, %v3063
        %v3066 = vxor.u32 %v3065, 2147483648
        %v3067 = vmul.f32 %v3066, 1.442695
        %v3068 = vpow.pop %v3067
        %v3069 = vadd.f32 %v3068, 1.0
        %v3070 = vrcp.pop %v3069
        %v3071 = vmul.f32 1.0, %v3070
        %v3072 = vld [vmem:[#allocation26] sm:$0xff]
        %v3073 = vld [vmem:[#allocation26 + $0x8] sm:$0xff]
        %v3074 = vld [vmem:[#allocation26 + $0x10] sm:$0xff]
        %v3075 = vld [vmem:[#allocation26 + $0x18] sm:$0xff]
        %v3076 = vld [vmem:[#allocation27] sm:$0x1]
        %v3078 = vlaneseq
        %v3079 = vshrl.u32 %v3078, 7
        %v3080 = vsub.s32 0, %v3079
        %v3081 = vrot.slane %v3076, %v3080
        %v3084 = vsel %vm1044, %v3059, 0
        %3086 = vmatprep.subr.mxu0 0.0
        %3087 = vmatpush1.msra.mxu0 %v3072
        %3088 = vmatprep.subr.mxu0 0.0
        %3089 = vmatpush1.msra.mxu0 %v3073
        %3090 = vmatprep.subr.mxu0 0.0
        %3091 = vmatpush1.msra.mxu0 %v3074
        %3092 = vmatprep.subr.mxu0 0.0
        %3093 = vmatpush1.msra.mxu0 %v3075
        %3094 = vmatprep.subr.mxu0 0.0
        %3095 = vmatpush1.msra.mxu0 0.0
        %3096 = vmatprep.subr.mxu0 0.0
        %3097 = vmatpush1.msra.mxu0 0.0
        %3098 = vmatprep.subr.mxu0 0.0
        %3099 = vmatpush1.msra.mxu0 0.0
        %3100 = vmatprep.subr.mxu0 0.0
        %3101 = vmatpush1.msra.mxu0 0.0
        %3102 = vmatprep.subr.mxu0 0.0
        %3103 = vmatpush1.msra.mxu0 0.0
        %3104 = vmatprep.subr.mxu0 0.0
        %3105 = vmatpush1.msra.mxu0 0.0
        %3106 = vmatprep.subr.mxu0 0.0
        %3107 = vmatpush1.msra.mxu0 0.0
        %3108 = vmatprep.subr.mxu0 0.0
        %3109 = vmatpush1.msra.mxu0 0.0
        %3110 = vmatprep.subr.mxu0 0.0
        %3111 = vmatpush1.msra.mxu0 0.0
        %3112 = vmatprep.subr.mxu0 0.0
        %3113 = vmatpush1.msra.mxu0 0.0
        %3114 = vmatprep.subr.mxu0 0.0
        %3115 = vmatpush1.msra.mxu0 0.0
        %3116 = vmatprep.subr.mxu0 0.0
        %3117 = vmatpush1.msra.mxu0 0.0
        %3118 = vmatprep.subr.mxu0 0.0
        %3119 = vmatpush1.msra.mxu0 0.0
        %3120 = vmatprep.subr.mxu0 0.0
        %3121 = vmatpush1.msra.mxu0 0.0
        %3122 = vmatprep.subr.mxu0 0.0
        %3123 = vmatpush1.msra.mxu0 0.0
        %3124 = vmatprep.subr.mxu0 0.0
        %3125 = vmatpush1.msra.mxu0 0.0
        %3126 = vmatprep.subr.mxu0 0.0
        %3127 = vmatpush1.msra.mxu0 0.0
        %3128 = vmatprep.subr.mxu0 0.0
        %3129 = vmatpush1.msra.mxu0 0.0
        %3130 = vmatprep.subr.mxu0 0.0
        %3131 = vmatpush1.msra.mxu0 0.0
        %3132 = vmatprep.subr.mxu0 0.0
        %3133 = vmatpush1.msra.mxu0 0.0
        %3134 = vmatprep.subr.mxu0 0.0
        %3135 = vmatpush1.msra.mxu0 0.0
        %3136 = vmatprep.subr.mxu0 0.0
        %3137 = vmatpush1.msra.mxu0 0.0
        %3138 = vmatprep.subr.mxu0 0.0
        %3139 = vmatpush1.msra.mxu0 0.0
        %3140 = vmatprep.subr.mxu0 0.0
        %3141 = vmatpush1.msra.mxu0 0.0
        %3142 = vmatprep.subr.mxu0 0.0
        %3143 = vmatpush1.msra.mxu0 0.0
        %3144 = vmatprep.subr.mxu0 0.0
        %3145 = vmatpush1.msra.mxu0 0.0
        %3146 = vmatprep.subr.mxu0 0.0
        %3147 = vmatpush1.msra.mxu0 0.0
        %3148 = vmatprep.subr.mxu0 0.0
        %3149 = vmatpush1.msra.mxu0 0.0
        %3150 = vmatprep.mubr.f32.mxu0 0.0
        %3151 = vmatmul.mubr.f32.gmra.mrb[0].mxu0 %v3084
        %v3152 = vpop.f32.mrb[0].mxu0
        %v3153 = vadd.f32 %v3081, %v3152
        %v3154 = vpop.f32.mrb[0].mxu0
        %3155 = vdwg.mxu0
        %v3156 = vsel %vm1044, %v3153, -inf
        %3157 = vmax.xlane.f32.xlu0 %v3156
        %v3158 = vpop.xlane.xlu0 %3157
        %v3159 = vsub.f32 %v3153, %v3158
        %v3160 = vmul.f32 %v3159, 1.442695
        %v3161 = vpow.pop %v3160
        %v3162 = vsel %vm1044, %v3161, 0.0
        %3163 = vadd.xlane.f32.xlu0 %v3162
        %v3164 = vpop.xlane.xlu0 %3163
        %v3165 = vrcp.pop %v3164
        %v3166 = vmul.f32 %v3161, %v3165
        %3168 = vset.pattern.permute.xlu0 32
        %3169 = vperm.xlu0 %3168, %v3071
        %v3170 = vpop.permute.xlu0 %3169
        %v3172 = vmul.f32 %v3166, %v3170
        %3173 = vst.msk [vmem:[%s1006] sm:$0xff] %vm1044, %v3172
        %v3174 = vsub.f32 1.0, %v3071
        %3176 = vset.pattern.permute.xlu0 32
        %3177 = vperm.xlu0 %3176, %v3174
        %v3178 = vpop.permute.xlu0 %3177
        %v3179 = vrot.slane %v3178, 1
        %v3180 = vrot.slane %v3178, 2
        %v3181 = vrot.slane %v3178, 3
        %v3182 = vrot.slane %v3178, 4
        %v3183 = vrot.slane %v3178, 5
        %v3184 = vrot.slane %v3178, 6
        %v3185 = vrot.slane %v3178, 7
        %v3194 = vmul.f32 %v2798, %v3178
        %v3195 = vmul.f32 %v2799, %v3179
        %v3196 = vmul.f32 %v2800, %v3180
        %v3197 = vmul.f32 %v2801, %v3181
        %v3198 = vmul.f32 %v2802, %v3182
        %v3199 = vmul.f32 %v2803, %v3183
        %v3200 = vmul.f32 %v2804, %v3184
        %v3201 = vmul.f32 %v2805, %v3185
        %v3210 = vrot.slane %v3195, 7
        %v3211 = vsel %vm2690, %v3210, %v3194
        %v3212 = vrot.slane %v3196, 6
        %v3213 = vsel %vm2693, %v3212, %v3211
        %v3214 = vrot.slane %v3197, 5
        %v3215 = vsel %vm2696, %v3214, %v3213
        %v3216 = vrot.slane %v3198, 4
        %v3217 = vsel %vm2699, %v3216, %v3215
        %v3218 = vrot.slane %v3199, 3
        %v3219 = vsel %vm2702, %v3218, %v3217
        %v3220 = vrot.slane %v3200, 2
        %v3221 = vsel %vm2705, %v3220, %v3219
        %v3222 = vrot.slane %v3201, 1
        %v3223 = vsel %vm2708, %v3222, %v3221
        %3225 = vst.msk [vmem:[%s1013] sm:$0xff] %vm2711, %v3223
        %3226 = vrot.lane.b32.xlu0 %v3071, 96
        %v3227 = vpop.permute.xlu0 %3226
        %vm3229 = vcmask 7168
        %3230 = vst.msk [vmem:[%s1020] sm:$0xff] %vm3229, %v3227
        %3232 = vst.msk [vmem:[%s1027] sm:$0xff] %vm2711, %v2828
        %s3233 = sand.u32 %s471, 1
        %s3234 = scalar_lea.sflag [#allocation8], %s3233
        %s3235 = sand.u32 %s471, 1
        %s3236 = smul.addr %s3235, 8
        %s3237 = scalar_lea.vmem [#allocation29], %s3236
        %s3238 = sand.u32 %s51, 1
        %s3239 = scalar_lea.sflag [#allocation31], %s3238
        %s3240 = sand.u32 %s499, 1
        %s3241 = smul.addr %s3240, 8
        %s3242 = scalar_lea.vmem [#allocation30], %s3241
        %s3243 = sand.u32 %s51, 1
        %s3244 = scalar_lea.sflag [#allocation31], %s3243
        %s3245 = sand.u32 %s527, 1
        %s3246 = smul.addr %s3245, 8
        %s3247 = scalar_lea.vmem [#allocation32], %s3246
        %s3248 = sand.u32 %s555, 1
        %s3249 = scalar_lea.sflag [#allocation34], %s3248
        %s3250 = sand.u32 %s555, 1
        %s3251 = smul.addr %s3250, 8
        %s3252 = scalar_lea.vmem [#allocation33], %s3251
        // Predicated region
        $region157: #{decoder_forward.1} parent=87 // pred_check
          %p3253 = pneg %p481
        $region158: #{decoder_forward.1} parent=87 // pred_check_branch
          %3255 = sbr.rel (%p3253) target = $region160
        $region159: #{decoder_forward.1} parent=87 // pred_region
          %s3257 = ssub.s32 128, 128
          %3258 = vsyncadd %s3234, %s3257
          %s3259 = sadd.s32 %s56, %s55
          %s3260 = smul.addr %s3259, 128
          %s3261 = scalar_lea.hbm %s17, %s3260
          %s3263 = sshll.u32 %s3237, 4
          %s3264 = int_to_ptr.vmem [resolvable:$true] %s3263
          %3266 = dma.vmem_to_hbm [thread:$0]  %s3264, 128, %s3261, %s3234
        $region160: #{decoder_forward.1} parent=87 // pred_fallthru
          _
        // Predicated region
        $region161: #{decoder_forward.1} parent=87 // pred_check
          %p3267 = pneg %p509
        $region162: #{decoder_forward.1} parent=87 // pred_check_branch
          %3269 = sbr.rel (%p3267) target = $region164
        $region163: #{decoder_forward.1} parent=87 // pred_region
          %s3271 = ssub.s32 128, 128
          %3272 = vsyncadd %s3239, %s3271
          %s3273 = sadd.s32 %s56, %s55
          %s3274 = smul.addr %s3273, 128
          %s3275 = scalar_lea.hbm %s18, %s3274
          %s3277 = sshll.u32 %s3242, 4
          %s3278 = int_to_ptr.vmem [resolvable:$true] %s3277
          %3280 = dma.vmem_to_hbm [thread:$0]  %s3278, 128, %s3275, %s3239
        $region164: #{decoder_forward.1} parent=87 // pred_fallthru
          _
        // Predicated region
        $region165: #{decoder_forward.1} parent=87 // pred_check
          %p3281 = pneg %p537
        $region166: #{decoder_forward.1} parent=87 // pred_check_branch
          %3283 = sbr.rel (%p3281) target = $region168
        $region167: #{decoder_forward.1} parent=87 // pred_region
          %s3285 = ssub.s32 128, 128
          %3286 = vsyncadd %s3244, %s3285
          %s3287 = sadd.s32 %s56, %s55
          %s3288 = smul.addr %s3287, 128
          %s3289 = scalar_lea.hbm %s19, %s3288
          %s3291 = sshll.u32 %s3247, 4
          %s3292 = int_to_ptr.vmem [resolvable:$true] %s3291
          %3294 = dma.vmem_to_hbm [thread:$0]  %s3292, 128, %s3289, %s3244
        $region168: #{decoder_forward.1} parent=87 // pred_fallthru
          _
        // Predicated region
        $region169: #{decoder_forward.1} parent=87 // pred_check
          %p3295 = pneg %p565
        $region170: #{decoder_forward.1} parent=87 // pred_check_branch
          %3297 = sbr.rel (%p3295) target = $region172
        $region171: #{decoder_forward.1} parent=87 // pred_region
          %s3299 = ssub.s32 128, 128
          %3300 = vsyncadd %s3249, %s3299
          %s3301 = sadd.s32 %s56, %s55
          %s3302 = smul.addr %s3301, 128
          %s3303 = scalar_lea.hbm %s20, %s3302
          %s3305 = sshll.u32 %s3252, 4
          %s3306 = int_to_ptr.vmem [resolvable:$true] %s3305
          %3308 = dma.vmem_to_hbm [thread:$0]  %s3306, 128, %s3303, %s3249
        $region172: #{decoder_forward.1} parent=87 // pred_fallthru
          _
      $region88: #{decoder_forward.1} parent=5 // pred_fallthru
        _
      %p3309 = scmp.le.s32.totalorder 2, %s46
      // Predicated region
      $region173: #{decoder_forward.1} parent=5 // pred_check
        %p3310 = pneg %p3309
      $region174: #{decoder_forward.1} parent=5 // pred_check_branch
        %3312 = sbr.rel (%p3310) target = $region176
      $region175: #{decoder_forward.1} parent=5 // pred_region
        %s3313 = ssub.s32 %s46, 2
        // Predicated region
        $region177: #{decoder_forward.1} parent=175 // pred_check
          %p3314 = pneg %p487
        $region178: #{decoder_forward.1} parent=175 // pred_check_branch
          %3316 = sbr.rel (%p3314) target = $region180
        $region179: #{decoder_forward.1} parent=175 // pred_region
          %s3317 = sand.u32 %s472, 1
          %s3318 = scalar_lea.sflag [#allocation8], %s3317
          %s3319 = sand.u32 %s472, 1
          %s3320 = smul.addr %s3319, 8
          %s3321 = scalar_lea.vmem [#allocation29], %s3320
          %3322 = dma.done %s3318, 128
        $region180: #{decoder_forward.1} parent=175 // pred_fallthru
          _
        // Predicated region
        $region181: #{decoder_forward.1} parent=175 // pred_check
          %p3323 = pneg %p515
        $region182: #{decoder_forward.1} parent=175 // pred_check_branch
          %3325 = sbr.rel (%p3323) target = $region184
        $region183: #{decoder_forward.1} parent=175 // pred_region
          %s3326 = sand.u32 %s52, 1
          %s3327 = scalar_lea.sflag [#allocation31], %s3326
          %s3328 = sand.u32 %s500, 1
          %s3329 = smul.addr %s3328, 8
          %s3330 = scalar_lea.vmem [#allocation30], %s3329
          %3331 = dma.done %s3327, 128
        $region184: #{decoder_forward.1} parent=175 // pred_fallthru
          _
        // Predicated region
        $region185: #{decoder_forward.1} parent=175 // pred_check
          %p3332 = pneg %p543
        $region186: #{decoder_forward.1} parent=175 // pred_check_branch
          %3334 = sbr.rel (%p3332) target = $region188
        $region187: #{decoder_forward.1} parent=175 // pred_region
          %s3335 = sand.u32 %s52, 1
          %s3336 = scalar_lea.sflag [#allocation31], %s3335
          %s3337 = sand.u32 %s528, 1
          %s3338 = smul.addr %s3337, 8
          %s3339 = scalar_lea.vmem [#allocation32], %s3338
          %3340 = dma.done %s3336, 128
        $region188: #{decoder_forward.1} parent=175 // pred_fallthru
          _
        // Predicated region
        $region189: #{decoder_forward.1} parent=175 // pred_check
          %p3341 = pneg %p571
        $region190: #{decoder_forward.1} parent=175 // pred_check_branch
          %3343 = sbr.rel (%p3341) target = $region192
        $region191: #{decoder_forward.1} parent=175 // pred_region
          %s3344 = sand.u32 %s556, 1
          %s3345 = scalar_lea.sflag [#allocation34], %s3344
          %s3346 = sand.u32 %s556, 1
          %s3347 = smul.addr %s3346, 8
          %s3348 = scalar_lea.vmem [#allocation33], %s3347
          %3349 = dma.done %s3345, 128
        $region192: #{decoder_forward.1} parent=175 // pred_fallthru
          _
      $region176: #{decoder_forward.1} parent=5 // pred_fallthru
        _
    $region6: #{decoder_forward.1} parent=1 // loop_footer
      %s50 = sadd.s32 1, %s46
    $region7: #{decoder_forward.1} parent=1 // loop_footer_branch
      %45 = sbr.rel target = $region3
    $region8: #{decoder_forward.1} parent=1 // loop_exit
      _
    %3350 = vsyncpa [#allocation7], 1
    %s3351 = scalar_lea.sflag [#allocation7], 1
    %3352 = vsyncpa %s3351, 1
    %3353 = vsyncpa [#allocation10], 1
    %3354 = vsyncpa [#allocation19], 1
    %3355 = vsyncpa [#allocation22], 1
    %3356 = vsyncpa [#allocation25], 1
    %3357 = vsyncpa [#allocation28], 1
    %3358 = vsyncpa [#allocation8], 1
    %s3359 = scalar_lea.sflag [#allocation8], 1
    %3360 = vsyncpa %s3359, 1
    %3361 = vsyncpa [#allocation31], 1
    %s3362 = scalar_lea.sflag [#allocation31], 1
    %3363 = vsyncpa %s3362, 1
    %3364 = vsyncpa [#allocation34], 1
    %s3365 = scalar_lea.sflag [#allocation34], 1
    %3366 = vsyncpa %s3365, 1

</llo_original>
